<compile_context>
chip_gen: v5e
topology: v5e:2x2
jax: 0.10.0
libtpu: 0.0.40
codegen_flags: <defaults>
</compile_context>

<pallas_src>
import functools
import math

import jax
import jax.numpy as jnp
from jax.experimental import pallas as pl
from jax.experimental.pallas import tpu as pltpu

EPS = 1e-5  # PyTorch nn.LayerNorm default


def _layernorm(x, w, b):
    # x: (S, D) f32; w, b: (D,) f32  — biased variance, like torch.nn.LayerNorm
    mu = jnp.mean(x, axis=-1, keepdims=True)
    var = jnp.mean((x - mu) ** 2, axis=-1, keepdims=True)
    return (x - mu) * jax.lax.rsqrt(var + EPS) * w + b


def clip_layer_kernel(x_ref,
                      ln1w_ref, ln1b_ref,
                      wqkv_ref, bqkv_ref,
                      wo_ref, bo_ref,
                      ln2w_ref, ln2b_ref,
                      w1_ref, b1_ref,
                      w2_ref, b2_ref,
                      lnfw_ref, lnfb_ref,
                      o_ref,
                      *, n_head, apply_final_ln):
    x = x_ref[0]                      # (S, D) f32
    S, D = x.shape
    dh = D // n_head
    scale = 1.0 / math.sqrt(dh)

    # ---------------- causal multi-head self-attention (pre-LN) -------------
    h = _layernorm(x, ln1w_ref[0], ln1b_ref[0]).astype(jnp.bfloat16)
    # Fused QKV projection: one big (S,D)x(D,3D) bf16 matmul, f32 accumulation.
    qkv = jnp.dot(h, wqkv_ref[...], preferred_element_type=jnp.float32) + bqkv_ref[0]

    row = jax.lax.broadcasted_iota(jnp.int32, (S, S), 0)
    col = jax.lax.broadcasted_iota(jnp.int32, (S, S), 1)
    causal = col > row                # True where masked (upper triangle, excl diag)

    # Per-head attention; head outputs are accumulated directly through the
    # per-head output-projection slabs wo_ref[hh] (no lane concatenate).
    # TODO(synk): heads stay unrolled (batched hqd,hkd->hqk einsum would need an
    # in-kernel (S,D)->(H,S,dh) relayout that Mosaic may reject at small shapes).
    attn = jnp.zeros((S, D), jnp.float32)
    for hh in range(n_head):
        q_h = (qkv[:, hh * dh:(hh + 1) * dh] * scale).astype(jnp.bfloat16)
        k_h = qkv[:, D + hh * dh:D + (hh + 1) * dh].astype(jnp.bfloat16)
        v_h = qkv[:, 2 * D + hh * dh:2 * D + (hh + 1) * dh].astype(jnp.bfloat16)

        # scores = q @ k.T (contraction over dh, no explicit transpose op)
        s = jax.lax.dot_general(q_h, k_h, (((1,), (1,)), ((), ())),
                                preferred_element_type=jnp.float32)   # (S, S) f32
        s = jnp.where(causal, jnp.float32(-1e30), s)
        s = s - jnp.max(s, axis=-1, keepdims=True)
        p = jnp.exp(s)
        p = p * pl.reciprocal(jnp.sum(p, axis=-1, keepdims=True), approx=True)
        o_h = jnp.dot(p.astype(jnp.bfloat16), v_h,
                      preferred_element_type=jnp.float32)             # (S, dh)
        attn = attn + jnp.dot(o_h.astype(jnp.bfloat16), wo_ref[hh],
                              preferred_element_type=jnp.float32)     # (S, D)

    x = x + attn + bo_ref[0]

    # ---------------- MLP block (quick-GELU) --------------------------------
    h = _layernorm(x, ln2w_ref[0], ln2b_ref[0]).astype(jnp.bfloat16)
    h = jnp.dot(h, w1_ref[...], preferred_element_type=jnp.float32) + b1_ref[0]
    h = h * pl.reciprocal(1.0 + jnp.exp(-1.702 * h), approx=True)  # x*sigmoid(1.702x)
    h = jnp.dot(h.astype(jnp.bfloat16), w2_ref[...],
                preferred_element_type=jnp.float32) + b2_ref[0]
    y = x + h

    if apply_final_ln:                 # final LayerNorm fused into last layer
        y = _layernorm(y, lnfw_ref[0], lnfb_ref[0])

    o_ref[0] = y


def run_clip_layer(x, layer_params, final_ln_params, n_head, apply_final_ln):
    B, S, D = x.shape
    # Activation: blocked over batch (double-buffered pipeline).
    # Weights/biases: whole-array, single-buffered VMEM residents.
    weight_spec = pl.BlockSpec(memory_space=pltpu.MemorySpace.VMEM)
    in_specs = [pl.BlockSpec((1, S, D), lambda b: (b, 0, 0))]
    in_specs += [weight_spec] * (len(layer_params) + len(final_ln_params))

    kernel = functools.partial(clip_layer_kernel, n_head=n_head,
                               apply_final_ln=apply_final_ln)
    return pl.pallas_call(
        kernel,
        out_shape=jax.ShapeDtypeStruct((B, S, D), jnp.float32),
        grid=(B,),
        in_specs=in_specs,
        out_specs=pl.BlockSpec((1, S, D), lambda b: (b, 0, 0)),
        input_output_aliases={0: 0},   # layer output reuses the input buffer
        compiler_params=pltpu.CompilerParams(
            dimension_semantics=("parallel",),
            vmem_limit_bytes=64 * 1024 * 1024),
    )(x, *layer_params, *final_ln_params)


def init_params(key, n_vocab, n_embd, n_tokens, n_head, n_layers):
    D = n_embd
    dh = D // n_head
    k_tok, key = jax.random.split(key)
    params = {
        "tok_emb": 0.02 * jax.random.normal(k_tok, (n_vocab, D), jnp.float32),
        "pos_emb": jnp.zeros((n_tokens, D), jnp.float32),   # torch.zeros in module
        "ln_f_w": jnp.ones((1, D), jnp.float32),
        "ln_f_b": jnp.zeros((1, D), jnp.float32),
        "layers": [],
    }
    for _ in range(n_layers):
        ks = jax.random.split(key, 7)
        key = ks[0]
        w_out = 0.02 * jax.random.normal(ks[3], (D, D), jnp.float32)   # (in, out)
        layer = (
            jnp.ones((1, D), jnp.float32),                                    # ln1 w
            jnp.zeros((1, D), jnp.float32),                                   # ln1 b
            (0.02 * jax.random.normal(ks[1], (D, 3 * D))).astype(jnp.bfloat16),  # W_qkv (in,out)
            0.02 * jax.random.normal(ks[2], (1, 3 * D), jnp.float32),         # b_qkv
            w_out.reshape(n_head, dh, D).astype(jnp.bfloat16),                # W_out per head
            jnp.zeros((1, D), jnp.float32),                                   # b_out
            jnp.ones((1, D), jnp.float32),                                    # ln2 w
            jnp.zeros((1, D), jnp.float32),                                   # ln2 b
            (0.02 * jax.random.normal(ks[4], (D, 4 * D))).astype(jnp.bfloat16),  # W_1
            0.02 * jax.random.normal(ks[5], (1, 4 * D), jnp.float32),         # b_1
            (0.02 * jax.random.normal(ks[6], (4 * D, D))).astype(jnp.bfloat16),  # W_2
            jnp.zeros((1, D), jnp.float32),                                   # b_2
        )
        params["layers"].append(layer)
    return params


@functools.partial(jax.jit, static_argnames=("n_head",))
def clip_forward(tokens, params, n_head):
    tokens = tokens.astype(jnp.int32)
    # glue: embedding gather + position add (CLIPEmbedding)
    x = jnp.take(params["tok_emb"], tokens, axis=0) + params["pos_emb"][None]
    final_ln = (params["ln_f_w"], params["ln_f_b"])
    n_layers = len(params["layers"])
    for li, layer in enumerate(params["layers"]):
        x = run_clip_layer(x, layer, final_ln, n_head,
                           apply_final_ln=(li == n_layers - 1))
    return x


if __name__ == "__main__":
    # Small shapes consistent with the module.  D is a multiple of 128 so the
    # (·, D) output stores are full-lane (unmasked vst).
    N_VOCAB, N_EMBD, N_TOKENS, N_HEAD, N_LAYERS, BATCH = 1000, 128, 16, 4, 2, 2

    key = jax.random.PRNGKey(0)
    k_params, k_tokens = jax.random.split(key)
    params = init_params(k_params, N_VOCAB, N_EMBD, N_TOKENS, N_HEAD, N_LAYERS)
    tokens = jax.random.randint(k_tokens, (BATCH, N_TOKENS), 0, N_VOCAB, dtype=jnp.int32)

    out = clip_forward(tokens, params, N_HEAD)
    out = jax.block_until_ready(out)
    assert out.shape == (BATCH, N_TOKENS, N_EMBD)
    assert jnp.all(jnp.isfinite(out))
    print("KERNEL_OK")
</pallas_src>

<mosaic_0001>
module attributes {stable_mosaic.version = 11 : i64} {
  func.func @clip_layer_kernel(%arg0: i32, %arg1: memref<1x16x128xf32, #tpu.memory_space<vmem>>, %arg2: memref<1x128xf32, #tpu.memory_space<vmem>>, %arg3: memref<1x128xf32, #tpu.memory_space<vmem>>, %arg4: memref<128x384xbf16, #tpu.memory_space<vmem>>, %arg5: memref<1x384xf32, #tpu.memory_space<vmem>>, %arg6: memref<4x32x128xbf16, #tpu.memory_space<vmem>>, %arg7: memref<1x128xf32, #tpu.memory_space<vmem>>, %arg8: memref<1x128xf32, #tpu.memory_space<vmem>>, %arg9: memref<1x128xf32, #tpu.memory_space<vmem>>, %arg10: memref<128x512xbf16, #tpu.memory_space<vmem>>, %arg11: memref<1x512xf32, #tpu.memory_space<vmem>>, %arg12: memref<512x128xbf16, #tpu.memory_space<vmem>>, %arg13: memref<1x128xf32, #tpu.memory_space<vmem>>, %arg14: memref<1x128xf32, #tpu.memory_space<vmem>>, %arg15: memref<1x128xf32, #tpu.memory_space<vmem>>, %arg16: memref<1x16x128xf32, #tpu.memory_space<vmem>>) attributes {dimension_semantics = [#tpu.dimension_semantics<parallel>], iteration_bounds = array<i64: 2>, scalar_prefetch = 0 : i64, scratch_operands = 0 : i64, tpu.core_type = #tpu.core_type<tc>, window_params = [{transform_indices = @transform_0, window_bounds = array<i64: 1, 16, 128>}, {pipeline_mode = #tpu.pipeline_mode<synchronous>, transform_indices = @transform_1, window_bounds = array<i64: 1, 128>}, {pipeline_mode = #tpu.pipeline_mode<synchronous>, transform_indices = @transform_2, window_bounds = array<i64: 1, 128>}, {pipeline_mode = #tpu.pipeline_mode<synchronous>, transform_indices = @transform_3, window_bounds = array<i64: 128, 384>}, {pipeline_mode = #tpu.pipeline_mode<synchronous>, transform_indices = @transform_4, window_bounds = array<i64: 1, 384>}, {pipeline_mode = #tpu.pipeline_mode<synchronous>, transform_indices = @transform_5, window_bounds = array<i64: 4, 32, 128>}, {pipeline_mode = #tpu.pipeline_mode<synchronous>, transform_indices = @transform_6, window_bounds = array<i64: 1, 128>}, {pipeline_mode = #tpu.pipeline_mode<synchronous>, transform_indices = @transform_7, window_bounds = array<i64: 1, 128>}, {pipeline_mode = #tpu.pipeline_mode<synchronous>, transform_indices = @transform_8, window_bounds = array<i64: 1, 128>}, {pipeline_mode = #tpu.pipeline_mode<synchronous>, transform_indices = @transform_9, window_bounds = array<i64: 128, 512>}, {pipeline_mode = #tpu.pipeline_mode<synchronous>, transform_indices = @transform_10, window_bounds = array<i64: 1, 512>}, {pipeline_mode = #tpu.pipeline_mode<synchronous>, transform_indices = @transform_11, window_bounds = array<i64: 512, 128>}, {pipeline_mode = #tpu.pipeline_mode<synchronous>, transform_indices = @transform_12, window_bounds = array<i64: 1, 128>}, {pipeline_mode = #tpu.pipeline_mode<synchronous>, transform_indices = @transform_13, window_bounds = array<i64: 1, 128>}, {pipeline_mode = #tpu.pipeline_mode<synchronous>, transform_indices = @transform_14, window_bounds = array<i64: 1, 128>}, {transform_indices = @transform_15, window_bounds = array<i64: 1, 16, 128>}]} {
    %c0 = arith.constant 0 : index
    %c0_0 = arith.constant 0 : index
    %c0_1 = arith.constant 0 : index
    %0 = vector.load %arg1[%c0, %c0_0, %c0_1] : memref<1x16x128xf32, #tpu.memory_space<vmem>>, vector<1x16x128xf32>
    %1 = vector.shape_cast %0 : vector<1x16x128xf32> to vector<16x128xf32>
    %c0_2 = arith.constant 0 : index
    %c0_3 = arith.constant 0 : index
    %2 = vector.load %arg2[%c0_2, %c0_3] : memref<1x128xf32, #tpu.memory_space<vmem>>, vector<1x128xf32>
    %3 = vector.shape_cast %2 : vector<1x128xf32> to vector<128xf32>
    %c0_4 = arith.constant 0 : index
    %c0_5 = arith.constant 0 : index
    %4 = vector.load %arg3[%c0_4, %c0_5] : memref<1x128xf32, #tpu.memory_space<vmem>>, vector<1x128xf32>
    %5 = vector.shape_cast %4 : vector<1x128xf32> to vector<128xf32>
    %cst = arith.constant dense<0.000000e+00> : vector<16xf32>
    %6 = vector.multi_reduction <add>, %1, %cst [1] : vector<16x128xf32> to vector<16xf32>
    %7 = vector.shape_cast %6 : vector<16xf32> to vector<16x1xf32>
    %cst_6 = arith.constant 1.280000e+02 : f32
    %8 = vector.broadcast %cst_6 : f32 to vector<16x1xf32>
    %9 = arith.divf %7, %8 : vector<16x1xf32>
    %10 = vector.broadcast %9 : vector<16x1xf32> to vector<16x128xf32>
    %11 = arith.subf %1, %10 : vector<16x128xf32>
    %12 = arith.mulf %11, %11 : vector<16x128xf32>
    %cst_7 = arith.constant dense<0.000000e+00> : vector<16xf32>
    %13 = vector.multi_reduction <add>, %12, %cst_7 [1] : vector<16x128xf32> to vector<16xf32>
    %14 = vector.shape_cast %13 : vector<16xf32> to vector<16x1xf32>
    %cst_8 = arith.constant 1.280000e+02 : f32
    %15 = vector.broadcast %cst_8 : f32 to vector<16x1xf32>
    %16 = arith.divf %14, %15 : vector<16x1xf32>
    %17 = vector.broadcast %9 : vector<16x1xf32> to vector<16x128xf32>
    %18 = arith.subf %1, %17 : vector<16x128xf32>
    %cst_9 = arith.constant 9.99999974E-6 : f32
    %19 = vector.broadcast %cst_9 : f32 to vector<16x1xf32>
    %20 = arith.addf %16, %19 : vector<16x1xf32>
    %21 = math.rsqrt %20 : vector<16x1xf32>
    %22 = vector.broadcast %21 : vector<16x1xf32> to vector<16x128xf32>
    %23 = arith.mulf %18, %22 : vector<16x128xf32>
    %24 = vector.shape_cast %3 : vector<128xf32> to vector<1x128xf32>
    %25 = vector.broadcast %24 : vector<1x128xf32> to vector<16x128xf32>
    %26 = arith.mulf %23, %25 : vector<16x128xf32>
    %27 = vector.shape_cast %5 : vector<128xf32> to vector<1x128xf32>
    %28 = vector.broadcast %27 : vector<1x128xf32> to vector<16x128xf32>
    %29 = arith.addf %26, %28 : vector<16x128xf32>
    %30 = arith.truncf %29 : vector<16x128xf32> to vector<16x128xbf16>
    %c0_10 = arith.constant 0 : index
    %c0_11 = arith.constant 0 : index
    %31 = vector.load %arg4[%c0_10, %c0_11] : memref<128x384xbf16, #tpu.memory_space<vmem>>, vector<128x384xbf16>
    %cst_12 = arith.constant dense<0.000000e+00> : vector<16x384xf32>
    %32 = tpu.matmul %30, %31, %cst_12 {dimension_numbers = #tpu.dot_dimension_numbers<[1], [0], [0], [1], [0, 0, 1, 1], [], []>} : vector<16x128xbf16>, vector<128x384xbf16>, vector<16x384xf32> -> vector<16x384xf32>
    %c0_13 = arith.constant 0 : index
    %c0_14 = arith.constant 0 : index
    %33 = vector.load %arg5[%c0_13, %c0_14] : memref<1x384xf32, #tpu.memory_space<vmem>>, vector<1x384xf32>
    %34 = vector.shape_cast %33 : vector<1x384xf32> to vector<384xf32>
    %35 = vector.shape_cast %34 : vector<384xf32> to vector<1x384xf32>
    %36 = vector.broadcast %35 : vector<1x384xf32> to vector<16x384xf32>
    %37 = arith.addf %32, %36 : vector<16x384xf32>
    %38 = tpu.iota {dimensions = array<i32: 0>} : vector<16x16xi32>
    %39 = tpu.iota {dimensions = array<i32: 1>} : vector<16x16xi32>
    %40 = arith.cmpi sgt, %39, %38 : vector<16x16xi32>
    %cst_15 = arith.constant 0.000000e+00 : f32
    %41 = vector.broadcast %cst_15 : f32 to vector<16x128xf32>
    %42 = vector.extract_strided_slice %37 {offsets = [0, 0], sizes = [16, 32], strides = [1, 1]} : vector<16x384xf32> to vector<16x32xf32>
    %cst_16 = arith.constant 0.176776692 : f32
    %43 = vector.broadcast %cst_16 : f32 to vector<16x32xf32>
    %44 = arith.mulf %42, %43 : vector<16x32xf32>
    %45 = arith.truncf %44 : vector<16x32xf32> to vector<16x32xbf16>
    %46 = vector.extract_strided_slice %37 {offsets = [0, 128], sizes = [16, 32], strides = [1, 1]} : vector<16x384xf32> to vector<16x32xf32>
    %47 = arith.truncf %46 : vector<16x32xf32> to vector<16x32xbf16>
    %48 = vector.extract_strided_slice %37 {offsets = [0, 256], sizes = [16, 32], strides = [1, 1]} : vector<16x384xf32> to vector<16x32xf32>
    %49 = arith.truncf %48 : vector<16x32xf32> to vector<16x32xbf16>
    %cst_17 = arith.constant dense<0.000000e+00> : vector<16x16xf32>
    %50 = tpu.matmul %45, %47, %cst_17 {dimension_numbers = #tpu.dot_dimension_numbers<[1], [1], [0], [0], [0, 0, 1, 0], [], []>} : vector<16x32xbf16>, vector<16x32xbf16>, vector<16x16xf32> -> vector<16x16xf32>
    %cst_18 = arith.constant -1.000000e+30 : f32
    %51 = vector.broadcast %cst_18 : f32 to vector<16x16xf32>
    %52 = arith.select %40, %51, %50 : vector<16x16xi1>, vector<16x16xf32>
    %cst_19 = arith.constant dense<0xFF800000> : vector<16xf32>
    %53 = vector.multi_reduction <maximumf>, %52, %cst_19 [1] : vector<16x16xf32> to vector<16xf32>
    %54 = vector.shape_cast %53 : vector<16xf32> to vector<16x1xf32>
    %55 = vector.broadcast %54 : vector<16x1xf32> to vector<16x16xf32>
    %56 = arith.subf %52, %55 : vector<16x16xf32>
    %57 = math.exp %56 : vector<16x16xf32>
    %cst_20 = arith.constant dense<0.000000e+00> : vector<16xf32>
    %58 = vector.multi_reduction <add>, %57, %cst_20 [1] : vector<16x16xf32> to vector<16xf32>
    %59 = vector.shape_cast %58 : vector<16xf32> to vector<16x1xf32>
    %60 = tpu.reciprocal %59 {approx = true} : vector<16x1xf32> -> vector<16x1xf32>
    %61 = vector.broadcast %60 : vector<16x1xf32> to vector<16x16xf32>
    %62 = arith.mulf %57, %61 : vector<16x16xf32>
    %63 = arith.truncf %62 : vector<16x16xf32> to vector<16x16xbf16>
    %cst_21 = arith.constant dense<0.000000e+00> : vector<16x32xf32>
    %64 = tpu.matmul %63, %49, %cst_21 {dimension_numbers = #tpu.dot_dimension_numbers<[1], [0], [0], [1], [0, 0, 1, 1], [], []>} : vector<16x16xbf16>, vector<16x32xbf16>, vector<16x32xf32> -> vector<16x32xf32>
    %65 = arith.truncf %64 : vector<16x32xf32> to vector<16x32xbf16>
    %c0_22 = arith.constant 0 : index
    %c0_23 = arith.constant 0 : index
    %c0_24 = arith.constant 0 : index
    %66 = vector.load %arg6[%c0_22, %c0_23, %c0_24] : memref<4x32x128xbf16, #tpu.memory_space<vmem>>, vector<1x32x128xbf16>
    %67 = vector.shape_cast %66 : vector<1x32x128xbf16> to vector<32x128xbf16>
    %cst_25 = arith.constant dense<0.000000e+00> : vector<16x128xf32>
    %68 = tpu.matmul %65, %67, %cst_25 {dimension_numbers = #tpu.dot_dimension_numbers<[1], [0], [0], [1], [0, 0, 1, 1], [], []>} : vector<16x32xbf16>, vector<32x128xbf16>, vector<16x128xf32> -> vector<16x128xf32>
    %69 = arith.addf %41, %68 : vector<16x128xf32>
    %70 = vector.extract_strided_slice %37 {offsets = [0, 32], sizes = [16, 32], strides = [1, 1]} : vector<16x384xf32> to vector<16x32xf32>
    %cst_26 = arith.constant 0.176776692 : f32
    %71 = vector.broadcast %cst_26 : f32 to vector<16x32xf32>
    %72 = arith.mulf %70, %71 : vector<16x32xf32>
    %73 = arith.truncf %72 : vector<16x32xf32> to vector<16x32xbf16>
    %74 = vector.extract_strided_slice %37 {offsets = [0, 160], sizes = [16, 32], strides = [1, 1]} : vector<16x384xf32> to vector<16x32xf32>
    %75 = arith.truncf %74 : vector<16x32xf32> to vector<16x32xbf16>
    %76 = vector.extract_strided_slice %37 {offsets = [0, 288], sizes = [16, 32], strides = [1, 1]} : vector<16x384xf32> to vector<16x32xf32>
    %77 = arith.truncf %76 : vector<16x32xf32> to vector<16x32xbf16>
    %cst_27 = arith.constant dense<0.000000e+00> : vector<16x16xf32>
    %78 = tpu.matmul %73, %75, %cst_27 {dimension_numbers = #tpu.dot_dimension_numbers<[1], [1], [0], [0], [0, 0, 1, 0], [], []>} : vector<16x32xbf16>, vector<16x32xbf16>, vector<16x16xf32> -> vector<16x16xf32>
    %cst_28 = arith.constant -1.000000e+30 : f32
    %79 = vector.broadcast %cst_28 : f32 to vector<16x16xf32>
    %80 = arith.select %40, %79, %78 : vector<16x16xi1>, vector<16x16xf32>
    %cst_29 = arith.constant dense<0xFF800000> : vector<16xf32>
    %81 = vector.multi_reduction <maximumf>, %80, %cst_29 [1] : vector<16x16xf32> to vector<16xf32>
    %82 = vector.shape_cast %81 : vector<16xf32> to vector<16x1xf32>
    %83 = vector.broadcast %82 : vector<16x1xf32> to vector<16x16xf32>
    %84 = arith.subf %80, %83 : vector<16x16xf32>
    %85 = math.exp %84 : vector<16x16xf32>
    %cst_30 = arith.constant dense<0.000000e+00> : vector<16xf32>
    %86 = vector.multi_reduction <add>, %85, %cst_30 [1] : vector<16x16xf32> to vector<16xf32>
    %87 = vector.shape_cast %86 : vector<16xf32> to vector<16x1xf32>
    %88 = tpu.reciprocal %87 {approx = true} : vector<16x1xf32> -> vector<16x1xf32>
    %89 = vector.broadcast %88 : vector<16x1xf32> to vector<16x16xf32>
    %90 = arith.mulf %85, %89 : vector<16x16xf32>
    %91 = arith.truncf %90 : vector<16x16xf32> to vector<16x16xbf16>
    %cst_31 = arith.constant dense<0.000000e+00> : vector<16x32xf32>
    %92 = tpu.matmul %91, %77, %cst_31 {dimension_numbers = #tpu.dot_dimension_numbers<[1], [0], [0], [1], [0, 0, 1, 1], [], []>} : vector<16x16xbf16>, vector<16x32xbf16>, vector<16x32xf32> -> vector<16x32xf32>
    %93 = arith.truncf %92 : vector<16x32xf32> to vector<16x32xbf16>
    %c1 = arith.constant 1 : index
    %c0_32 = arith.constant 0 : index
    %c0_33 = arith.constant 0 : index
    %94 = vector.load %arg6[%c1, %c0_32, %c0_33] : memref<4x32x128xbf16, #tpu.memory_space<vmem>>, vector<1x32x128xbf16>
    %95 = vector.shape_cast %94 : vector<1x32x128xbf16> to vector<32x128xbf16>
    %cst_34 = arith.constant dense<0.000000e+00> : vector<16x128xf32>
    %96 = tpu.matmul %93, %95, %cst_34 {dimension_numbers = #tpu.dot_dimension_numbers<[1], [0], [0], [1], [0, 0, 1, 1], [], []>} : vector<16x32xbf16>, vector<32x128xbf16>, vector<16x128xf32> -> vector<16x128xf32>
    %97 = arith.addf %69, %96 : vector<16x128xf32>
    %98 = vector.extract_strided_slice %37 {offsets = [0, 64], sizes = [16, 32], strides = [1, 1]} : vector<16x384xf32> to vector<16x32xf32>
    %cst_35 = arith.constant 0.176776692 : f32
    %99 = vector.broadcast %cst_35 : f32 to vector<16x32xf32>
    %100 = arith.mulf %98, %99 : vector<16x32xf32>
    %101 = arith.truncf %100 : vector<16x32xf32> to vector<16x32xbf16>
    %102 = vector.extract_strided_slice %37 {offsets = [0, 192], sizes = [16, 32], strides = [1, 1]} : vector<16x384xf32> to vector<16x32xf32>
    %103 = arith.truncf %102 : vector<16x32xf32> to vector<16x32xbf16>
    %104 = vector.extract_strided_slice %37 {offsets = [0, 320], sizes = [16, 32], strides = [1, 1]} : vector<16x384xf32> to vector<16x32xf32>
    %105 = arith.truncf %104 : vector<16x32xf32> to vector<16x32xbf16>
    %cst_36 = arith.constant dense<0.000000e+00> : vector<16x16xf32>
    %106 = tpu.matmul %101, %103, %cst_36 {dimension_numbers = #tpu.dot_dimension_numbers<[1], [1], [0], [0], [0, 0, 1, 0], [], []>} : vector<16x32xbf16>, vector<16x32xbf16>, vector<16x16xf32> -> vector<16x16xf32>
    %cst_37 = arith.constant -1.000000e+30 : f32
    %107 = vector.broadcast %cst_37 : f32 to vector<16x16xf32>
    %108 = arith.select %40, %107, %106 : vector<16x16xi1>, vector<16x16xf32>
    %cst_38 = arith.constant dense<0xFF800000> : vector<16xf32>
    %109 = vector.multi_reduction <maximumf>, %108, %cst_38 [1] : vector<16x16xf32> to vector<16xf32>
    %110 = vector.shape_cast %109 : vector<16xf32> to vector<16x1xf32>
    %111 = vector.broadcast %110 : vector<16x1xf32> to vector<16x16xf32>
    %112 = arith.subf %108, %111 : vector<16x16xf32>
    %113 = math.exp %112 : vector<16x16xf32>
    %cst_39 = arith.constant dense<0.000000e+00> : vector<16xf32>
    %114 = vector.multi_reduction <add>, %113, %cst_39 [1] : vector<16x16xf32> to vector<16xf32>
    %115 = vector.shape_cast %114 : vector<16xf32> to vector<16x1xf32>
    %116 = tpu.reciprocal %115 {approx = true} : vector<16x1xf32> -> vector<16x1xf32>
    %117 = vector.broadcast %116 : vector<16x1xf32> to vector<16x16xf32>
    %118 = arith.mulf %113, %117 : vector<16x16xf32>
    %119 = arith.truncf %118 : vector<16x16xf32> to vector<16x16xbf16>
    %cst_40 = arith.constant dense<0.000000e+00> : vector<16x32xf32>
    %120 = tpu.matmul %119, %105, %cst_40 {dimension_numbers = #tpu.dot_dimension_numbers<[1], [0], [0], [1], [0, 0, 1, 1], [], []>} : vector<16x16xbf16>, vector<16x32xbf16>, vector<16x32xf32> -> vector<16x32xf32>
    %121 = arith.truncf %120 : vector<16x32xf32> to vector<16x32xbf16>
    %c2 = arith.constant 2 : index
    %c0_41 = arith.constant 0 : index
    %c0_42 = arith.constant 0 : index
    %122 = vector.load %arg6[%c2, %c0_41, %c0_42] : memref<4x32x128xbf16, #tpu.memory_space<vmem>>, vector<1x32x128xbf16>
    %123 = vector.shape_cast %122 : vector<1x32x128xbf16> to vector<32x128xbf16>
    %cst_43 = arith.constant dense<0.000000e+00> : vector<16x128xf32>
    %124 = tpu.matmul %121, %123, %cst_43 {dimension_numbers = #tpu.dot_dimension_numbers<[1], [0], [0], [1], [0, 0, 1, 1], [], []>} : vector<16x32xbf16>, vector<32x128xbf16>, vector<16x128xf32> -> vector<16x128xf32>
    %125 = arith.addf %97, %124 : vector<16x128xf32>
    %126 = vector.extract_strided_slice %37 {offsets = [0, 96], sizes = [16, 32], strides = [1, 1]} : vector<16x384xf32> to vector<16x32xf32>
    %cst_44 = arith.constant 0.176776692 : f32
    %127 = vector.broadcast %cst_44 : f32 to vector<16x32xf32>
    %128 = arith.mulf %126, %127 : vector<16x32xf32>
    %129 = arith.truncf %128 : vector<16x32xf32> to vector<16x32xbf16>
    %130 = vector.extract_strided_slice %37 {offsets = [0, 224], sizes = [16, 32], strides = [1, 1]} : vector<16x384xf32> to vector<16x32xf32>
    %131 = arith.truncf %130 : vector<16x32xf32> to vector<16x32xbf16>
    %132 = vector.extract_strided_slice %37 {offsets = [0, 352], sizes = [16, 32], strides = [1, 1]} : vector<16x384xf32> to vector<16x32xf32>
    %133 = arith.truncf %132 : vector<16x32xf32> to vector<16x32xbf16>
    %cst_45 = arith.constant dense<0.000000e+00> : vector<16x16xf32>
    %134 = tpu.matmul %129, %131, %cst_45 {dimension_numbers = #tpu.dot_dimension_numbers<[1], [1], [0], [0], [0, 0, 1, 0], [], []>} : vector<16x32xbf16>, vector<16x32xbf16>, vector<16x16xf32> -> vector<16x16xf32>
    %cst_46 = arith.constant -1.000000e+30 : f32
    %135 = vector.broadcast %cst_46 : f32 to vector<16x16xf32>
    %136 = arith.select %40, %135, %134 : vector<16x16xi1>, vector<16x16xf32>
    %cst_47 = arith.constant dense<0xFF800000> : vector<16xf32>
    %137 = vector.multi_reduction <maximumf>, %136, %cst_47 [1] : vector<16x16xf32> to vector<16xf32>
    %138 = vector.shape_cast %137 : vector<16xf32> to vector<16x1xf32>
    %139 = vector.broadcast %138 : vector<16x1xf32> to vector<16x16xf32>
    %140 = arith.subf %136, %139 : vector<16x16xf32>
    %141 = math.exp %140 : vector<16x16xf32>
    %cst_48 = arith.constant dense<0.000000e+00> : vector<16xf32>
    %142 = vector.multi_reduction <add>, %141, %cst_48 [1] : vector<16x16xf32> to vector<16xf32>
    %143 = vector.shape_cast %142 : vector<16xf32> to vector<16x1xf32>
    %144 = tpu.reciprocal %143 {approx = true} : vector<16x1xf32> -> vector<16x1xf32>
    %145 = vector.broadcast %144 : vector<16x1xf32> to vector<16x16xf32>
    %146 = arith.mulf %141, %145 : vector<16x16xf32>
    %147 = arith.truncf %146 : vector<16x16xf32> to vector<16x16xbf16>
    %cst_49 = arith.constant dense<0.000000e+00> : vector<16x32xf32>
    %148 = tpu.matmul %147, %133, %cst_49 {dimension_numbers = #tpu.dot_dimension_numbers<[1], [0], [0], [1], [0, 0, 1, 1], [], []>} : vector<16x16xbf16>, vector<16x32xbf16>, vector<16x32xf32> -> vector<16x32xf32>
    %149 = arith.truncf %148 : vector<16x32xf32> to vector<16x32xbf16>
    %c3 = arith.constant 3 : index
    %c0_50 = arith.constant 0 : index
    %c0_51 = arith.constant 0 : index
    %150 = vector.load %arg6[%c3, %c0_50, %c0_51] : memref<4x32x128xbf16, #tpu.memory_space<vmem>>, vector<1x32x128xbf16>
    %151 = vector.shape_cast %150 : vector<1x32x128xbf16> to vector<32x128xbf16>
    %cst_52 = arith.constant dense<0.000000e+00> : vector<16x128xf32>
    %152 = tpu.matmul %149, %151, %cst_52 {dimension_numbers = #tpu.dot_dimension_numbers<[1], [0], [0], [1], [0, 0, 1, 1], [], []>} : vector<16x32xbf16>, vector<32x128xbf16>, vector<16x128xf32> -> vector<16x128xf32>
    %153 = arith.addf %125, %152 : vector<16x128xf32>
    %154 = arith.addf %1, %153 : vector<16x128xf32>
    %c0_53 = arith.constant 0 : index
    %c0_54 = arith.constant 0 : index
    %155 = vector.load %arg7[%c0_53, %c0_54] : memref<1x128xf32, #tpu.memory_space<vmem>>, vector<1x128xf32>
    %156 = vector.shape_cast %155 : vector<1x128xf32> to vector<128xf32>
    %157 = vector.shape_cast %156 : vector<128xf32> to vector<1x128xf32>
    %158 = vector.broadcast %157 : vector<1x128xf32> to vector<16x128xf32>
    %159 = arith.addf %154, %158 : vector<16x128xf32>
    %c0_55 = arith.constant 0 : index
    %c0_56 = arith.constant 0 : index
    %160 = vector.load %arg8[%c0_55, %c0_56] : memref<1x128xf32, #tpu.memory_space<vmem>>, vector<1x128xf32>
    %161 = vector.shape_cast %160 : vector<1x128xf32> to vector<128xf32>
    %c0_57 = arith.constant 0 : index
    %c0_58 = arith.constant 0 : index
    %162 = vector.load %arg9[%c0_57, %c0_58] : memref<1x128xf32, #tpu.memory_space<vmem>>, vector<1x128xf32>
    %163 = vector.shape_cast %162 : vector<1x128xf32> to vector<128xf32>
    %cst_59 = arith.constant dense<0.000000e+00> : vector<16xf32>
    %164 = vector.multi_reduction <add>, %159, %cst_59 [1] : vector<16x128xf32> to vector<16xf32>
    %165 = vector.shape_cast %164 : vector<16xf32> to vector<16x1xf32>
    %cst_60 = arith.constant 1.280000e+02 : f32
    %166 = vector.broadcast %cst_60 : f32 to vector<16x1xf32>
    %167 = arith.divf %165, %166 : vector<16x1xf32>
    %168 = vector.broadcast %167 : vector<16x1xf32> to vector<16x128xf32>
    %169 = arith.subf %159, %168 : vector<16x128xf32>
    %170 = arith.mulf %169, %169 : vector<16x128xf32>
    %cst_61 = arith.constant dense<0.000000e+00> : vector<16xf32>
    %171 = vector.multi_reduction <add>, %170, %cst_61 [1] : vector<16x128xf32> to vector<16xf32>
    %172 = vector.shape_cast %171 : vector<16xf32> to vector<16x1xf32>
    %cst_62 = arith.constant 1.280000e+02 : f32
    %173 = vector.broadcast %cst_62 : f32 to vector<16x1xf32>
    %174 = arith.divf %172, %173 : vector<16x1xf32>
    %175 = vector.broadcast %167 : vector<16x1xf32> to vector<16x128xf32>
    %176 = arith.subf %159, %175 : vector<16x128xf32>
    %cst_63 = arith.constant 9.99999974E-6 : f32
    %177 = vector.broadcast %cst_63 : f32 to vector<16x1xf32>
    %178 = arith.addf %174, %177 : vector<16x1xf32>
    %179 = math.rsqrt %178 : vector<16x1xf32>
    %180 = vector.broadcast %179 : vector<16x1xf32> to vector<16x128xf32>
    %181 = arith.mulf %176, %180 : vector<16x128xf32>
    %182 = vector.shape_cast %161 : vector<128xf32> to vector<1x128xf32>
    %183 = vector.broadcast %182 : vector<1x128xf32> to vector<16x128xf32>
    %184 = arith.mulf %181, %183 : vector<16x128xf32>
    %185 = vector.shape_cast %163 : vector<128xf32> to vector<1x128xf32>
    %186 = vector.broadcast %185 : vector<1x128xf32> to vector<16x128xf32>
    %187 = arith.addf %184, %186 : vector<16x128xf32>
    %188 = arith.truncf %187 : vector<16x128xf32> to vector<16x128xbf16>
    %c0_64 = arith.constant 0 : index
    %c0_65 = arith.constant 0 : index
    %189 = vector.load %arg10[%c0_64, %c0_65] : memref<128x512xbf16, #tpu.memory_space<vmem>>, vector<128x512xbf16>
    %cst_66 = arith.constant dense<0.000000e+00> : vector<16x512xf32>
    %190 = tpu.matmul %188, %189, %cst_66 {dimension_numbers = #tpu.dot_dimension_numbers<[1], [0], [0], [1], [0, 0, 1, 1], [], []>} : vector<16x128xbf16>, vector<128x512xbf16>, vector<16x512xf32> -> vector<16x512xf32>
    %c0_67 = arith.constant 0 : index
    %c0_68 = arith.constant 0 : index
    %191 = vector.load %arg11[%c0_67, %c0_68] : memref<1x512xf32, #tpu.memory_space<vmem>>, vector<1x512xf32>
    %192 = vector.shape_cast %191 : vector<1x512xf32> to vector<512xf32>
    %193 = vector.shape_cast %192 : vector<512xf32> to vector<1x512xf32>
    %194 = vector.broadcast %193 : vector<1x512xf32> to vector<16x512xf32>
    %195 = arith.addf %190, %194 : vector<16x512xf32>
    %cst_69 = arith.constant -1.702000e+00 : f32
    %196 = vector.broadcast %cst_69 : f32 to vector<16x512xf32>
    %197 = arith.mulf %196, %195 : vector<16x512xf32>
    %198 = math.exp %197 : vector<16x512xf32>
    %cst_70 = arith.constant 1.000000e+00 : f32
    %199 = vector.broadcast %cst_70 : f32 to vector<16x512xf32>
    %200 = arith.addf %199, %198 : vector<16x512xf32>
    %201 = tpu.reciprocal %200 {approx = true} : vector<16x512xf32> -> vector<16x512xf32>
    %202 = arith.mulf %195, %201 : vector<16x512xf32>
    %203 = arith.truncf %202 : vector<16x512xf32> to vector<16x512xbf16>
    %c0_71 = arith.constant 0 : index
    %c0_72 = arith.constant 0 : index
    %204 = vector.load %arg12[%c0_71, %c0_72] : memref<512x128xbf16, #tpu.memory_space<vmem>>, vector<512x128xbf16>
    %cst_73 = arith.constant dense<0.000000e+00> : vector<16x128xf32>
    %205 = tpu.matmul %203, %204, %cst_73 {dimension_numbers = #tpu.dot_dimension_numbers<[1], [0], [0], [1], [0, 0, 1, 1], [], []>} : vector<16x512xbf16>, vector<512x128xbf16>, vector<16x128xf32> -> vector<16x128xf32>
    %c0_74 = arith.constant 0 : index
    %c0_75 = arith.constant 0 : index
    %206 = vector.load %arg13[%c0_74, %c0_75] : memref<1x128xf32, #tpu.memory_space<vmem>>, vector<1x128xf32>
    %207 = vector.shape_cast %206 : vector<1x128xf32> to vector<128xf32>
    %208 = vector.shape_cast %207 : vector<128xf32> to vector<1x128xf32>
    %209 = vector.broadcast %208 : vector<1x128xf32> to vector<16x128xf32>
    %210 = arith.addf %205, %209 : vector<16x128xf32>
    %211 = arith.addf %159, %210 : vector<16x128xf32>
    %c0_76 = arith.constant 0 : index
    %c0_77 = arith.constant 0 : index
    %c0_78 = arith.constant 0 : index
    %212 = vector.load %arg16[%c0_76, %c0_77, %c0_78] : memref<1x16x128xf32, #tpu.memory_space<vmem>>, vector<1x16x128xf32>
    %213 = vector.shape_cast %212 : vector<1x16x128xf32> to vector<16x128xf32>
    %214 = vector.shape_cast %211 : vector<16x128xf32> to vector<1x16x128xf32>
    tpu.vector_store %arg16[%c0_76, %c0_77, %c0_78], %214 {strides = array<i32>} : memref<1x16x128xf32, #tpu.memory_space<vmem>>, vector<1x16x128xf32>,
    return
  }
  func.func @transform_0(%arg0: i32) -> (i32, i32, i32) {
    %c0_i32 = arith.constant 0 : i32
    %c0_i32_0 = arith.constant 0 : i32
    %c0_i32_1 = arith.constant 0 : i32
    return %arg0, %c0_i32, %c0_i32_0 : i32, i32, i32
  }
  func.func @transform_1(%arg0: i32) -> (i32, i32) {
    %c0_i32 = arith.constant 0 : i32
    %c0_i32_0 = arith.constant 0 : i32
    %c0_i32_1 = arith.constant 0 : i32
    return %c0_i32, %c0_i32_0 : i32, i32
  }
  func.func @transform_2(%arg0: i32) -> (i32, i32) {
    %c0_i32 = arith.constant 0 : i32
    %c0_i32_0 = arith.constant 0 : i32
    %c0_i32_1 = arith.constant 0 : i32
    return %c0_i32, %c0_i32_0 : i32, i32
  }
  func.func @transform_3(%arg0: i32) -> (i32, i32) {
    %c0_i32 = arith.constant 0 : i32
    %c0_i32_0 = arith.constant 0 : i32
    %c0_i32_1 = arith.constant 0 : i32
    return %c0_i32, %c0_i32_0 : i32, i32
  }
  func.func @transform_4(%arg0: i32) -> (i32, i32) {
    %c0_i32 = arith.constant 0 : i32
    %c0_i32_0 = arith.constant 0 : i32
    %c0_i32_1 = arith.constant 0 : i32
    return %c0_i32, %c0_i32_0 : i32, i32
  }
  func.func @transform_5(%arg0: i32) -> (i32, i32, i32) {
    %c0_i32 = arith.constant 0 : i32
    %c0_i32_0 = arith.constant 0 : i32
    %c0_i32_1 = arith.constant 0 : i32
    %c0_i32_2 = arith.constant 0 : i32
    return %c0_i32, %c0_i32_0, %c0_i32_1 : i32, i32, i32
  }
  func.func @transform_6(%arg0: i32) -> (i32, i32) {
    %c0_i32 = arith.constant 0 : i32
    %c0_i32_0 = arith.constant 0 : i32
    %c0_i32_1 = arith.constant 0 : i32
    return %c0_i32, %c0_i32_0 : i32, i32
  }
  func.func @transform_7(%arg0: i32) -> (i32, i32) {
    %c0_i32 = arith.constant 0 : i32
    %c0_i32_0 = arith.constant 0 : i32
    %c0_i32_1 = arith.constant 0 : i32
    return %c0_i32, %c0_i32_0 : i32, i32
  }
  func.func @transform_8(%arg0: i32) -> (i32, i32) {
    %c0_i32 = arith.constant 0 : i32
    %c0_i32_0 = arith.constant 0 : i32
    %c0_i32_1 = arith.constant 0 : i32
    return %c0_i32, %c0_i32_0 : i32, i32
  }
  func.func @transform_9(%arg0: i32) -> (i32, i32) {
    %c0_i32 = arith.constant 0 : i32
    %c0_i32_0 = arith.constant 0 : i32
    %c0_i32_1 = arith.constant 0 : i32
    return %c0_i32, %c0_i32_0 : i32, i32
  }
  func.func @transform_10(%arg0: i32) -> (i32, i32) {
    %c0_i32 = arith.constant 0 : i32
    %c0_i32_0 = arith.constant 0 : i32
    %c0_i32_1 = arith.constant 0 : i32
    return %c0_i32, %c0_i32_0 : i32, i32
  }
  func.func @transform_11(%arg0: i32) -> (i32, i32) {
    %c0_i32 = arith.constant 0 : i32
    %c0_i32_0 = arith.constant 0 : i32
    %c0_i32_1 = arith.constant 0 : i32
    return %c0_i32, %c0_i32_0 : i32, i32
  }
  func.func @transform_12(%arg0: i32) -> (i32, i32) {
    %c0_i32 = arith.constant 0 : i32
    %c0_i32_0 = arith.constant 0 : i32
    %c0_i32_1 = arith.constant 0 : i32
    return %c0_i32, %c0_i32_0 : i32, i32
  }
  func.func @transform_13(%arg0: i32) -> (i32, i32) {
    %c0_i32 = arith.constant 0 : i32
    %c0_i32_0 = arith.constant 0 : i32
    %c0_i32_1 = arith.constant 0 : i32
    return %c0_i32, %c0_i32_0 : i32, i32
  }
  func.func @transform_14(%arg0: i32) -> (i32, i32) {
    %c0_i32 = arith.constant 0 : i32
    %c0_i32_0 = arith.constant 0 : i32
    %c0_i32_1 = arith.constant 0 : i32
    return %c0_i32, %c0_i32_0 : i32, i32
  }
  func.func @transform_15(%arg0: i32) -> (i32, i32, i32) {
    %c0_i32 = arith.constant 0 : i32
    %c0_i32_0 = arith.constant 0 : i32
    %c0_i32_1 = arith.constant 0 : i32
    return %arg0, %c0_i32, %c0_i32_0 : i32, i32, i32
  }
}

module attributes {stable_mosaic.version = 11 : i64} {
  func.func @clip_layer_kernel(%arg0: i32, %arg1: memref<1x16x128xf32, #tpu.memory_space<vmem>>, %arg2: memref<1x128xf32, #tpu.memory_space<vmem>>, %arg3: memref<1x128xf32, #tpu.memory_space<vmem>>, %arg4: memref<128x384xbf16, #tpu.memory_space<vmem>>, %arg5: memref<1x384xf32, #tpu.memory_space<vmem>>, %arg6: memref<4x32x128xbf16, #tpu.memory_space<vmem>>, %arg7: memref<1x128xf32, #tpu.memory_space<vmem>>, %arg8: memref<1x128xf32, #tpu.memory_space<vmem>>, %arg9: memref<1x128xf32, #tpu.memory_space<vmem>>, %arg10: memref<128x512xbf16, #tpu.memory_space<vmem>>, %arg11: memref<1x512xf32, #tpu.memory_space<vmem>>, %arg12: memref<512x128xbf16, #tpu.memory_space<vmem>>, %arg13: memref<1x128xf32, #tpu.memory_space<vmem>>, %arg14: memref<1x128xf32, #tpu.memory_space<vmem>>, %arg15: memref<1x128xf32, #tpu.memory_space<vmem>>, %arg16: memref<1x16x128xf32, #tpu.memory_space<vmem>>) attributes {dimension_semantics = [#tpu.dimension_semantics<parallel>], iteration_bounds = array<i64: 2>, scalar_prefetch = 0 : i64, scratch_operands = 0 : i64, tpu.core_type = #tpu.core_type<tc>, window_params = [{transform_indices = @transform_0, window_bounds = array<i64: 1, 16, 128>}, {pipeline_mode = #tpu.pipeline_mode<synchronous>, transform_indices = @transform_1, window_bounds = array<i64: 1, 128>}, {pipeline_mode = #tpu.pipeline_mode<synchronous>, transform_indices = @transform_2, window_bounds = array<i64: 1, 128>}, {pipeline_mode = #tpu.pipeline_mode<synchronous>, transform_indices = @transform_3, window_bounds = array<i64: 128, 384>}, {pipeline_mode = #tpu.pipeline_mode<synchronous>, transform_indices = @transform_4, window_bounds = array<i64: 1, 384>}, {pipeline_mode = #tpu.pipeline_mode<synchronous>, transform_indices = @transform_5, window_bounds = array<i64: 4, 32, 128>}, {pipeline_mode = #tpu.pipeline_mode<synchronous>, transform_indices = @transform_6, window_bounds = array<i64: 1, 128>}, {pipeline_mode = #tpu.pipeline_mode<synchronous>, transform_indices = @transform_7, window_bounds = array<i64: 1, 128>}, {pipeline_mode = #tpu.pipeline_mode<synchronous>, transform_indices = @transform_8, window_bounds = array<i64: 1, 128>}, {pipeline_mode = #tpu.pipeline_mode<synchronous>, transform_indices = @transform_9, window_bounds = array<i64: 128, 512>}, {pipeline_mode = #tpu.pipeline_mode<synchronous>, transform_indices = @transform_10, window_bounds = array<i64: 1, 512>}, {pipeline_mode = #tpu.pipeline_mode<synchronous>, transform_indices = @transform_11, window_bounds = array<i64: 512, 128>}, {pipeline_mode = #tpu.pipeline_mode<synchronous>, transform_indices = @transform_12, window_bounds = array<i64: 1, 128>}, {pipeline_mode = #tpu.pipeline_mode<synchronous>, transform_indices = @transform_13, window_bounds = array<i64: 1, 128>}, {pipeline_mode = #tpu.pipeline_mode<synchronous>, transform_indices = @transform_14, window_bounds = array<i64: 1, 128>}, {transform_indices = @transform_15, window_bounds = array<i64: 1, 16, 128>}]} {
    %c0 = arith.constant 0 : index
    %c0_0 = arith.constant 0 : index
    %c0_1 = arith.constant 0 : index
    %0 = vector.load %arg1[%c0, %c0_0, %c0_1] : memref<1x16x128xf32, #tpu.memory_space<vmem>>, vector<1x16x128xf32>
    %1 = vector.shape_cast %0 : vector<1x16x128xf32> to vector<16x128xf32>
    %c0_2 = arith.constant 0 : index
    %c0_3 = arith.constant 0 : index
    %2 = vector.load %arg2[%c0_2, %c0_3] : memref<1x128xf32, #tpu.memory_space<vmem>>, vector<1x128xf32>
    %3 = vector.shape_cast %2 : vector<1x128xf32> to vector<128xf32>
    %c0_4 = arith.constant 0 : index
    %c0_5 = arith.constant 0 : index
    %4 = vector.load %arg3[%c0_4, %c0_5] : memref<1x128xf32, #tpu.memory_space<vmem>>, vector<1x128xf32>
    %5 = vector.shape_cast %4 : vector<1x128xf32> to vector<128xf32>
    %cst = arith.constant dense<0.000000e+00> : vector<16xf32>
    %6 = vector.multi_reduction <add>, %1, %cst [1] : vector<16x128xf32> to vector<16xf32>
    %7 = vector.shape_cast %6 : vector<16xf32> to vector<16x1xf32>
    %cst_6 = arith.constant 1.280000e+02 : f32
    %8 = vector.broadcast %cst_6 : f32 to vector<16x1xf32>
    %9 = arith.divf %7, %8 : vector<16x1xf32>
    %10 = vector.broadcast %9 : vector<16x1xf32> to vector<16x128xf32>
    %11 = arith.subf %1, %10 : vector<16x128xf32>
    %12 = arith.mulf %11, %11 : vector<16x128xf32>
    %cst_7 = arith.constant dense<0.000000e+00> : vector<16xf32>
    %13 = vector.multi_reduction <add>, %12, %cst_7 [1] : vector<16x128xf32> to vector<16xf32>
    %14 = vector.shape_cast %13 : vector<16xf32> to vector<16x1xf32>
    %cst_8 = arith.constant 1.280000e+02 : f32
    %15 = vector.broadcast %cst_8 : f32 to vector<16x1xf32>
    %16 = arith.divf %14, %15 : vector<16x1xf32>
    %17 = vector.broadcast %9 : vector<16x1xf32> to vector<16x128xf32>
    %18 = arith.subf %1, %17 : vector<16x128xf32>
    %cst_9 = arith.constant 9.99999974E-6 : f32
    %19 = vector.broadcast %cst_9 : f32 to vector<16x1xf32>
    %20 = arith.addf %16, %19 : vector<16x1xf32>
    %21 = math.rsqrt %20 : vector<16x1xf32>
    %22 = vector.broadcast %21 : vector<16x1xf32> to vector<16x128xf32>
    %23 = arith.mulf %18, %22 : vector<16x128xf32>
    %24 = vector.shape_cast %3 : vector<128xf32> to vector<1x128xf32>
    %25 = vector.broadcast %24 : vector<1x128xf32> to vector<16x128xf32>
    %26 = arith.mulf %23, %25 : vector<16x128xf32>
    %27 = vector.shape_cast %5 : vector<128xf32> to vector<1x128xf32>
    %28 = vector.broadcast %27 : vector<1x128xf32> to vector<16x128xf32>
    %29 = arith.addf %26, %28 : vector<16x128xf32>
    %30 = arith.truncf %29 : vector<16x128xf32> to vector<16x128xbf16>
    %c0_10 = arith.constant 0 : index
    %c0_11 = arith.constant 0 : index
    %31 = vector.load %arg4[%c0_10, %c0_11] : memref<128x384xbf16, #tpu.memory_space<vmem>>, vector<128x384xbf16>
    %cst_12 = arith.constant dense<0.000000e+00> : vector<16x384xf32>
    %32 = tpu.matmul %30, %31, %cst_12 {dimension_numbers = #tpu.dot_dimension_numbers<[1], [0], [0], [1], [0, 0, 1, 1], [], []>} : vector<16x128xbf16>, vector<128x384xbf16>, vector<16x384xf32> -> vector<16x384xf32>
    %c0_13 = arith.constant 0 : index
    %c0_14 = arith.constant 0 : index
    %33 = vector.load %arg5[%c0_13, %c0_14] : memref<1x384xf32, #tpu.memory_space<vmem>>, vector<1x384xf32>
    %34 = vector.shape_cast %33 : vector<1x384xf32> to vector<384xf32>
    %35 = vector.shape_cast %34 : vector<384xf32> to vector<1x384xf32>
    %36 = vector.broadcast %35 : vector<1x384xf32> to vector<16x384xf32>
    %37 = arith.addf %32, %36 : vector<16x384xf32>
    %38 = tpu.iota {dimensions = array<i32: 0>} : vector<16x16xi32>
    %39 = tpu.iota {dimensions = array<i32: 1>} : vector<16x16xi32>
    %40 = arith.cmpi sgt, %39, %38 : vector<16x16xi32>
    %cst_15 = arith.constant 0.000000e+00 : f32
    %41 = vector.broadcast %cst_15 : f32 to vector<16x128xf32>
    %42 = vector.extract_strided_slice %37 {offsets = [0, 0], sizes = [16, 32], strides = [1, 1]} : vector<16x384xf32> to vector<16x32xf32>
    %cst_16 = arith.constant 0.176776692 : f32
    %43 = vector.broadcast %cst_16 : f32 to vector<16x32xf32>
    %44 = arith.mulf %42, %43 : vector<16x32xf32>
    %45 = arith.truncf %44 : vector<16x32xf32> to vector<16x32xbf16>
    %46 = vector.extract_strided_slice %37 {offsets = [0, 128], sizes = [16, 32], strides = [1, 1]} : vector<16x384xf32> to vector<16x32xf32>
    %47 = arith.truncf %46 : vector<16x32xf32> to vector<16x32xbf16>
    %48 = vector.extract_strided_slice %37 {offsets = [0, 256], sizes = [16, 32], strides = [1, 1]} : vector<16x384xf32> to vector<16x32xf32>
    %49 = arith.truncf %48 : vector<16x32xf32> to vector<16x32xbf16>
    %cst_17 = arith.constant dense<0.000000e+00> : vector<16x16xf32>
    %50 = tpu.matmul %45, %47, %cst_17 {dimension_numbers = #tpu.dot_dimension_numbers<[1], [1], [0], [0], [0, 0, 1, 0], [], []>} : vector<16x32xbf16>, vector<16x32xbf16>, vector<16x16xf32> -> vector<16x16xf32>
    %cst_18 = arith.constant -1.000000e+30 : f32
    %51 = vector.broadcast %cst_18 : f32 to vector<16x16xf32>
    %52 = arith.select %40, %51, %50 : vector<16x16xi1>, vector<16x16xf32>
    %cst_19 = arith.constant dense<0xFF800000> : vector<16xf32>
    %53 = vector.multi_reduction <maximumf>, %52, %cst_19 [1] : vector<16x16xf32> to vector<16xf32>
    %54 = vector.shape_cast %53 : vector<16xf32> to vector<16x1xf32>
    %55 = vector.broadcast %54 : vector<16x1xf32> to vector<16x16xf32>
    %56 = arith.subf %52, %55 : vector<16x16xf32>
    %57 = math.exp %56 : vector<16x16xf32>
    %cst_20 = arith.constant dense<0.000000e+00> : vector<16xf32>
    %58 = vector.multi_reduction <add>, %57, %cst_20 [1] : vector<16x16xf32> to vector<16xf32>
    %59 = vector.shape_cast %58 : vector<16xf32> to vector<16x1xf32>
    %60 = tpu.reciprocal %59 {approx = true} : vector<16x1xf32> -> vector<16x1xf32>
    %61 = vector.broadcast %60 : vector<16x1xf32> to vector<16x16xf32>
    %62 = arith.mulf %57, %61 : vector<16x16xf32>
    %63 = arith.truncf %62 : vector<16x16xf32> to vector<16x16xbf16>
    %cst_21 = arith.constant dense<0.000000e+00> : vector<16x32xf32>
    %64 = tpu.matmul %63, %49, %cst_21 {dimension_numbers = #tpu.dot_dimension_numbers<[1], [0], [0], [1], [0, 0, 1, 1], [], []>} : vector<16x16xbf16>, vector<16x32xbf16>, vector<16x32xf32> -> vector<16x32xf32>
    %65 = arith.truncf %64 : vector<16x32xf32> to vector<16x32xbf16>
    %c0_22 = arith.constant 0 : index
    %c0_23 = arith.constant 0 : index
    %c0_24 = arith.constant 0 : index
    %66 = vector.load %arg6[%c0_22, %c0_23, %c0_24] : memref<4x32x128xbf16, #tpu.memory_space<vmem>>, vector<1x32x128xbf16>
    %67 = vector.shape_cast %66 : vector<1x32x128xbf16> to vector<32x128xbf16>
    %cst_25 = arith.constant dense<0.000000e+00> : vector<16x128xf32>
    %68 = tpu.matmul %65, %67, %cst_25 {dimension_numbers = #tpu.dot_dimension_numbers<[1], [0], [0], [1], [0, 0, 1, 1], [], []>} : vector<16x32xbf16>, vector<32x128xbf16>, vector<16x128xf32> -> vector<16x128xf32>
    %69 = arith.addf %41, %68 : vector<16x128xf32>
    %70 = vector.extract_strided_slice %37 {offsets = [0, 32], sizes = [16, 32], strides = [1, 1]} : vector<16x384xf32> to vector<16x32xf32>
    %cst_26 = arith.constant 0.176776692 : f32
    %71 = vector.broadcast %cst_26 : f32 to vector<16x32xf32>
    %72 = arith.mulf %70, %71 : vector<16x32xf32>
    %73 = arith.truncf %72 : vector<16x32xf32> to vector<16x32xbf16>
    %74 = vector.extract_strided_slice %37 {offsets = [0, 160], sizes = [16, 32], strides = [1, 1]} : vector<16x384xf32> to vector<16x32xf32>
    %75 = arith.truncf %74 : vector<16x32xf32> to vector<16x32xbf16>
    %76 = vector.extract_strided_slice %37 {offsets = [0, 288], sizes = [16, 32], strides = [1, 1]} : vector<16x384xf32> to vector<16x32xf32>
    %77 = arith.truncf %76 : vector<16x32xf32> to vector<16x32xbf16>
    %cst_27 = arith.constant dense<0.000000e+00> : vector<16x16xf32>
    %78 = tpu.matmul %73, %75, %cst_27 {dimension_numbers = #tpu.dot_dimension_numbers<[1], [1], [0], [0], [0, 0, 1, 0], [], []>} : vector<16x32xbf16>, vector<16x32xbf16>, vector<16x16xf32> -> vector<16x16xf32>
    %cst_28 = arith.constant -1.000000e+30 : f32
    %79 = vector.broadcast %cst_28 : f32 to vector<16x16xf32>
    %80 = arith.select %40, %79, %78 : vector<16x16xi1>, vector<16x16xf32>
    %cst_29 = arith.constant dense<0xFF800000> : vector<16xf32>
    %81 = vector.multi_reduction <maximumf>, %80, %cst_29 [1] : vector<16x16xf32> to vector<16xf32>
    %82 = vector.shape_cast %81 : vector<16xf32> to vector<16x1xf32>
    %83 = vector.broadcast %82 : vector<16x1xf32> to vector<16x16xf32>
    %84 = arith.subf %80, %83 : vector<16x16xf32>
    %85 = math.exp %84 : vector<16x16xf32>
    %cst_30 = arith.constant dense<0.000000e+00> : vector<16xf32>
    %86 = vector.multi_reduction <add>, %85, %cst_30 [1] : vector<16x16xf32> to vector<16xf32>
    %87 = vector.shape_cast %86 : vector<16xf32> to vector<16x1xf32>
    %88 = tpu.reciprocal %87 {approx = true} : vector<16x1xf32> -> vector<16x1xf32>
    %89 = vector.broadcast %88 : vector<16x1xf32> to vector<16x16xf32>
    %90 = arith.mulf %85, %89 : vector<16x16xf32>
    %91 = arith.truncf %90 : vector<16x16xf32> to vector<16x16xbf16>
    %cst_31 = arith.constant dense<0.000000e+00> : vector<16x32xf32>
    %92 = tpu.matmul %91, %77, %cst_31 {dimension_numbers = #tpu.dot_dimension_numbers<[1], [0], [0], [1], [0, 0, 1, 1], [], []>} : vector<16x16xbf16>, vector<16x32xbf16>, vector<16x32xf32> -> vector<16x32xf32>
    %93 = arith.truncf %92 : vector<16x32xf32> to vector<16x32xbf16>
    %c1 = arith.constant 1 : index
    %c0_32 = arith.constant 0 : index
    %c0_33 = arith.constant 0 : index
    %94 = vector.load %arg6[%c1, %c0_32, %c0_33] : memref<4x32x128xbf16, #tpu.memory_space<vmem>>, vector<1x32x128xbf16>
    %95 = vector.shape_cast %94 : vector<1x32x128xbf16> to vector<32x128xbf16>
    %cst_34 = arith.constant dense<0.000000e+00> : vector<16x128xf32>
    %96 = tpu.matmul %93, %95, %cst_34 {dimension_numbers = #tpu.dot_dimension_numbers<[1], [0], [0], [1], [0, 0, 1, 1], [], []>} : vector<16x32xbf16>, vector<32x128xbf16>, vector<16x128xf32> -> vector<16x128xf32>
    %97 = arith.addf %69, %96 : vector<16x128xf32>
    %98 = vector.extract_strided_slice %37 {offsets = [0, 64], sizes = [16, 32], strides = [1, 1]} : vector<16x384xf32> to vector<16x32xf32>
    %cst_35 = arith.constant 0.176776692 : f32
    %99 = vector.broadcast %cst_35 : f32 to vector<16x32xf32>
    %100 = arith.mulf %98, %99 : vector<16x32xf32>
    %101 = arith.truncf %100 : vector<16x32xf32> to vector<16x32xbf16>
    %102 = vector.extract_strided_slice %37 {offsets = [0, 192], sizes = [16, 32], strides = [1, 1]} : vector<16x384xf32> to vector<16x32xf32>
    %103 = arith.truncf %102 : vector<16x32xf32> to vector<16x32xbf16>
    %104 = vector.extract_strided_slice %37 {offsets = [0, 320], sizes = [16, 32], strides = [1, 1]} : vector<16x384xf32> to vector<16x32xf32>
    %105 = arith.truncf %104 : vector<16x32xf32> to vector<16x32xbf16>
    %cst_36 = arith.constant dense<0.000000e+00> : vector<16x16xf32>
    %106 = tpu.matmul %101, %103, %cst_36 {dimension_numbers = #tpu.dot_dimension_numbers<[1], [1], [0], [0], [0, 0, 1, 0], [], []>} : vector<16x32xbf16>, vector<16x32xbf16>, vector<16x16xf32> -> vector<16x16xf32>
    %cst_37 = arith.constant -1.000000e+30 : f32
    %107 = vector.broadcast %cst_37 : f32 to vector<16x16xf32>
    %108 = arith.select %40, %107, %106 : vector<16x16xi1>, vector<16x16xf32>
    %cst_38 = arith.constant dense<0xFF800000> : vector<16xf32>
    %109 = vector.multi_reduction <maximumf>, %108, %cst_38 [1] : vector<16x16xf32> to vector<16xf32>
    %110 = vector.shape_cast %109 : vector<16xf32> to vector<16x1xf32>
    %111 = vector.broadcast %110 : vector<16x1xf32> to vector<16x16xf32>
    %112 = arith.subf %108, %111 : vector<16x16xf32>
    %113 = math.exp %112 : vector<16x16xf32>
    %cst_39 = arith.constant dense<0.000000e+00> : vector<16xf32>
    %114 = vector.multi_reduction <add>, %113, %cst_39 [1] : vector<16x16xf32> to vector<16xf32>
    %115 = vector.shape_cast %114 : vector<16xf32> to vector<16x1xf32>
    %116 = tpu.reciprocal %115 {approx = true} : vector<16x1xf32> -> vector<16x1xf32>
    %117 = vector.broadcast %116 : vector<16x1xf32> to vector<16x16xf32>
    %118 = arith.mulf %113, %117 : vector<16x16xf32>
    %119 = arith.truncf %118 : vector<16x16xf32> to vector<16x16xbf16>
    %cst_40 = arith.constant dense<0.000000e+00> : vector<16x32xf32>
    %120 = tpu.matmul %119, %105, %cst_40 {dimension_numbers = #tpu.dot_dimension_numbers<[1], [0], [0], [1], [0, 0, 1, 1], [], []>} : vector<16x16xbf16>, vector<16x32xbf16>, vector<16x32xf32> -> vector<16x32xf32>
    %121 = arith.truncf %120 : vector<16x32xf32> to vector<16x32xbf16>
    %c2 = arith.constant 2 : index
    %c0_41 = arith.constant 0 : index
    %c0_42 = arith.constant 0 : index
    %122 = vector.load %arg6[%c2, %c0_41, %c0_42] : memref<4x32x128xbf16, #tpu.memory_space<vmem>>, vector<1x32x128xbf16>
    %123 = vector.shape_cast %122 : vector<1x32x128xbf16> to vector<32x128xbf16>
    %cst_43 = arith.constant dense<0.000000e+00> : vector<16x128xf32>
    %124 = tpu.matmul %121, %123, %cst_43 {dimension_numbers = #tpu.dot_dimension_numbers<[1], [0], [0], [1], [0, 0, 1, 1], [], []>} : vector<16x32xbf16>, vector<32x128xbf16>, vector<16x128xf32> -> vector<16x128xf32>
    %125 = arith.addf %97, %124 : vector<16x128xf32>
    %126 = vector.extract_strided_slice %37 {offsets = [0, 96], sizes = [16, 32], strides = [1, 1]} : vector<16x384xf32> to vector<16x32xf32>
    %cst_44 = arith.constant 0.176776692 : f32
    %127 = vector.broadcast %cst_44 : f32 to vector<16x32xf32>
    %128 = arith.mulf %126, %127 : vector<16x32xf32>
    %129 = arith.truncf %128 : vector<16x32xf32> to vector<16x32xbf16>
    %130 = vector.extract_strided_slice %37 {offsets = [0, 224], sizes = [16, 32], strides = [1, 1]} : vector<16x384xf32> to vector<16x32xf32>
    %131 = arith.truncf %130 : vector<16x32xf32> to vector<16x32xbf16>
    %132 = vector.extract_strided_slice %37 {offsets = [0, 352], sizes = [16, 32], strides = [1, 1]} : vector<16x384xf32> to vector<16x32xf32>
    %133 = arith.truncf %132 : vector<16x32xf32> to vector<16x32xbf16>
    %cst_45 = arith.constant dense<0.000000e+00> : vector<16x16xf32>
    %134 = tpu.matmul %129, %131, %cst_45 {dimension_numbers = #tpu.dot_dimension_numbers<[1], [1], [0], [0], [0, 0, 1, 0], [], []>} : vector<16x32xbf16>, vector<16x32xbf16>, vector<16x16xf32> -> vector<16x16xf32>
    %cst_46 = arith.constant -1.000000e+30 : f32
    %135 = vector.broadcast %cst_46 : f32 to vector<16x16xf32>
    %136 = arith.select %40, %135, %134 : vector<16x16xi1>, vector<16x16xf32>
    %cst_47 = arith.constant dense<0xFF800000> : vector<16xf32>
    %137 = vector.multi_reduction <maximumf>, %136, %cst_47 [1] : vector<16x16xf32> to vector<16xf32>
    %138 = vector.shape_cast %137 : vector<16xf32> to vector<16x1xf32>
    %139 = vector.broadcast %138 : vector<16x1xf32> to vector<16x16xf32>
    %140 = arith.subf %136, %139 : vector<16x16xf32>
    %141 = math.exp %140 : vector<16x16xf32>
    %cst_48 = arith.constant dense<0.000000e+00> : vector<16xf32>
    %142 = vector.multi_reduction <add>, %141, %cst_48 [1] : vector<16x16xf32> to vector<16xf32>
    %143 = vector.shape_cast %142 : vector<16xf32> to vector<16x1xf32>
    %144 = tpu.reciprocal %143 {approx = true} : vector<16x1xf32> -> vector<16x1xf32>
    %145 = vector.broadcast %144 : vector<16x1xf32> to vector<16x16xf32>
    %146 = arith.mulf %141, %145 : vector<16x16xf32>
    %147 = arith.truncf %146 : vector<16x16xf32> to vector<16x16xbf16>
    %cst_49 = arith.constant dense<0.000000e+00> : vector<16x32xf32>
    %148 = tpu.matmul %147, %133, %cst_49 {dimension_numbers = #tpu.dot_dimension_numbers<[1], [0], [0], [1], [0, 0, 1, 1], [], []>} : vector<16x16xbf16>, vector<16x32xbf16>, vector<16x32xf32> -> vector<16x32xf32>
    %149 = arith.truncf %148 : vector<16x32xf32> to vector<16x32xbf16>
    %c3 = arith.constant 3 : index
    %c0_50 = arith.constant 0 : index
    %c0_51 = arith.constant 0 : index
    %150 = vector.load %arg6[%c3, %c0_50, %c0_51] : memref<4x32x128xbf16, #tpu.memory_space<vmem>>, vector<1x32x128xbf16>
    %151 = vector.shape_cast %150 : vector<1x32x128xbf16> to vector<32x128xbf16>
    %cst_52 = arith.constant dense<0.000000e+00> : vector<16x128xf32>
    %152 = tpu.matmul %149, %151, %cst_52 {dimension_numbers = #tpu.dot_dimension_numbers<[1], [0], [0], [1], [0, 0, 1, 1], [], []>} : vector<16x32xbf16>, vector<32x128xbf16>, vector<16x128xf32> -> vector<16x128xf32>
    %153 = arith.addf %125, %152 : vector<16x128xf32>
    %154 = arith.addf %1, %153 : vector<16x128xf32>
    %c0_53 = arith.constant 0 : index
    %c0_54 = arith.constant 0 : index
    %155 = vector.load %arg7[%c0_53, %c0_54] : memref<1x128xf32, #tpu.memory_space<vmem>>, vector<1x128xf32>
    %156 = vector.shape_cast %155 : vector<1x128xf32> to vector<128xf32>
    %157 = vector.shape_cast %156 : vector<128xf32> to vector<1x128xf32>
    %158 = vector.broadcast %157 : vector<1x128xf32> to vector<16x128xf32>
    %159 = arith.addf %154, %158 : vector<16x128xf32>
    %c0_55 = arith.constant 0 : index
    %c0_56 = arith.constant 0 : index
    %160 = vector.load %arg8[%c0_55, %c0_56] : memref<1x128xf32, #tpu.memory_space<vmem>>, vector<1x128xf32>
    %161 = vector.shape_cast %160 : vector<1x128xf32> to vector<128xf32>
    %c0_57 = arith.constant 0 : index
    %c0_58 = arith.constant 0 : index
    %162 = vector.load %arg9[%c0_57, %c0_58] : memref<1x128xf32, #tpu.memory_space<vmem>>, vector<1x128xf32>
    %163 = vector.shape_cast %162 : vector<1x128xf32> to vector<128xf32>
    %cst_59 = arith.constant dense<0.000000e+00> : vector<16xf32>
    %164 = vector.multi_reduction <add>, %159, %cst_59 [1] : vector<16x128xf32> to vector<16xf32>
    %165 = vector.shape_cast %164 : vector<16xf32> to vector<16x1xf32>
    %cst_60 = arith.constant 1.280000e+02 : f32
    %166 = vector.broadcast %cst_60 : f32 to vector<16x1xf32>
    %167 = arith.divf %165, %166 : vector<16x1xf32>
    %168 = vector.broadcast %167 : vector<16x1xf32> to vector<16x128xf32>
    %169 = arith.subf %159, %168 : vector<16x128xf32>
    %170 = arith.mulf %169, %169 : vector<16x128xf32>
    %cst_61 = arith.constant dense<0.000000e+00> : vector<16xf32>
    %171 = vector.multi_reduction <add>, %170, %cst_61 [1] : vector<16x128xf32> to vector<16xf32>
    %172 = vector.shape_cast %171 : vector<16xf32> to vector<16x1xf32>
    %cst_62 = arith.constant 1.280000e+02 : f32
    %173 = vector.broadcast %cst_62 : f32 to vector<16x1xf32>
    %174 = arith.divf %172, %173 : vector<16x1xf32>
    %175 = vector.broadcast %167 : vector<16x1xf32> to vector<16x128xf32>
    %176 = arith.subf %159, %175 : vector<16x128xf32>
    %cst_63 = arith.constant 9.99999974E-6 : f32
    %177 = vector.broadcast %cst_63 : f32 to vector<16x1xf32>
    %178 = arith.addf %174, %177 : vector<16x1xf32>
    %179 = math.rsqrt %178 : vector<16x1xf32>
    %180 = vector.broadcast %179 : vector<16x1xf32> to vector<16x128xf32>
    %181 = arith.mulf %176, %180 : vector<16x128xf32>
    %182 = vector.shape_cast %161 : vector<128xf32> to vector<1x128xf32>
    %183 = vector.broadcast %182 : vector<1x128xf32> to vector<16x128xf32>
    %184 = arith.mulf %181, %183 : vector<16x128xf32>
    %185 = vector.shape_cast %163 : vector<128xf32> to vector<1x128xf32>
    %186 = vector.broadcast %185 : vector<1x128xf32> to vector<16x128xf32>
    %187 = arith.addf %184, %186 : vector<16x128xf32>
    %188 = arith.truncf %187 : vector<16x128xf32> to vector<16x128xbf16>
    %c0_64 = arith.constant 0 : index
    %c0_65 = arith.constant 0 : index
    %189 = vector.load %arg10[%c0_64, %c0_65] : memref<128x512xbf16, #tpu.memory_space<vmem>>, vector<128x512xbf16>
    %cst_66 = arith.constant dense<0.000000e+00> : vector<16x512xf32>
    %190 = tpu.matmul %188, %189, %cst_66 {dimension_numbers = #tpu.dot_dimension_numbers<[1], [0], [0], [1], [0, 0, 1, 1], [], []>} : vector<16x128xbf16>, vector<128x512xbf16>, vector<16x512xf32> -> vector<16x512xf32>
    %c0_67 = arith.constant 0 : index
    %c0_68 = arith.constant 0 : index
    %191 = vector.load %arg11[%c0_67, %c0_68] : memref<1x512xf32, #tpu.memory_space<vmem>>, vector<1x512xf32>
    %192 = vector.shape_cast %191 : vector<1x512xf32> to vector<512xf32>
    %193 = vector.shape_cast %192 : vector<512xf32> to vector<1x512xf32>
    %194 = vector.broadcast %193 : vector<1x512xf32> to vector<16x512xf32>
    %195 = arith.addf %190, %194 : vector<16x512xf32>
    %cst_69 = arith.constant -1.702000e+00 : f32
    %196 = vector.broadcast %cst_69 : f32 to vector<16x512xf32>
    %197 = arith.mulf %196, %195 : vector<16x512xf32>
    %198 = math.exp %197 : vector<16x512xf32>
    %cst_70 = arith.constant 1.000000e+00 : f32
    %199 = vector.broadcast %cst_70 : f32 to vector<16x512xf32>
    %200 = arith.addf %199, %198 : vector<16x512xf32>
    %201 = tpu.reciprocal %200 {approx = true} : vector<16x512xf32> -> vector<16x512xf32>
    %202 = arith.mulf %195, %201 : vector<16x512xf32>
    %203 = arith.truncf %202 : vector<16x512xf32> to vector<16x512xbf16>
    %c0_71 = arith.constant 0 : index
    %c0_72 = arith.constant 0 : index
    %204 = vector.load %arg12[%c0_71, %c0_72] : memref<512x128xbf16, #tpu.memory_space<vmem>>, vector<512x128xbf16>
    %cst_73 = arith.constant dense<0.000000e+00> : vector<16x128xf32>
    %205 = tpu.matmul %203, %204, %cst_73 {dimension_numbers = #tpu.dot_dimension_numbers<[1], [0], [0], [1], [0, 0, 1, 1], [], []>} : vector<16x512xbf16>, vector<512x128xbf16>, vector<16x128xf32> -> vector<16x128xf32>
    %c0_74 = arith.constant 0 : index
    %c0_75 = arith.constant 0 : index
    %206 = vector.load %arg13[%c0_74, %c0_75] : memref<1x128xf32, #tpu.memory_space<vmem>>, vector<1x128xf32>
    %207 = vector.shape_cast %206 : vector<1x128xf32> to vector<128xf32>
    %208 = vector.shape_cast %207 : vector<128xf32> to vector<1x128xf32>
    %209 = vector.broadcast %208 : vector<1x128xf32> to vector<16x128xf32>
    %210 = arith.addf %205, %209 : vector<16x128xf32>
    %211 = arith.addf %159, %210 : vector<16x128xf32>
    %c0_76 = arith.constant 0 : index
    %c0_77 = arith.constant 0 : index
    %212 = vector.load %arg14[%c0_76, %c0_77] : memref<1x128xf32, #tpu.memory_space<vmem>>, vector<1x128xf32>
    %213 = vector.shape_cast %212 : vector<1x128xf32> to vector<128xf32>
    %c0_78 = arith.constant 0 : index
    %c0_79 = arith.constant 0 : index
    %214 = vector.load %arg15[%c0_78, %c0_79] : memref<1x128xf32, #tpu.memory_space<vmem>>, vector<1x128xf32>
    %215 = vector.shape_cast %214 : vector<1x128xf32> to vector<128xf32>
    %cst_80 = arith.constant dense<0.000000e+00> : vector<16xf32>
    %216 = vector.multi_reduction <add>, %211, %cst_80 [1] : vector<16x128xf32> to vector<16xf32>
    %217 = vector.shape_cast %216 : vector<16xf32> to vector<16x1xf32>
    %cst_81 = arith.constant 1.280000e+02 : f32
    %218 = vector.broadcast %cst_81 : f32 to vector<16x1xf32>
    %219 = arith.divf %217, %218 : vector<16x1xf32>
    %220 = vector.broadcast %219 : vector<16x1xf32> to vector<16x128xf32>
    %221 = arith.subf %211, %220 : vector<16x128xf32>
    %222 = arith.mulf %221, %221 : vector<16x128xf32>
    %cst_82 = arith.constant dense<0.000000e+00> : vector<16xf32>
    %223 = vector.multi_reduction <add>, %222, %cst_82 [1] : vector<16x128xf32> to vector<16xf32>
    %224 = vector.shape_cast %223 : vector<16xf32> to vector<16x1xf32>
    %cst_83 = arith.constant 1.280000e+02 : f32
    %225 = vector.broadcast %cst_83 : f32 to vector<16x1xf32>
    %226 = arith.divf %224, %225 : vector<16x1xf32>
    %227 = vector.broadcast %219 : vector<16x1xf32> to vector<16x128xf32>
    %228 = arith.subf %211, %227 : vector<16x128xf32>
    %cst_84 = arith.constant 9.99999974E-6 : f32
    %229 = vector.broadcast %cst_84 : f32 to vector<16x1xf32>
    %230 = arith.addf %226, %229 : vector<16x1xf32>
    %231 = math.rsqrt %230 : vector<16x1xf32>
    %232 = vector.broadcast %231 : vector<16x1xf32> to vector<16x128xf32>
    %233 = arith.mulf %228, %232 : vector<16x128xf32>
    %234 = vector.shape_cast %213 : vector<128xf32> to vector<1x128xf32>
    %235 = vector.broadcast %234 : vector<1x128xf32> to vector<16x128xf32>
    %236 = arith.mulf %233, %235 : vector<16x128xf32>
    %237 = vector.shape_cast %215 : vector<128xf32> to vector<1x128xf32>
    %238 = vector.broadcast %237 : vector<1x128xf32> to vector<16x128xf32>
    %239 = arith.addf %236, %238 : vector<16x128xf32>
    %c0_85 = arith.constant 0 : index
    %c0_86 = arith.constant 0 : index
    %c0_87 = arith.constant 0 : index
    %240 = vector.load %arg16[%c0_85, %c0_86, %c0_87] : memref<1x16x128xf32, #tpu.memory_space<vmem>>, vector<1x16x128xf32>
    %241 = vector.shape_cast %240 : vector<1x16x128xf32> to vector<16x128xf32>
    %242 = vector.shape_cast %239 : vector<16x128xf32> to vector<1x16x128xf32>
    tpu.vector_store %arg16[%c0_85, %c0_86, %c0_87], %242 {strides = array<i32>} : memref<1x16x128xf32, #tpu.memory_space<vmem>>, vector<1x16x128xf32>,
    return
  }
  func.func @transform_0(%arg0: i32) -> (i32, i32, i32) {
    %c0_i32 = arith.constant 0 : i32
    %c0_i32_0 = arith.constant 0 : i32
    %c0_i32_1 = arith.constant 0 : i32
    return %arg0, %c0_i32, %c0_i32_0 : i32, i32, i32
  }
  func.func @transform_1(%arg0: i32) -> (i32, i32) {
    %c0_i32 = arith.constant 0 : i32
    %c0_i32_0 = arith.constant 0 : i32
    %c0_i32_1 = arith.constant 0 : i32
    return %c0_i32, %c0_i32_0 : i32, i32
  }
  func.func @transform_2(%arg0: i32) -> (i32, i32) {
    %c0_i32 = arith.constant 0 : i32
    %c0_i32_0 = arith.constant 0 : i32
    %c0_i32_1 = arith.constant 0 : i32
    return %c0_i32, %c0_i32_0 : i32, i32
  }
  func.func @transform_3(%arg0: i32) -> (i32, i32) {
    %c0_i32 = arith.constant 0 : i32
    %c0_i32_0 = arith.constant 0 : i32
    %c0_i32_1 = arith.constant 0 : i32
    return %c0_i32, %c0_i32_0 : i32, i32
  }
  func.func @transform_4(%arg0: i32) -> (i32, i32) {
    %c0_i32 = arith.constant 0 : i32
    %c0_i32_0 = arith.constant 0 : i32
    %c0_i32_1 = arith.constant 0 : i32
    return %c0_i32, %c0_i32_0 : i32, i32
  }
  func.func @transform_5(%arg0: i32) -> (i32, i32, i32) {
    %c0_i32 = arith.constant 0 : i32
    %c0_i32_0 = arith.constant 0 : i32
    %c0_i32_1 = arith.constant 0 : i32
    %c0_i32_2 = arith.constant 0 : i32
    return %c0_i32, %c0_i32_0, %c0_i32_1 : i32, i32, i32
  }
  func.func @transform_6(%arg0: i32) -> (i32, i32) {
    %c0_i32 = arith.constant 0 : i32
    %c0_i32_0 = arith.constant 0 : i32
    %c0_i32_1 = arith.constant 0 : i32
    return %c0_i32, %c0_i32_0 : i32, i32
  }
  func.func @transform_7(%arg0: i32) -> (i32, i32) {
    %c0_i32 = arith.constant 0 : i32
    %c0_i32_0 = arith.constant 0 : i32
    %c0_i32_1 = arith.constant 0 : i32
    return %c0_i32, %c0_i32_0 : i32, i32
  }
  func.func @transform_8(%arg0: i32) -> (i32, i32) {
    %c0_i32 = arith.constant 0 : i32
    %c0_i32_0 = arith.constant 0 : i32
    %c0_i32_1 = arith.constant 0 : i32
    return %c0_i32, %c0_i32_0 : i32, i32
  }
  func.func @transform_9(%arg0: i32) -> (i32, i32) {
    %c0_i32 = arith.constant 0 : i32
    %c0_i32_0 = arith.constant 0 : i32
    %c0_i32_1 = arith.constant 0 : i32
    return %c0_i32, %c0_i32_0 : i32, i32
  }
  func.func @transform_10(%arg0: i32) -> (i32, i32) {
    %c0_i32 = arith.constant 0 : i32
    %c0_i32_0 = arith.constant 0 : i32
    %c0_i32_1 = arith.constant 0 : i32
    return %c0_i32, %c0_i32_0 : i32, i32
  }
  func.func @transform_11(%arg0: i32) -> (i32, i32) {
    %c0_i32 = arith.constant 0 : i32
    %c0_i32_0 = arith.constant 0 : i32
    %c0_i32_1 = arith.constant 0 : i32
    return %c0_i32, %c0_i32_0 : i32, i32
  }
  func.func @transform_12(%arg0: i32) -> (i32, i32) {
    %c0_i32 = arith.constant 0 : i32
    %c0_i32_0 = arith.constant 0 : i32
    %c0_i32_1 = arith.constant 0 : i32
    return %c0_i32, %c0_i32_0 : i32, i32
  }
  func.func @transform_13(%arg0: i32) -> (i32, i32) {
    %c0_i32 = arith.constant 0 : i32
    %c0_i32_0 = arith.constant 0 : i32
    %c0_i32_1 = arith.constant 0 : i32
    return %c0_i32, %c0_i32_0 : i32, i32
  }
  func.func @transform_14(%arg0: i32) -> (i32, i32) {
    %c0_i32 = arith.constant 0 : i32
    %c0_i32_0 = arith.constant 0 : i32
    %c0_i32_1 = arith.constant 0 : i32
    return %c0_i32, %c0_i32_0 : i32, i32
  }
  func.func @transform_15(%arg0: i32) -> (i32, i32, i32) {
    %c0_i32 = arith.constant 0 : i32
    %c0_i32_0 = arith.constant 0 : i32
    %c0_i32_1 = arith.constant 0 : i32
    return %arg0, %c0_i32, %c0_i32_0 : i32, i32, i32
  }
}

</mosaic_0001>

<llo_original>
// kernel: clip_forward.2
$region0: #{clip_forward.2}
  #allocation0 [shape = 'u32[]', space=smem, size = 0x4, offset = 0x4, fixed_abs, tag = 'smem constant byte address 0x4 - core index']
  #allocation1 [shape = 'u32[72,128]{1,0:T(1,128)}', space=vmem, size = 0x9000, scoped, tag = 'internal scratch']
  %s0 = inlined_call_operand.vmem [shape: f32[2,16,128], index: 0, kind: input, shape index: {}, may-alias: {0,15}]
  %s1 = inlined_call_operand.vmem [shape: f32[1,128], index: 1, kind: input, shape index: {}]
  %s2 = inlined_call_operand.vmem [shape: f32[1,128], index: 2, kind: input, shape index: {}]
  %s3 = inlined_call_operand.hbm [shape: bf16[128,384], index: 3, kind: input, shape index: {}]
  %s4 = inlined_call_operand.vmem [shape: f32[1,384], index: 4, kind: input, shape index: {}]
  %s5 = inlined_call_operand.vmem [shape: bf16[4,32,128], index: 5, kind: input, shape index: {}]
  %s6 = inlined_call_operand.vmem [shape: f32[1,128], index: 6, kind: input, shape index: {}]
  %s7 = inlined_call_operand.vmem [shape: f32[1,128], index: 7, kind: input, shape index: {}]
  %s8 = inlined_call_operand.vmem [shape: f32[1,128], index: 8, kind: input, shape index: {}]
  %s9 = inlined_call_operand.vmem [shape: bf16[128,512], index: 9, kind: input, shape index: {}]
  %s10 = inlined_call_operand.vmem [shape: f32[1,512], index: 10, kind: input, shape index: {}]
  %s11 = inlined_call_operand.hbm [shape: bf16[512,128], index: 11, kind: input, shape index: {}]
  %s12 = inlined_call_operand.vmem [shape: f32[1,128], index: 12, kind: input, shape index: {}]
  %s13 = inlined_call_operand.vmem [shape: f32[1,128], index: 13, kind: input, shape index: {}]
  %s14 = inlined_call_operand.vmem [shape: f32[1,128], index: 14, kind: input, shape index: {}]
  %s15 = inlined_call_operand.vmem [shape: f32[2,16,128], index: 15, kind: output, shape index: {}, may-alias: {0,15}]
  %s16 = sld [smem:[#allocation0]]
  $region101: #{clip_forward.2} parent=0
    _
  %s18 = ssub.s32 1, %s16
  %s19 = scalar_select 0, %s18, %s16
  $region1: #{clip_forward.2} parent=0
    #allocation2 [shape = 'u8[98304]{0}', space=vmem, size = 0x18000, scoped, tag = 'input window, operand 3, single buffered']
    #allocation3 [shape = 's32[2]{0}', space=sflag, size = 0x8, scoped, tag = 'scoped memory for clip_forward.2']
    #allocation4 [shape = 'u8[131072]{0}', space=vmem, size = 0x20000, scoped, tag = 'input window, operand 11, single buffered']
    #allocation5 [shape = 's32[1]{0}', space=sflag, size = 0x4, scoped, tag = 'scoped memory for clip_forward.2']
    %20 = vsyncpa [#allocation3], 0
    %21 = vsyncpa [#allocation5], 0
    loop: start=0, step=1, limit=4
    $region2: #{clip_forward.2} parent=1 // loop_pre_header
      _
    $region3: #{clip_forward.2} parent=1 // loop_header
      %s23 = sphi 0, %s27
      %p24 = scmp.ge.s32.totalorder %s23, 4
      %s33 = sphi 0, %s35
      %s36 = sphi 0, %s33
      %s37 = sphi 0, %s36
      %s53 = sphi 0, %s37
      %s57 = sphi 0, %s57
      %s59 = sphi 0, %s57
      %s60 = sphi 0, %s59
      %s74 = sphi 0, %s60
      %s78 = sphi 0, %s78
      %s80 = sphi 0, %s78
      %s81 = sphi 0, %s80
      %s95 = sphi 0, %s81
      %s99 = sphi 0, %s99
      %s101 = sphi 0, %s99
      %s102 = sphi 0, %s101
      %s116 = sphi 0, %s102
      %s120 = sphi 0, %s120
      %s122 = sphi 0, %s120
      %s123 = sphi 0, %s122
      %s137 = sphi 0, %s123
      %s141 = sphi 0, %s141
      %s143 = sphi 0, %s141
      %s144 = sphi 0, %s143
      %s158 = sphi 0, %s144
      %s162 = sphi 0, %s162
      %s164 = sphi 0, %s162
      %s165 = sphi 0, %s164
      %s179 = sphi 0, %s165
      %s183 = sphi 0, %s183
      %s185 = sphi 0, %s183
      %s186 = sphi 0, %s185
      %s200 = sphi 0, %s186
      %s204 = sphi 0, %s204
      %s206 = sphi 0, %s204
      %s207 = sphi 0, %s206
      %s221 = sphi 0, %s207
      %s225 = sphi 0, %s225
      %s227 = sphi 0, %s225
      %s228 = sphi 0, %s227
      %s242 = sphi 0, %s228
      %s246 = sphi 0, %s246
      %s248 = sphi 0, %s246
      %s249 = sphi 0, %s248
      %s263 = sphi 0, %s249
      %s267 = sphi 0, %s267
      %s269 = sphi 0, %s267
      %s270 = sphi 0, %s269
      %s284 = sphi 0, %s270
      %s288 = sphi 0, %s288
      %s290 = sphi 0, %s288
      %s291 = sphi 0, %s290
      %s305 = sphi 0, %s291
      %s309 = sphi 0, %s309
      %s311 = sphi 0, %s309
      %s312 = sphi 0, %s311
      %s326 = sphi 0, %s312
      %s330 = sphi 0, %s330
      %s332 = sphi 0, %s330
      %s333 = sphi 0, %s332
      %s347 = sphi 0, %s333
      %s353 = sphi 0, %s355
      %s356 = sphi 0, %s353
      %s357 = sphi 0, %s356
      %s373 = sphi 0, %s357
    $region4: #{clip_forward.2} parent=1 // loop_header_branch
      %26 = sbr.rel (%p24) target = $region8
    $region5: #{clip_forward.2} parent=1 // loop_body
      %s28 = ssub.s32 %s23, 1
      %s29 = ssub.s32 %s23, 2
      %s30 = sadd.s32 %s23, 1
      %s31 = ssub.s32 %s23, %s30
      %p32 = scmp.eq.s32.totalorder %s31, 0
      %s34 = sadd.s32 %s33, 1
      %s35 = scalar_select %p32, %s33, %s34
      %p38 = pneg %p32
      %p39 = scmp.eq.s32.totalorder %s23, 1
      %p40 = por %p38, %p39
      %p41 = scmp.ne.s32.totalorder %s33, %s36
      %p42 = scmp.eq.s32.totalorder %s23, 0
      %p43 = por %p41, %p42
      %p44 = scmp.ne.s32.totalorder %s33, %s36
      %p45 = scmp.eq.s32.totalorder %s28, 1
      %p46 = por %p44, %p45
      %p47 = scmp.ne.s32.totalorder %s36, %s37
      %p48 = scmp.eq.s32.totalorder %s28, 0
      %p49 = por %p47, %p48
      %p50 = scmp.ne.s32.totalorder %s36, %s37
      %p51 = scmp.eq.s32.totalorder %s29, 1
      %p52 = por %p50, %p51
      %p54 = scmp.ne.s32.totalorder %s37, %s53
      %p55 = scmp.eq.s32.totalorder %s29, 0
      %p56 = por %p54, %p55
      %s58 = sadd.s32 %s57, 1
      %p61 = scmp.eq.s32.totalorder %s23, 1
      %p62 = scmp.ne.s32.totalorder %s57, %s59
      %p63 = scmp.eq.s32.totalorder %s23, 0
      %p64 = por %p62, %p63
      %p65 = scmp.ne.s32.totalorder %s57, %s59
      %p66 = scmp.eq.s32.totalorder %s28, 1
      %p67 = por %p65, %p66
      %p68 = scmp.ne.s32.totalorder %s59, %s60
      %p69 = scmp.eq.s32.totalorder %s28, 0
      %p70 = por %p68, %p69
      %p71 = scmp.ne.s32.totalorder %s59, %s60
      %p72 = scmp.eq.s32.totalorder %s29, 1
      %p73 = por %p71, %p72
      %p75 = scmp.ne.s32.totalorder %s60, %s74
      %p76 = scmp.eq.s32.totalorder %s29, 0
      %p77 = por %p75, %p76
      %s79 = sadd.s32 %s78, 1
      %p82 = scmp.eq.s32.totalorder %s23, 1
      %p83 = scmp.ne.s32.totalorder %s78, %s80
      %p84 = scmp.eq.s32.totalorder %s23, 0
      %p85 = por %p83, %p84
      %p86 = scmp.ne.s32.totalorder %s78, %s80
      %p87 = scmp.eq.s32.totalorder %s28, 1
      %p88 = por %p86, %p87
      %p89 = scmp.ne.s32.totalorder %s80, %s81
      %p90 = scmp.eq.s32.totalorder %s28, 0
      %p91 = por %p89, %p90
      %p92 = scmp.ne.s32.totalorder %s80, %s81
      %p93 = scmp.eq.s32.totalorder %s29, 1
      %p94 = por %p92, %p93
      %p96 = scmp.ne.s32.totalorder %s81, %s95
      %p97 = scmp.eq.s32.totalorder %s29, 0
      %p98 = por %p96, %p97
      %s100 = sadd.s32 %s99, 1
      %p103 = scmp.eq.s32.totalorder %s23, 1
      %p104 = scmp.ne.s32.totalorder %s99, %s101
      %p105 = scmp.eq.s32.totalorder %s23, 0
      %p106 = por %p104, %p105
      %p107 = scmp.ne.s32.totalorder %s99, %s101
      %p108 = scmp.eq.s32.totalorder %s28, 1
      %p109 = por %p107, %p108
      %p110 = scmp.ne.s32.totalorder %s101, %s102
      %p111 = scmp.eq.s32.totalorder %s28, 0
      %p112 = por %p110, %p111
      %p113 = scmp.ne.s32.totalorder %s101, %s102
      %p114 = scmp.eq.s32.totalorder %s29, 1
      %p115 = por %p113, %p114
      %p117 = scmp.ne.s32.totalorder %s102, %s116
      %p118 = scmp.eq.s32.totalorder %s29, 0
      %p119 = por %p117, %p118
      %s121 = sadd.s32 %s120, 1
      %p124 = scmp.eq.s32.totalorder %s23, 1
      %p125 = scmp.ne.s32.totalorder %s120, %s122
      %p126 = scmp.eq.s32.totalorder %s23, 0
      %p127 = por %p125, %p126
      %p128 = scmp.ne.s32.totalorder %s120, %s122
      %p129 = scmp.eq.s32.totalorder %s28, 1
      %p130 = por %p128, %p129
      %p131 = scmp.ne.s32.totalorder %s122, %s123
      %p132 = scmp.eq.s32.totalorder %s28, 0
      %p133 = por %p131, %p132
      %p134 = scmp.ne.s32.totalorder %s122, %s123
      %p135 = scmp.eq.s32.totalorder %s29, 1
      %p136 = por %p134, %p135
      %p138 = scmp.ne.s32.totalorder %s123, %s137
      %p139 = scmp.eq.s32.totalorder %s29, 0
      %p140 = por %p138, %p139
      %s142 = sadd.s32 %s141, 1
      %p145 = scmp.eq.s32.totalorder %s23, 1
      %p146 = scmp.ne.s32.totalorder %s141, %s143
      %p147 = scmp.eq.s32.totalorder %s23, 0
      %p148 = por %p146, %p147
      %p149 = scmp.ne.s32.totalorder %s141, %s143
      %p150 = scmp.eq.s32.totalorder %s28, 1
      %p151 = por %p149, %p150
      %p152 = scmp.ne.s32.totalorder %s143, %s144
      %p153 = scmp.eq.s32.totalorder %s28, 0
      %p154 = por %p152, %p153
      %p155 = scmp.ne.s32.totalorder %s143, %s144
      %p156 = scmp.eq.s32.totalorder %s29, 1
      %p157 = por %p155, %p156
      %p159 = scmp.ne.s32.totalorder %s144, %s158
      %p160 = scmp.eq.s32.totalorder %s29, 0
      %p161 = por %p159, %p160
      %s163 = sadd.s32 %s162, 1
      %p166 = scmp.eq.s32.totalorder %s23, 1
      %p167 = scmp.ne.s32.totalorder %s162, %s164
      %p168 = scmp.eq.s32.totalorder %s23, 0
      %p169 = por %p167, %p168
      %p170 = scmp.ne.s32.totalorder %s162, %s164
      %p171 = scmp.eq.s32.totalorder %s28, 1
      %p172 = por %p170, %p171
      %p173 = scmp.ne.s32.totalorder %s164, %s165
      %p174 = scmp.eq.s32.totalorder %s28, 0
      %p175 = por %p173, %p174
      %p176 = scmp.ne.s32.totalorder %s164, %s165
      %p177 = scmp.eq.s32.totalorder %s29, 1
      %p178 = por %p176, %p177
      %p180 = scmp.ne.s32.totalorder %s165, %s179
      %p181 = scmp.eq.s32.totalorder %s29, 0
      %p182 = por %p180, %p181
      %s184 = sadd.s32 %s183, 1
      %p187 = scmp.eq.s32.totalorder %s23, 1
      %p188 = scmp.ne.s32.totalorder %s183, %s185
      %p189 = scmp.eq.s32.totalorder %s23, 0
      %p190 = por %p188, %p189
      %p191 = scmp.ne.s32.totalorder %s183, %s185
      %p192 = scmp.eq.s32.totalorder %s28, 1
      %p193 = por %p191, %p192
      %p194 = scmp.ne.s32.totalorder %s185, %s186
      %p195 = scmp.eq.s32.totalorder %s28, 0
      %p196 = por %p194, %p195
      %p197 = scmp.ne.s32.totalorder %s185, %s186
      %p198 = scmp.eq.s32.totalorder %s29, 1
      %p199 = por %p197, %p198
      %p201 = scmp.ne.s32.totalorder %s186, %s200
      %p202 = scmp.eq.s32.totalorder %s29, 0
      %p203 = por %p201, %p202
      %s205 = sadd.s32 %s204, 1
      %p208 = scmp.eq.s32.totalorder %s23, 1
      %p209 = scmp.ne.s32.totalorder %s204, %s206
      %p210 = scmp.eq.s32.totalorder %s23, 0
      %p211 = por %p209, %p210
      %p212 = scmp.ne.s32.totalorder %s204, %s206
      %p213 = scmp.eq.s32.totalorder %s28, 1
      %p214 = por %p212, %p213
      %p215 = scmp.ne.s32.totalorder %s206, %s207
      %p216 = scmp.eq.s32.totalorder %s28, 0
      %p217 = por %p215, %p216
      %p218 = scmp.ne.s32.totalorder %s206, %s207
      %p219 = scmp.eq.s32.totalorder %s29, 1
      %p220 = por %p218, %p219
      %p222 = scmp.ne.s32.totalorder %s207, %s221
      %p223 = scmp.eq.s32.totalorder %s29, 0
      %p224 = por %p222, %p223
      %s226 = sadd.s32 %s225, 1
      %p229 = scmp.eq.s32.totalorder %s23, 1
      %p230 = scmp.ne.s32.totalorder %s225, %s227
      %p231 = scmp.eq.s32.totalorder %s23, 0
      %p232 = por %p230, %p231
      %p233 = scmp.ne.s32.totalorder %s225, %s227
      %p234 = scmp.eq.s32.totalorder %s28, 1
      %p235 = por %p233, %p234
      %p236 = scmp.ne.s32.totalorder %s227, %s228
      %p237 = scmp.eq.s32.totalorder %s28, 0
      %p238 = por %p236, %p237
      %p239 = scmp.ne.s32.totalorder %s227, %s228
      %p240 = scmp.eq.s32.totalorder %s29, 1
      %p241 = por %p239, %p240
      %p243 = scmp.ne.s32.totalorder %s228, %s242
      %p244 = scmp.eq.s32.totalorder %s29, 0
      %p245 = por %p243, %p244
      %s247 = sadd.s32 %s246, 1
      %p250 = scmp.eq.s32.totalorder %s23, 1
      %p251 = scmp.ne.s32.totalorder %s246, %s248
      %p252 = scmp.eq.s32.totalorder %s23, 0
      %p253 = por %p251, %p252
      %p254 = scmp.ne.s32.totalorder %s246, %s248
      %p255 = scmp.eq.s32.totalorder %s28, 1
      %p256 = por %p254, %p255
      %p257 = scmp.ne.s32.totalorder %s248, %s249
      %p258 = scmp.eq.s32.totalorder %s28, 0
      %p259 = por %p257, %p258
      %p260 = scmp.ne.s32.totalorder %s248, %s249
      %p261 = scmp.eq.s32.totalorder %s29, 1
      %p262 = por %p260, %p261
      %p264 = scmp.ne.s32.totalorder %s249, %s263
      %p265 = scmp.eq.s32.totalorder %s29, 0
      %p266 = por %p264, %p265
      %s268 = sadd.s32 %s267, 1
      %p271 = scmp.eq.s32.totalorder %s23, 1
      %p272 = scmp.ne.s32.totalorder %s267, %s269
      %p273 = scmp.eq.s32.totalorder %s23, 0
      %p274 = por %p272, %p273
      %p275 = scmp.ne.s32.totalorder %s267, %s269
      %p276 = scmp.eq.s32.totalorder %s28, 1
      %p277 = por %p275, %p276
      %p278 = scmp.ne.s32.totalorder %s269, %s270
      %p279 = scmp.eq.s32.totalorder %s28, 0
      %p280 = por %p278, %p279
      %p281 = scmp.ne.s32.totalorder %s269, %s270
      %p282 = scmp.eq.s32.totalorder %s29, 1
      %p283 = por %p281, %p282
      %p285 = scmp.ne.s32.totalorder %s270, %s284
      %p286 = scmp.eq.s32.totalorder %s29, 0
      %p287 = por %p285, %p286
      %s289 = sadd.s32 %s288, 1
      %p292 = scmp.eq.s32.totalorder %s23, 1
      %p293 = scmp.ne.s32.totalorder %s288, %s290
      %p294 = scmp.eq.s32.totalorder %s23, 0
      %p295 = por %p293, %p294
      %p296 = scmp.ne.s32.totalorder %s288, %s290
      %p297 = scmp.eq.s32.totalorder %s28, 1
      %p298 = por %p296, %p297
      %p299 = scmp.ne.s32.totalorder %s290, %s291
      %p300 = scmp.eq.s32.totalorder %s28, 0
      %p301 = por %p299, %p300
      %p302 = scmp.ne.s32.totalorder %s290, %s291
      %p303 = scmp.eq.s32.totalorder %s29, 1
      %p304 = por %p302, %p303
      %p306 = scmp.ne.s32.totalorder %s291, %s305
      %p307 = scmp.eq.s32.totalorder %s29, 0
      %p308 = por %p306, %p307
      %s310 = sadd.s32 %s309, 1
      %p313 = scmp.eq.s32.totalorder %s23, 1
      %p314 = scmp.ne.s32.totalorder %s309, %s311
      %p315 = scmp.eq.s32.totalorder %s23, 0
      %p316 = por %p314, %p315
      %p317 = scmp.ne.s32.totalorder %s309, %s311
      %p318 = scmp.eq.s32.totalorder %s28, 1
      %p319 = por %p317, %p318
      %p320 = scmp.ne.s32.totalorder %s311, %s312
      %p321 = scmp.eq.s32.totalorder %s28, 0
      %p322 = por %p320, %p321
      %p323 = scmp.ne.s32.totalorder %s311, %s312
      %p324 = scmp.eq.s32.totalorder %s29, 1
      %p325 = por %p323, %p324
      %p327 = scmp.ne.s32.totalorder %s312, %s326
      %p328 = scmp.eq.s32.totalorder %s29, 0
      %p329 = por %p327, %p328
      %s331 = sadd.s32 %s330, 1
      %p334 = scmp.eq.s32.totalorder %s23, 1
      %p335 = scmp.ne.s32.totalorder %s330, %s332
      %p336 = scmp.eq.s32.totalorder %s23, 0
      %p337 = por %p335, %p336
      %p338 = scmp.ne.s32.totalorder %s330, %s332
      %p339 = scmp.eq.s32.totalorder %s28, 1
      %p340 = por %p338, %p339
      %p341 = scmp.ne.s32.totalorder %s332, %s333
      %p342 = scmp.eq.s32.totalorder %s28, 0
      %p343 = por %p341, %p342
      %p344 = scmp.ne.s32.totalorder %s332, %s333
      %p345 = scmp.eq.s32.totalorder %s29, 1
      %p346 = por %p344, %p345
      %p348 = scmp.ne.s32.totalorder %s333, %s347
      %p349 = scmp.eq.s32.totalorder %s29, 0
      %p350 = por %p348, %p349
      %s351 = ssub.s32 %s23, %s30
      %p352 = scmp.eq.s32.totalorder %s351, 0
      %s354 = sadd.s32 %s353, 1
      %s355 = scalar_select %p352, %s353, %s354
      %p358 = pneg %p352
      %p359 = scmp.eq.s32.totalorder %s23, 1
      %p360 = por %p358, %p359
      %p361 = scmp.ne.s32.totalorder %s353, %s356
      %p362 = scmp.eq.s32.totalorder %s23, 0
      %p363 = por %p361, %p362
      %p364 = scmp.ne.s32.totalorder %s353, %s356
      %p365 = scmp.eq.s32.totalorder %s28, 1
      %p366 = por %p364, %p365
      %p367 = scmp.ne.s32.totalorder %s356, %s357
      %p368 = scmp.eq.s32.totalorder %s28, 0
      %p369 = por %p367, %p368
      %p370 = scmp.ne.s32.totalorder %s356, %s357
      %p371 = scmp.eq.s32.totalorder %s29, 1
      %p372 = por %p370, %p371
      %p374 = scmp.ne.s32.totalorder %s357, %s373
      %p375 = scmp.eq.s32.totalorder %s29, 0
      %p376 = por %p374, %p375
      %p377 = scmp.le.s32.totalorder 1, %s23
      %p378 = scmp.lt.s32.totalorder %s23, 3
      %p379 = pnand %p377, %p378
      %p380 = pneg %p379
      // Predicated region
      $region9: #{clip_forward.2} parent=5 // pred_check
        _
      $region10: #{clip_forward.2} parent=5 // pred_check_branch
        %382 = sbr.rel (%p379) target = $region12
      $region11: #{clip_forward.2} parent=5 // pred_region
        %s383 = ssub.s32 %s23, 1
        // Predicated region
        $region13: #{clip_forward.2} parent=11 // pred_check
          %p384 = pneg %p70
        $region14: #{clip_forward.2} parent=11 // pred_check_branch
          %386 = sbr.rel (%p384) target = $region16
        $region15: #{clip_forward.2} parent=11 // pred_region
          _
        $region16: #{clip_forward.2} parent=11 // pred_fallthru
          _
        // Predicated region
        $region17: #{clip_forward.2} parent=11 // pred_check
          %p387 = pneg %p91
        $region18: #{clip_forward.2} parent=11 // pred_check_branch
          %389 = sbr.rel (%p387) target = $region20
        $region19: #{clip_forward.2} parent=11 // pred_region
          _
        $region20: #{clip_forward.2} parent=11 // pred_fallthru
          _
        // Predicated region
        $region21: #{clip_forward.2} parent=11 // pred_check
          %p390 = pneg %p112
        $region22: #{clip_forward.2} parent=11 // pred_check_branch
          %392 = sbr.rel (%p390) target = $region24
        $region23: #{clip_forward.2} parent=11 // pred_region
          %394 = vsyncadd [#allocation3], 0
          %s395 = sshll.u32 %s3, 4
          %s396 = int_to_ptr.hbm [resolvable:$true] %s395
          %s397 = sshll.u32 [#allocation2], 4
          %s398 = int_to_ptr.vmem [resolvable:$true] %s397
          %403 = dma.hbm_to_vmem [thread:$0]  %s396, 3072, %s398, [#allocation3], 192, 192, 12
        $region24: #{clip_forward.2} parent=11 // pred_fallthru
          _
        // Predicated region
        $region25: #{clip_forward.2} parent=11 // pred_check
          %p404 = pneg %p133
        $region26: #{clip_forward.2} parent=11 // pred_check_branch
          %406 = sbr.rel (%p404) target = $region28
        $region27: #{clip_forward.2} parent=11 // pred_region
          _
        $region28: #{clip_forward.2} parent=11 // pred_fallthru
          _
        // Predicated region
        $region29: #{clip_forward.2} parent=11 // pred_check
          %p407 = pneg %p154
        $region30: #{clip_forward.2} parent=11 // pred_check_branch
          %409 = sbr.rel (%p407) target = $region32
        $region31: #{clip_forward.2} parent=11 // pred_region
          _
        $region32: #{clip_forward.2} parent=11 // pred_fallthru
          _
        // Predicated region
        $region33: #{clip_forward.2} parent=11 // pred_check
          %p410 = pneg %p175
        $region34: #{clip_forward.2} parent=11 // pred_check_branch
          %412 = sbr.rel (%p410) target = $region36
        $region35: #{clip_forward.2} parent=11 // pred_region
          _
        $region36: #{clip_forward.2} parent=11 // pred_fallthru
          _
        // Predicated region
        $region37: #{clip_forward.2} parent=11 // pred_check
          %p413 = pneg %p196
        $region38: #{clip_forward.2} parent=11 // pred_check_branch
          %415 = sbr.rel (%p413) target = $region40
        $region39: #{clip_forward.2} parent=11 // pred_region
          _
        $region40: #{clip_forward.2} parent=11 // pred_fallthru
          _
        // Predicated region
        $region41: #{clip_forward.2} parent=11 // pred_check
          %p416 = pneg %p217
        $region42: #{clip_forward.2} parent=11 // pred_check_branch
          %418 = sbr.rel (%p416) target = $region44
        $region43: #{clip_forward.2} parent=11 // pred_region
          _
        $region44: #{clip_forward.2} parent=11 // pred_fallthru
          _
        // Predicated region
        $region45: #{clip_forward.2} parent=11 // pred_check
          %p419 = pneg %p238
        $region46: #{clip_forward.2} parent=11 // pred_check_branch
          %421 = sbr.rel (%p419) target = $region48
        $region47: #{clip_forward.2} parent=11 // pred_region
          _
        $region48: #{clip_forward.2} parent=11 // pred_fallthru
          _
        // Predicated region
        $region49: #{clip_forward.2} parent=11 // pred_check
          %p422 = pneg %p259
        $region50: #{clip_forward.2} parent=11 // pred_check_branch
          %424 = sbr.rel (%p422) target = $region52
        $region51: #{clip_forward.2} parent=11 // pred_region
          _
        $region52: #{clip_forward.2} parent=11 // pred_fallthru
          _
        // Predicated region
        $region53: #{clip_forward.2} parent=11 // pred_check
          %p425 = pneg %p280
        $region54: #{clip_forward.2} parent=11 // pred_check_branch
          %427 = sbr.rel (%p425) target = $region56
        $region55: #{clip_forward.2} parent=11 // pred_region
          %429 = vsyncadd [#allocation5], 0
          %s430 = sshll.u32 %s11, 4
          %s431 = int_to_ptr.hbm [resolvable:$true] %s430
          %s432 = sshll.u32 [#allocation4], 4
          %s433 = int_to_ptr.vmem [resolvable:$true] %s432
          %438 = dma.hbm_to_vmem [thread:$0]  %s431, 4096, %s433, [#allocation5], 64, 64, 4
        $region56: #{clip_forward.2} parent=11 // pred_fallthru
          _
        // Predicated region
        $region57: #{clip_forward.2} parent=11 // pred_check
          %p439 = pneg %p301
        $region58: #{clip_forward.2} parent=11 // pred_check_branch
          %441 = sbr.rel (%p439) target = $region60
        $region59: #{clip_forward.2} parent=11 // pred_region
          _
        $region60: #{clip_forward.2} parent=11 // pred_fallthru
          _
        // Predicated region
        $region61: #{clip_forward.2} parent=11 // pred_check
          %p442 = pneg %p322
        $region62: #{clip_forward.2} parent=11 // pred_check_branch
          %444 = sbr.rel (%p442) target = $region64
        $region63: #{clip_forward.2} parent=11 // pred_region
          _
        $region64: #{clip_forward.2} parent=11 // pred_fallthru
          _
        // Predicated region
        $region65: #{clip_forward.2} parent=11 // pred_check
          %p445 = pneg %p343
        $region66: #{clip_forward.2} parent=11 // pred_check_branch
          %447 = sbr.rel (%p445) target = $region68
        $region67: #{clip_forward.2} parent=11 // pred_region
          _
        $region68: #{clip_forward.2} parent=11 // pred_fallthru
          _
      $region12: #{clip_forward.2} parent=5 // pred_fallthru
        _
      %p448 = scmp.lt.s32.totalorder %s23, 2
      // Predicated region
      $region69: #{clip_forward.2} parent=5 // pred_check
        %p449 = pneg %p448
      $region70: #{clip_forward.2} parent=5 // pred_check_branch
        %451 = sbr.rel (%p449) target = $region72
      $region71: #{clip_forward.2} parent=5 // pred_region
        // Predicated region
        $region73: #{clip_forward.2} parent=71 // pred_check
          %p452 = pneg %p43
        $region74: #{clip_forward.2} parent=71 // pred_check_branch
          %454 = sbr.rel (%p452) target = $region76
        $region75: #{clip_forward.2} parent=71 // pred_region
          %p455 = scmp.lt.s32.totalorder %s23, 1
          %s456 = scalar_select %p455, %s23, 1
          %s457 = smul.addr %s456, 2
          %s458 = smul.addr %s457, 8
          %s459 = scalar_lea.vmem %s0, %s458
        $region76: #{clip_forward.2} parent=71 // pred_fallthru
          _
      $region72: #{clip_forward.2} parent=5 // pred_fallthru
        _
      %p460 = scmp.le.s32.totalorder 1, %s23
      %p461 = scmp.lt.s32.totalorder %s23, 3
      %p462 = pnand %p460, %p461
      %p463 = pneg %p462
      // Predicated region
      $region77: #{clip_forward.2} parent=5 // pred_check
        _
      $region78: #{clip_forward.2} parent=5 // pred_check_branch
        %465 = sbr.rel (%p462) target = $region80
      $region79: #{clip_forward.2} parent=5 // pred_region
        %s466 = ssub.s32 %s23, 1
        // Predicated region
        $region81: #{clip_forward.2} parent=79 // pred_check
          %p467 = pneg %p112
        $region82: #{clip_forward.2} parent=79 // pred_check_branch
          %469 = sbr.rel (%p467) target = $region84
        $region83: #{clip_forward.2} parent=79 // pred_region
          %471 = dma.done [#allocation3], 3072
        $region84: #{clip_forward.2} parent=79 // pred_fallthru
          _
        // Predicated region
        $region85: #{clip_forward.2} parent=79 // pred_check
          %p472 = pneg %p280
        $region86: #{clip_forward.2} parent=79 // pred_check_branch
          %474 = sbr.rel (%p472) target = $region88
        $region87: #{clip_forward.2} parent=79 // pred_region
          %476 = dma.done [#allocation5], 4096
        $region88: #{clip_forward.2} parent=79 // pred_fallthru
          _
        %p477 = scmp.lt.s32.totalorder %s28, 1
        %s478 = scalar_select %p477, %s28, 1
        %s479 = smul.addr %s478, 2
        %s480 = smul.addr %s479, 8
        %s481 = scalar_lea.vmem %s0, %s480
        %p482 = pneg %p49
        %p483 = pneg %p46
        %p484 = pneg %p70
        %p485 = pneg %p67
        %p486 = pneg %p91
        %p487 = pneg %p88
        %p488 = pneg %p112
        %p489 = pneg %p109
        %p490 = pneg %p133
        %p491 = pneg %p130
        %p492 = pneg %p154
        %p493 = pneg %p151
        %p494 = pneg %p175
        %p495 = pneg %p172
        %p496 = pneg %p196
        %p497 = pneg %p193
        %p498 = pneg %p217
        %p499 = pneg %p214
        %p500 = pneg %p238
        %p501 = pneg %p235
        %p502 = pneg %p259
        %p503 = pneg %p256
        %p504 = pneg %p280
        %p505 = pneg %p277
        %p506 = pneg %p301
        %p507 = pneg %p298
        %p508 = pneg %p322
        %p509 = pneg %p319
        %p510 = pneg %p343
        %p511 = pneg %p340
        %p512 = pneg %p369
        %p513 = pneg %p366
        %p514 = scmp.lt.s32.totalorder %s28, 1
        %s515 = scalar_select %p514, %s28, 1
        %s516 = smul.addr %s515, 2
        %s517 = smul.addr %s516, 8
        %s518 = scalar_lea.vmem %s15, %s517
        %p519 = scmp.lt.s32.totalorder %s28, 1
        %s520 = scalar_select %p519, %s28, 1
        %s521 = smul.addr %s520, 2
        %s522 = smul.addr %s521, 8
        %s523 = scalar_lea.vmem %s0, %s522
        %p524 = scmp.lt.s32.totalorder %s28, 1
        %s525 = scalar_select %p524, %s28, 1
        %s526 = smul.addr %s525, 2
        %s527 = smul.addr %s526, 8
        %s528 = scalar_lea.vmem %s15, %s527
        %v530 = vld [vmem:[%s523] sm:$0xff]
        %v531 = vld [vmem:[%s523 + $0x8] sm:$0xff]
        %v532 = vld [vmem:[%s1] sm:$0x1]
        %v533 = vld [vmem:[%s2] sm:$0x1]
        %534 = vadd.xlane.f32.xlu0 %v530
        %v535 = vpop.xlane.xlu0 %534
        %536 = vadd.xlane.f32.xlu0 %v531
        %v537 = vpop.xlane.xlu0 %536
        %v538 = vrcp.pop 128.0
        %v539 = vmul.f32 128.0, %v538
        %v540 = vsub.f32 1.0, %v539
        %v541 = vmul.f32 %v538, %v540
        %v542 = vadd.f32 %v538, %v541
        %vm543 = vweird.f32 %v538
        %v544 = vsel %vm543, %v538, %v542
        %v545 = vmul.f32 %v535, %v544
        %v546 = vmul.f32 %v537, %v544
        %v547 = vsub.f32 %v530, %v545
        %v548 = vsub.f32 %v531, %v546
        %v549 = vmul.f32 %v547, %v547
        %v550 = vmul.f32 %v548, %v548
        %551 = vadd.xlane.f32.xlu0 %v549
        %v552 = vpop.xlane.xlu0 %551
        %553 = vadd.xlane.f32.xlu0 %v550
        %v554 = vpop.xlane.xlu0 %553
        %v555 = vmul.f32 %v552, %v544
        %v556 = vmul.f32 %v554, %v544
        %v557 = vadd.f32 %v555, 1e-05
        %v558 = vadd.f32 %v556, 1e-05
        %v559 = vrsqrt.pop %v557
        %v560 = vmul.f32 %v559, %v557
        %v561 = vmul.f32 %v560, %v559
        %v562 = vmul.f32 0.5, %v561
        %v563 = vsub.f32 1.5, %v562
        %v564 = vmul.f32 %v559, %v563
        %vm565 = vweird.f32 %v557
        %vm566 = vweird.f32 %v559
        %vm567 = vmor %vm565, %vm566
        %v568 = vsel %vm567, %v559, %v564
        %v569 = vrsqrt.pop %v558
        %v570 = vmul.f32 %v569, %v558
        %v571 = vmul.f32 %v570, %v569
        %v572 = vmul.f32 0.5, %v571
        %v573 = vsub.f32 1.5, %v572
        %v574 = vmul.f32 %v569, %v573
        %vm575 = vweird.f32 %v558
        %vm576 = vweird.f32 %v569
        %vm577 = vmor %vm575, %vm576
        %v578 = vsel %vm577, %v569, %v574
        %v579 = vmul.f32 %v547, %v568
        %v580 = vmul.f32 %v548, %v578
        %v582 = vperm.slane %v532, 0
        %v584 = vmul.f32 %v579, %v582
        %v585 = vmul.f32 %v580, %v582
        %v587 = vperm.slane %v533, 0
        %v589 = vadd.f32 %v584, %v587
        %v590 = vadd.f32 %v585, %v587
        %v591 = vpack.c.bf16 %v590, %v589
        %v592 = vld [vmem:[#allocation2] sm:$0xff]
        %v593 = vld [vmem:[#allocation2 + $0x8] sm:$0xf]
        %v594 = vld [vmem:[#allocation2 + $0xc] sm:$0xff]
        %v595 = vld [vmem:[#allocation2 + $0x14] sm:$0xf]
        %v596 = vld [vmem:[#allocation2 + $0x18] sm:$0xff]
        %v597 = vld [vmem:[#allocation2 + $0x20] sm:$0xf]
        %v598 = vld [vmem:[#allocation2 + $0x24] sm:$0xff]
        %v599 = vld [vmem:[#allocation2 + $0x2c] sm:$0xf]
        %v600 = vld [vmem:[#allocation2 + $0x30] sm:$0xff]
        %v601 = vld [vmem:[#allocation2 + $0x38] sm:$0xf]
        %v602 = vld [vmem:[#allocation2 + $0x3c] sm:$0xff]
        %v603 = vld [vmem:[#allocation2 + $0x44] sm:$0xf]
        %v604 = vld [vmem:[#allocation2 + $0x48] sm:$0xff]
        %v605 = vld [vmem:[#allocation2 + $0x50] sm:$0xf]
        %v606 = vld [vmem:[#allocation2 + $0x54] sm:$0xff]
        %v607 = vld [vmem:[#allocation2 + $0x5c] sm:$0xf]
        %v608 = vld [vmem:[#allocation2 + $0x60] sm:$0xff]
        %v609 = vld [vmem:[#allocation2 + $0x68] sm:$0xf]
        %v610 = vld [vmem:[#allocation2 + $0x6c] sm:$0xff]
        %v611 = vld [vmem:[#allocation2 + $0x74] sm:$0xf]
        %v612 = vld [vmem:[#allocation2 + $0x78] sm:$0xff]
        %v613 = vld [vmem:[#allocation2 + $0x80] sm:$0xf]
        %v614 = vld [vmem:[#allocation2 + $0x84] sm:$0xff]
        %v615 = vld [vmem:[#allocation2 + $0x8c] sm:$0xf]
        %v616 = vld [vmem:[#allocation2 + $0x90] sm:$0xff]
        %v617 = vld [vmem:[#allocation2 + $0x98] sm:$0xf]
        %v618 = vld [vmem:[#allocation2 + $0x9c] sm:$0xff]
        %v619 = vld [vmem:[#allocation2 + $0xa4] sm:$0xf]
        %v620 = vld [vmem:[#allocation2 + $0xa8] sm:$0xff]
        %v621 = vld [vmem:[#allocation2 + $0xb0] sm:$0xf]
        %v622 = vld [vmem:[#allocation2 + $0xb4] sm:$0xff]
        %v623 = vld [vmem:[#allocation2 + $0xbc] sm:$0xf]
        %v624 = vld [vmem:[%s4] sm:$0x7]
        %v626 = vperm.slane %v624, 0
        %v627 = vperm.slane %v624, 1
        %v628 = vperm.slane %v624, 2
        %v664 = vunpack.c.l.b16 %v592
        %v665 = vunpack.c.h.b16 %v592
        %v666 = vunpack.c.l.b16 %v593
        %v667 = vunpack.c.l.b16 %v594
        %v668 = vunpack.c.h.b16 %v594
        %v669 = vunpack.c.l.b16 %v595
        %v670 = vunpack.c.l.b16 %v596
        %v671 = vunpack.c.h.b16 %v596
        %v672 = vunpack.c.l.b16 %v597
        %v673 = vunpack.c.l.b16 %v598
        %v674 = vunpack.c.h.b16 %v598
        %v675 = vunpack.c.l.b16 %v599
        %v676 = vunpack.c.l.b16 %v600
        %v677 = vunpack.c.h.b16 %v600
        %v678 = vunpack.c.l.b16 %v601
        %v679 = vunpack.c.l.b16 %v602
        %v680 = vunpack.c.h.b16 %v602
        %v681 = vunpack.c.l.b16 %v603
        %v682 = vunpack.c.l.b16 %v604
        %v683 = vunpack.c.h.b16 %v604
        %v684 = vunpack.c.l.b16 %v605
        %v685 = vunpack.c.l.b16 %v606
        %v686 = vunpack.c.h.b16 %v606
        %v687 = vunpack.c.l.b16 %v607
        %v688 = vunpack.c.l.b16 %v608
        %v689 = vunpack.c.h.b16 %v608
        %v690 = vunpack.c.l.b16 %v609
        %v691 = vunpack.c.l.b16 %v610
        %v692 = vunpack.c.h.b16 %v610
        %v693 = vunpack.c.l.b16 %v611
        %v694 = vunpack.c.l.b16 %v612
        %v695 = vunpack.c.h.b16 %v612
        %v696 = vunpack.c.l.b16 %v613
        %v697 = vunpack.c.l.b16 %v614
        %v698 = vunpack.c.h.b16 %v614
        %v699 = vunpack.c.l.b16 %v615
        %v700 = vunpack.c.l.b16 %v616
        %v701 = vunpack.c.h.b16 %v616
        %v702 = vunpack.c.l.b16 %v617
        %v703 = vunpack.c.l.b16 %v618
        %v704 = vunpack.c.h.b16 %v618
        %v705 = vunpack.c.l.b16 %v619
        %v706 = vunpack.c.l.b16 %v620
        %v707 = vunpack.c.h.b16 %v620
        %v708 = vunpack.c.l.b16 %v621
        %v709 = vunpack.c.l.b16 %v622
        %v710 = vunpack.c.h.b16 %v622
        %v711 = vunpack.c.l.b16 %v623
        %v712 = vpack.c.b16 %v667, %v664
        %v713 = vpack.c.b16 %v668, %v665
        %v714 = vpack.c.b16 %v669, %v666
        %v715 = vpack.c.b16 %v673, %v670
        %v716 = vpack.c.b16 %v674, %v671
        %v717 = vpack.c.b16 %v675, %v672
        %v718 = vpack.c.b16 %v679, %v676
        %v719 = vpack.c.b16 %v680, %v677
        %v720 = vpack.c.b16 %v681, %v678
        %v721 = vpack.c.b16 %v685, %v682
        %v722 = vpack.c.b16 %v686, %v683
        %v723 = vpack.c.b16 %v687, %v684
        %v724 = vpack.c.b16 %v691, %v688
        %v725 = vpack.c.b16 %v692, %v689
        %v726 = vpack.c.b16 %v693, %v690
        %v727 = vpack.c.b16 %v697, %v694
        %v728 = vpack.c.b16 %v698, %v695
        %v729 = vpack.c.b16 %v699, %v696
        %v730 = vpack.c.b16 %v703, %v700
        %v731 = vpack.c.b16 %v704, %v701
        %v732 = vpack.c.b16 %v705, %v702
        %v733 = vpack.c.b16 %v709, %v706
        %v734 = vpack.c.b16 %v710, %v707
        %v735 = vpack.c.b16 %v711, %v708
        %760 = vmatpush.bf16.msra.mxu0 %v733
        %761 = vmatpush.bf16.msra.mxu0 %v730
        %762 = vmatpush.bf16.msra.mxu0 %v727
        %763 = vmatpush.bf16.msra.mxu0 %v724
        %764 = vmatpush.bf16.msra.mxu0 %v721
        %765 = vmatpush.bf16.msra.mxu0 %v718
        %766 = vmatpush.bf16.msra.mxu0 %v715
        %767 = vmatpush.bf16.msra.mxu0 %v712
        %768 = vmatmul.bf16.gmra.mxu0 %v591
        %v769 = vpop.f32.mrf.mxu0
        %v770 = vadd.f32 %v626, %v769
        %v771 = vpop.f32.mrf.mxu0
        %v772 = vadd.f32 %v626, %v771
        %773 = vdwg.mxu0
        %774 = vmatpush.bf16.msra.mxu0 %v734
        %775 = vmatpush.bf16.msra.mxu0 %v731
        %776 = vmatpush.bf16.msra.mxu0 %v728
        %777 = vmatpush.bf16.msra.mxu0 %v725
        %778 = vmatpush.bf16.msra.mxu0 %v722
        %779 = vmatpush.bf16.msra.mxu0 %v719
        %780 = vmatpush.bf16.msra.mxu0 %v716
        %781 = vmatpush.bf16.msra.mxu0 %v713
        %782 = vmatmul.bf16.gmra.mxu0 %v591
        %v783 = vpop.f32.mrf.mxu0
        %v784 = vadd.f32 %v627, %v783
        %v785 = vpop.f32.mrf.mxu0
        %v786 = vadd.f32 %v627, %v785
        %787 = vdwg.mxu0
        %788 = vmatpush.bf16.msra.mxu0 %v735
        %789 = vmatpush.bf16.msra.mxu0 %v732
        %790 = vmatpush.bf16.msra.mxu0 %v729
        %791 = vmatpush.bf16.msra.mxu0 %v726
        %792 = vmatpush.bf16.msra.mxu0 %v723
        %793 = vmatpush.bf16.msra.mxu0 %v720
        %794 = vmatpush.bf16.msra.mxu0 %v717
        %795 = vmatpush.bf16.msra.mxu0 %v714
        %796 = vmatmul.bf16.gmra.mxu0 %v591
        %v797 = vpop.f32.mrf.mxu0
        %v798 = vadd.f32 %v628, %v797
        %v799 = vpop.f32.mrf.mxu0
        %v800 = vadd.f32 %v628, %v799
        %801 = vdwg.mxu0
        %v802 = vlaneseq
        %v803 = vshrl.u32 %v802, 7
        %v804 = vadd.s32 %v803, 8
        %v805 = vlaneseq
        %v806 = vand.u32 %v805, 127
        %vm807 = vcmp.gt.s32.totalorder %v806, %v803
        %vm808 = vcmp.gt.s32.totalorder %v806, %v804
        %v809 = vmul.f32 %v770, 0.17677669
        %v810 = vmul.f32 %v772, 0.17677669
        %v811 = vpack.c.bf16 %v810, %v809
        %v812 = vpack.c.bf16 %v786, %v784
        %v813 = vpack.c.bf16 %v800, %v798
        %vm814 = vcmask 261120
        %v816 = vsel %vm814, %v811, 0
        %v819 = vsel %vm814, %v812, 0
        %821 = vmatpush.bf16.xpose.msra.mxu0 0
        %822 = vmatpush.bf16.xpose.msra.mxu0 0
        %823 = vmatpush.bf16.xpose.msra.mxu0 0
        %824 = vmatpush.bf16.xpose.msra.mxu0 0
        %825 = vmatpush.bf16.xpose.msra.mxu0 0
        %826 = vmatpush.bf16.xpose.msra.mxu0 0
        %827 = vmatpush.bf16.xpose.msra.mxu0 0
        %828 = vmatpush.bf16.xpose.msra.mxu0 %v819
        %829 = vmatmul.bf16.gmra.mxu0 %v816
        %v830 = vpop.f32.mrf.mxu0
        %v831 = vadd.f32 0.0, %v830
        %v832 = vpop.f32.mrf.mxu0
        %v833 = vadd.f32 0.0, %v832
        %834 = vdwg.mxu0
        %v835 = vsel %vm807, -1e+30, %v831
        %v836 = vsel %vm808, -1e+30, %v833
        %vm837 = vcmask 130048
        %v838 = vsel %vm837, %v835, -inf
        %839 = vmax.xlane.f32.xlu0 %v838
        %v840 = vpop.xlane.xlu0 %839
        %v841 = vsel %vm837, %v836, -inf
        %842 = vmax.xlane.f32.xlu0 %v841
        %v843 = vpop.xlane.xlu0 %842
        %v844 = vsub.f32 %v835, %v840
        %v845 = vsub.f32 %v836, %v843
        %v846 = vmul.f32 %v844, 1.442695
        %v847 = vpow.pop %v846
        %v848 = vmul.f32 %v845, 1.442695
        %v849 = vpow.pop %v848
        %v850 = vsel %vm837, %v847, 0.0
        %851 = vadd.xlane.f32.xlu0 %v850
        %v852 = vpop.xlane.xlu0 %851
        %v853 = vsel %vm837, %v849, 0.0
        %854 = vadd.xlane.f32.xlu0 %v853
        %v855 = vpop.xlane.xlu0 %854
        %v856 = vrcp.pop %v852
        %v857 = vrcp.pop %v855
        %v858 = vmul.f32 %v847, %v856
        %v859 = vmul.f32 %v849, %v857
        %v860 = vpack.c.bf16 %v859, %v858
        %v862 = vsel %vm837, %v860, 0
        %864 = vmatpush.bf16.msra.mxu0 0
        %865 = vmatpush.bf16.msra.mxu0 0
        %866 = vmatpush.bf16.msra.mxu0 0
        %867 = vmatpush.bf16.msra.mxu0 0
        %868 = vmatpush.bf16.msra.mxu0 0
        %869 = vmatpush.bf16.msra.mxu0 0
        %870 = vmatpush.bf16.msra.mxu0 0
        %871 = vmatpush.bf16.msra.mxu0 %v813
        %872 = vmatmul.bf16.gmra.mxu0 %v862
        %v873 = vpop.f32.mrf.mxu0
        %v874 = vadd.f32 0.0, %v873
        %v875 = vpop.f32.mrf.mxu0
        %v876 = vadd.f32 0.0, %v875
        %877 = vdwg.mxu0
        %v878 = vpack.c.bf16 %v876, %v874
        %v879 = vld [vmem:[%s5] sm:$0xf]
        %v880 = vld [vmem:[%s5 + $0x4] sm:$0xf]
        %v881 = vld [vmem:[%s5 + $0x8] sm:$0xf]
        %v882 = vld [vmem:[%s5 + $0xc] sm:$0xf]
        %884 = vrot.lane.b32.xlu0 %v811, 96
        %v885 = vpop.permute.xlu0 %884
        %887 = vrot.lane.b32.xlu0 %v812, 96
        %v888 = vpop.permute.xlu0 %887
        %v890 = vsel %vm814, %v885, 0
        %v893 = vsel %vm814, %v888, 0
        %895 = vmatpush.bf16.xpose.msra.mxu0 0
        %896 = vmatpush.bf16.xpose.msra.mxu0 0
        %897 = vmatpush.bf16.xpose.msra.mxu0 0
        %898 = vmatpush.bf16.xpose.msra.mxu0 0
        %899 = vmatpush.bf16.xpose.msra.mxu0 0
        %900 = vmatpush.bf16.xpose.msra.mxu0 0
        %901 = vmatpush.bf16.xpose.msra.mxu0 0
        %902 = vmatpush.bf16.xpose.msra.mxu0 %v893
        %903 = vmatmul.bf16.gmra.mxu0 %v890
        %v904 = vpop.f32.mrf.mxu0
        %v905 = vadd.f32 0.0, %v904
        %v906 = vpop.f32.mrf.mxu0
        %v907 = vadd.f32 0.0, %v906
        %908 = vdwg.mxu0
        %v909 = vsel %vm807, -1e+30, %v905
        %v910 = vsel %vm808, -1e+30, %v907
        %v911 = vsel %vm837, %v909, -inf
        %912 = vmax.xlane.f32.xlu0 %v911
        %v913 = vpop.xlane.xlu0 %912
        %v914 = vsel %vm837, %v910, -inf
        %915 = vmax.xlane.f32.xlu0 %v914
        %v916 = vpop.xlane.xlu0 %915
        %v917 = vsub.f32 %v909, %v913
        %v918 = vsub.f32 %v910, %v916
        %v919 = vmul.f32 %v917, 1.442695
        %v920 = vpow.pop %v919
        %v921 = vmul.f32 %v918, 1.442695
        %v922 = vpow.pop %v921
        %v923 = vsel %vm837, %v920, 0.0
        %924 = vadd.xlane.f32.xlu0 %v923
        %v925 = vpop.xlane.xlu0 %924
        %v926 = vsel %vm837, %v922, 0.0
        %927 = vadd.xlane.f32.xlu0 %v926
        %v928 = vpop.xlane.xlu0 %927
        %v929 = vrcp.pop %v925
        %v930 = vrcp.pop %v928
        %v931 = vmul.f32 %v920, %v929
        %v932 = vmul.f32 %v922, %v930
        %v933 = vpack.c.bf16 %v932, %v931
        %935 = vrot.lane.b32.xlu0 %v813, 96
        %v936 = vpop.permute.xlu0 %935
        %v939 = vsel %vm837, %v933, 0
        %941 = vmatpush.bf16.msra.mxu0 0
        %942 = vmatpush.bf16.msra.mxu0 0
        %943 = vmatpush.bf16.msra.mxu0 0
        %944 = vmatpush.bf16.msra.mxu0 0
        %945 = vmatpush.bf16.msra.mxu0 0
        %946 = vmatpush.bf16.msra.mxu0 0
        %947 = vmatpush.bf16.msra.mxu0 0
        %948 = vmatpush.bf16.msra.mxu0 %v936
        %949 = vmatmul.bf16.gmra.mxu0 %v939
        %v950 = vpop.f32.mrf.mxu0
        %v951 = vadd.f32 0.0, %v950
        %v952 = vpop.f32.mrf.mxu0
        %v953 = vadd.f32 0.0, %v952
        %954 = vdwg.mxu0
        %v955 = vpack.c.bf16 %v953, %v951
        %s956 = scalar_lea.vmem %s5, 16
        %v957 = vld [vmem:[%s956] sm:$0xf]
        %v958 = vld [vmem:[%s956 + $0x4] sm:$0xf]
        %v959 = vld [vmem:[%s956 + $0x8] sm:$0xf]
        %v960 = vld [vmem:[%s956 + $0xc] sm:$0xf]
        %v965 = vunpack.c.l.b16 %v957
        %v966 = vunpack.c.l.b16 %v958
        %v967 = vunpack.c.l.b16 %v959
        %v968 = vunpack.c.l.b16 %v960
        %v969 = vpack.c.b16 %v966, %v965
        %v970 = vpack.c.b16 %v968, %v967
        %v974 = vsel %vm814, %v955, 0
        %976 = vmatpush.bf16.msra.mxu0 0
        %977 = vmatpush.bf16.msra.mxu0 0
        %978 = vmatpush.bf16.msra.mxu0 0
        %979 = vmatpush.bf16.msra.mxu0 0
        %980 = vmatpush.bf16.msra.mxu0 0
        %981 = vmatpush.bf16.msra.mxu0 0
        %982 = vmatpush.bf16.msra.mxu0 %v970
        %983 = vmatpush.bf16.msra.mxu0 %v969
        %984 = vmatmul.bf16.gmra.mxu0 %v974
        %v985 = vpop.f32.mrf.mxu0
        %v986 = vadd.f32 0.0, %v985
        %v987 = vpop.f32.mrf.mxu0
        %v988 = vadd.f32 0.0, %v987
        %989 = vdwg.mxu0
        %v994 = vunpack.c.l.b16 %v879
        %v995 = vunpack.c.l.b16 %v880
        %v996 = vunpack.c.l.b16 %v881
        %v997 = vunpack.c.l.b16 %v882
        %v998 = vpack.c.b16 %v995, %v994
        %v999 = vpack.c.b16 %v997, %v996
        %v1003 = vsel %vm814, %v878, 0
        %1005 = vmatpush.bf16.msra.mxu0 0
        %1006 = vmatpush.bf16.msra.mxu0 0
        %1007 = vmatpush.bf16.msra.mxu0 0
        %1008 = vmatpush.bf16.msra.mxu0 0
        %1009 = vmatpush.bf16.msra.mxu0 0
        %1010 = vmatpush.bf16.msra.mxu0 0
        %1011 = vmatpush.bf16.msra.mxu0 %v999
        %1012 = vmatpush.bf16.msra.mxu0 %v998
        %1013 = vmatmul.bf16.gmra.mxu0 %v1003
        %v1014 = vpop.f32.mrf.mxu0
        %v1015 = vadd.f32 %v986, %v1014
        %v1016 = vpop.f32.mrf.mxu0
        %v1017 = vadd.f32 %v988, %v1016
        %1018 = vdwg.mxu0
        %1019 = vrot.lane.b32.xlu0 %v811, 64
        %v1020 = vpop.permute.xlu0 %1019
        %1021 = vrot.lane.b32.xlu0 %v812, 64
        %v1022 = vpop.permute.xlu0 %1021
        %v1024 = vsel %vm814, %v1020, 0
        %v1027 = vsel %vm814, %v1022, 0
        %1029 = vmatpush.bf16.xpose.msra.mxu0 0
        %1030 = vmatpush.bf16.xpose.msra.mxu0 0
        %1031 = vmatpush.bf16.xpose.msra.mxu0 0
        %1032 = vmatpush.bf16.xpose.msra.mxu0 0
        %1033 = vmatpush.bf16.xpose.msra.mxu0 0
        %1034 = vmatpush.bf16.xpose.msra.mxu0 0
        %1035 = vmatpush.bf16.xpose.msra.mxu0 0
        %1036 = vmatpush.bf16.xpose.msra.mxu0 %v1027
        %1037 = vmatmul.bf16.gmra.mxu0 %v1024
        %v1038 = vpop.f32.mrf.mxu0
        %v1039 = vadd.f32 0.0, %v1038
        %v1040 = vpop.f32.mrf.mxu0
        %v1041 = vadd.f32 0.0, %v1040
        %1042 = vdwg.mxu0
        %v1043 = vsel %vm807, -1e+30, %v1039
        %v1044 = vsel %vm808, -1e+30, %v1041
        %v1045 = vsel %vm837, %v1043, -inf
        %1046 = vmax.xlane.f32.xlu0 %v1045
        %v1047 = vpop.xlane.xlu0 %1046
        %v1048 = vsel %vm837, %v1044, -inf
        %1049 = vmax.xlane.f32.xlu0 %v1048
        %v1050 = vpop.xlane.xlu0 %1049
        %v1051 = vsub.f32 %v1043, %v1047
        %v1052 = vsub.f32 %v1044, %v1050
        %v1053 = vmul.f32 %v1051, 1.442695
        %v1054 = vpow.pop %v1053
        %v1055 = vmul.f32 %v1052, 1.442695
        %v1056 = vpow.pop %v1055
        %v1057 = vsel %vm837, %v1054, 0.0
        %1058 = vadd.xlane.f32.xlu0 %v1057
        %v1059 = vpop.xlane.xlu0 %1058
        %v1060 = vsel %vm837, %v1056, 0.0
        %1061 = vadd.xlane.f32.xlu0 %v1060
        %v1062 = vpop.xlane.xlu0 %1061
        %v1063 = vrcp.pop %v1059
        %v1064 = vrcp.pop %v1062
        %v1065 = vmul.f32 %v1054, %v1063
        %v1066 = vmul.f32 %v1056, %v1064
        %v1067 = vpack.c.bf16 %v1066, %v1065
        %1068 = vrot.lane.b32.xlu0 %v813, 64
        %v1069 = vpop.permute.xlu0 %1068
        %v1072 = vsel %vm837, %v1067, 0
        %1074 = vmatpush.bf16.msra.mxu0 0
        %1075 = vmatpush.bf16.msra.mxu0 0
        %1076 = vmatpush.bf16.msra.mxu0 0
        %1077 = vmatpush.bf16.msra.mxu0 0
        %1078 = vmatpush.bf16.msra.mxu0 0
        %1079 = vmatpush.bf16.msra.mxu0 0
        %1080 = vmatpush.bf16.msra.mxu0 0
        %1081 = vmatpush.bf16.msra.mxu0 %v1069
        %1082 = vmatmul.bf16.gmra.mxu0 %v1072
        %v1083 = vpop.f32.mrf.mxu0
        %v1084 = vadd.f32 0.0, %v1083
        %v1085 = vpop.f32.mrf.mxu0
        %v1086 = vadd.f32 0.0, %v1085
        %1087 = vdwg.mxu0
        %v1088 = vpack.c.bf16 %v1086, %v1084
        %s1089 = scalar_lea.vmem %s5, 32
        %v1090 = vld [vmem:[%s1089] sm:$0xf]
        %v1091 = vld [vmem:[%s1089 + $0x4] sm:$0xf]
        %v1092 = vld [vmem:[%s1089 + $0x8] sm:$0xf]
        %v1093 = vld [vmem:[%s1089 + $0xc] sm:$0xf]
        %v1098 = vunpack.c.l.b16 %v1090
        %v1099 = vunpack.c.l.b16 %v1091
        %v1100 = vunpack.c.l.b16 %v1092
        %v1101 = vunpack.c.l.b16 %v1093
        %v1102 = vpack.c.b16 %v1099, %v1098
        %v1103 = vpack.c.b16 %v1101, %v1100
        %v1107 = vsel %vm814, %v1088, 0
        %1109 = vmatpush.bf16.msra.mxu0 0
        %1110 = vmatpush.bf16.msra.mxu0 0
        %1111 = vmatpush.bf16.msra.mxu0 0
        %1112 = vmatpush.bf16.msra.mxu0 0
        %1113 = vmatpush.bf16.msra.mxu0 0
        %1114 = vmatpush.bf16.msra.mxu0 0
        %1115 = vmatpush.bf16.msra.mxu0 %v1103
        %1116 = vmatpush.bf16.msra.mxu0 %v1102
        %1117 = vmatmul.bf16.gmra.mxu0 %v1107
        %v1118 = vpop.f32.mrf.mxu0
        %v1119 = vadd.f32 0.0, %v1118
        %v1120 = vpop.f32.mrf.mxu0
        %v1121 = vadd.f32 0.0, %v1120
        %1122 = vdwg.mxu0
        %v1123 = vadd.f32 %v1015, %v1119
        %v1124 = vadd.f32 %v1017, %v1121
        %1125 = vrot.lane.b32.xlu0 %v811, 32
        %v1126 = vpop.permute.xlu0 %1125
        %1127 = vrot.lane.b32.xlu0 %v812, 32
        %v1128 = vpop.permute.xlu0 %1127
        %v1130 = vsel %vm814, %v1126, 0
        %v1133 = vsel %vm814, %v1128, 0
        %1135 = vmatpush.bf16.xpose.msra.mxu0 0
        %1136 = vmatpush.bf16.xpose.msra.mxu0 0
        %1137 = vmatpush.bf16.xpose.msra.mxu0 0
        %1138 = vmatpush.bf16.xpose.msra.mxu0 0
        %1139 = vmatpush.bf16.xpose.msra.mxu0 0
        %1140 = vmatpush.bf16.xpose.msra.mxu0 0
        %1141 = vmatpush.bf16.xpose.msra.mxu0 0
        %1142 = vmatpush.bf16.xpose.msra.mxu0 %v1133
        %1143 = vmatmul.bf16.gmra.mxu0 %v1130
        %v1144 = vpop.f32.mrf.mxu0
        %v1145 = vadd.f32 0.0, %v1144
        %v1146 = vpop.f32.mrf.mxu0
        %v1147 = vadd.f32 0.0, %v1146
        %1148 = vdwg.mxu0
        %v1149 = vsel %vm807, -1e+30, %v1145
        %v1150 = vsel %vm808, -1e+30, %v1147
        %v1151 = vsel %vm837, %v1149, -inf
        %1152 = vmax.xlane.f32.xlu0 %v1151
        %v1153 = vpop.xlane.xlu0 %1152
        %v1154 = vsel %vm837, %v1150, -inf
        %1155 = vmax.xlane.f32.xlu0 %v1154
        %v1156 = vpop.xlane.xlu0 %1155
        %v1157 = vsub.f32 %v1149, %v1153
        %v1158 = vsub.f32 %v1150, %v1156
        %v1159 = vmul.f32 %v1157, 1.442695
        %v1160 = vpow.pop %v1159
        %v1161 = vmul.f32 %v1158, 1.442695
        %v1162 = vpow.pop %v1161
        %v1163 = vsel %vm837, %v1160, 0.0
        %1164 = vadd.xlane.f32.xlu0 %v1163
        %v1165 = vpop.xlane.xlu0 %1164
        %v1166 = vsel %vm837, %v1162, 0.0
        %1167 = vadd.xlane.f32.xlu0 %v1166
        %v1168 = vpop.xlane.xlu0 %1167
        %v1169 = vrcp.pop %v1165
        %v1170 = vrcp.pop %v1168
        %v1171 = vmul.f32 %v1160, %v1169
        %v1172 = vmul.f32 %v1162, %v1170
        %v1173 = vpack.c.bf16 %v1172, %v1171
        %1174 = vrot.lane.b32.xlu0 %v813, 32
        %v1175 = vpop.permute.xlu0 %1174
        %v1178 = vsel %vm837, %v1173, 0
        %1180 = vmatpush.bf16.msra.mxu0 0
        %1181 = vmatpush.bf16.msra.mxu0 0
        %1182 = vmatpush.bf16.msra.mxu0 0
        %1183 = vmatpush.bf16.msra.mxu0 0
        %1184 = vmatpush.bf16.msra.mxu0 0
        %1185 = vmatpush.bf16.msra.mxu0 0
        %1186 = vmatpush.bf16.msra.mxu0 0
        %1187 = vmatpush.bf16.msra.mxu0 %v1175
        %1188 = vmatmul.bf16.gmra.mxu0 %v1178
        %v1189 = vpop.f32.mrf.mxu0
        %v1190 = vadd.f32 0.0, %v1189
        %v1191 = vpop.f32.mrf.mxu0
        %v1192 = vadd.f32 0.0, %v1191
        %1193 = vdwg.mxu0
        %v1194 = vpack.c.bf16 %v1192, %v1190
        %s1195 = scalar_lea.vmem %s5, 48
        %v1196 = vld [vmem:[%s1195] sm:$0xf]
        %v1197 = vld [vmem:[%s1195 + $0x4] sm:$0xf]
        %v1198 = vld [vmem:[%s1195 + $0x8] sm:$0xf]
        %v1199 = vld [vmem:[%s1195 + $0xc] sm:$0xf]
        %v1204 = vunpack.c.l.b16 %v1196
        %v1205 = vunpack.c.l.b16 %v1197
        %v1206 = vunpack.c.l.b16 %v1198
        %v1207 = vunpack.c.l.b16 %v1199
        %v1208 = vpack.c.b16 %v1205, %v1204
        %v1209 = vpack.c.b16 %v1207, %v1206
        %v1213 = vsel %vm814, %v1194, 0
        %1215 = vmatpush.bf16.msra.mxu0 0
        %1216 = vmatpush.bf16.msra.mxu0 0
        %1217 = vmatpush.bf16.msra.mxu0 0
        %1218 = vmatpush.bf16.msra.mxu0 0
        %1219 = vmatpush.bf16.msra.mxu0 0
        %1220 = vmatpush.bf16.msra.mxu0 0
        %1221 = vmatpush.bf16.msra.mxu0 %v1209
        %1222 = vmatpush.bf16.msra.mxu0 %v1208
        %1223 = vmatmul.bf16.gmra.mxu0 %v1213
        %v1224 = vpop.f32.mrf.mxu0
        %v1225 = vadd.f32 0.0, %v1224
        %v1226 = vpop.f32.mrf.mxu0
        %v1227 = vadd.f32 0.0, %v1226
        %1228 = vdwg.mxu0
        %v1229 = vadd.f32 %v1123, %v1225
        %v1230 = vadd.f32 %v1124, %v1227
        %v1231 = vadd.f32 %v530, %v1229
        %v1232 = vadd.f32 %v531, %v1230
        %v1233 = vld [vmem:[%s6] sm:$0x1]
        %v1235 = vperm.slane %v1233, 0
        %v1237 = vadd.f32 %v1231, %v1235
        %v1238 = vadd.f32 %v1232, %v1235
        %v1239 = vld [vmem:[%s7] sm:$0x1]
        %v1240 = vld [vmem:[%s8] sm:$0x1]
        %1241 = vadd.xlane.f32.xlu0 %v1237
        %v1242 = vpop.xlane.xlu0 %1241
        %1243 = vadd.xlane.f32.xlu0 %v1238
        %v1244 = vpop.xlane.xlu0 %1243
        %v1245 = vmul.f32 %v1242, %v544
        %v1246 = vmul.f32 %v1244, %v544
        %v1247 = vsub.f32 %v1237, %v1245
        %v1248 = vsub.f32 %v1238, %v1246
        %v1249 = vmul.f32 %v1247, %v1247
        %v1250 = vmul.f32 %v1248, %v1248
        %1251 = vadd.xlane.f32.xlu0 %v1249
        %v1252 = vpop.xlane.xlu0 %1251
        %1253 = vadd.xlane.f32.xlu0 %v1250
        %v1254 = vpop.xlane.xlu0 %1253
        %v1255 = vmul.f32 %v1252, %v544
        %v1256 = vmul.f32 %v1254, %v544
        %v1257 = vadd.f32 %v1255, 1e-05
        %v1258 = vadd.f32 %v1256, 1e-05
        %v1259 = vrsqrt.pop %v1257
        %v1260 = vmul.f32 %v1259, %v1257
        %v1261 = vmul.f32 %v1260, %v1259
        %v1262 = vmul.f32 0.5, %v1261
        %v1263 = vsub.f32 1.5, %v1262
        %v1264 = vmul.f32 %v1259, %v1263
        %vm1265 = vweird.f32 %v1257
        %vm1266 = vweird.f32 %v1259
        %vm1267 = vmor %vm1265, %vm1266
        %v1268 = vsel %vm1267, %v1259, %v1264
        %v1269 = vrsqrt.pop %v1258
        %v1270 = vmul.f32 %v1269, %v1258
        %v1271 = vmul.f32 %v1270, %v1269
        %v1272 = vmul.f32 0.5, %v1271
        %v1273 = vsub.f32 1.5, %v1272
        %v1274 = vmul.f32 %v1269, %v1273
        %vm1275 = vweird.f32 %v1258
        %vm1276 = vweird.f32 %v1269
        %vm1277 = vmor %vm1275, %vm1276
        %v1278 = vsel %vm1277, %v1269, %v1274
        %v1279 = vmul.f32 %v1247, %v1268
        %v1280 = vmul.f32 %v1248, %v1278
        %v1282 = vperm.slane %v1239, 0
        %v1284 = vmul.f32 %v1279, %v1282
        %v1285 = vmul.f32 %v1280, %v1282
        %v1287 = vperm.slane %v1240, 0
        %v1289 = vadd.f32 %v1284, %v1287
        %v1290 = vadd.f32 %v1285, %v1287
        %v1291 = vpack.c.bf16 %v1290, %v1289
        %v1292 = vld [vmem:[%s9] sm:$0xff]
        %v1293 = vld [vmem:[%s9 + $0x8] sm:$0xff]
        %v1294 = vld [vmem:[%s9 + $0x10] sm:$0xff]
        %v1295 = vld [vmem:[%s9 + $0x18] sm:$0xff]
        %v1296 = vld [vmem:[%s9 + $0x20] sm:$0xff]
        %v1297 = vld [vmem:[%s9 + $0x28] sm:$0xff]
        %v1298 = vld [vmem:[%s9 + $0x30] sm:$0xff]
        %v1299 = vld [vmem:[%s9 + $0x38] sm:$0xff]
        %v1300 = vld [vmem:[%s9 + $0x40] sm:$0xff]
        %v1301 = vld [vmem:[%s9 + $0x48] sm:$0xff]
        %v1302 = vld [vmem:[%s9 + $0x50] sm:$0xff]
        %v1303 = vld [vmem:[%s9 + $0x58] sm:$0xff]
        %v1304 = vld [vmem:[%s9 + $0x60] sm:$0xff]
        %v1305 = vld [vmem:[%s9 + $0x68] sm:$0xff]
        %v1306 = vld [vmem:[%s9 + $0x70] sm:$0xff]
        %v1307 = vld [vmem:[%s9 + $0x78] sm:$0xff]
        %v1308 = vld [vmem:[%s9 + $0x80] sm:$0xff]
        %v1309 = vld [vmem:[%s9 + $0x88] sm:$0xff]
        %v1310 = vld [vmem:[%s9 + $0x90] sm:$0xff]
        %v1311 = vld [vmem:[%s9 + $0x98] sm:$0xff]
        %v1312 = vld [vmem:[%s9 + $0xa0] sm:$0xff]
        %v1313 = vld [vmem:[%s9 + $0xa8] sm:$0xff]
        %v1314 = vld [vmem:[%s9 + $0xb0] sm:$0xff]
        %v1315 = vld [vmem:[%s9 + $0xb8] sm:$0xff]
        %v1316 = vld [vmem:[%s9 + $0xc0] sm:$0xff]
        %v1317 = vld [vmem:[%s9 + $0xc8] sm:$0xff]
        %v1318 = vld [vmem:[%s9 + $0xd0] sm:$0xff]
        %v1319 = vld [vmem:[%s9 + $0xd8] sm:$0xff]
        %v1320 = vld [vmem:[%s9 + $0xe0] sm:$0xff]
        %v1321 = vld [vmem:[%s9 + $0xe8] sm:$0xff]
        %v1322 = vld [vmem:[%s9 + $0xf0] sm:$0xff]
        %v1323 = vld [vmem:[%s9 + $0xf8] sm:$0xff]
        %v1324 = vld [vmem:[%s10] sm:$0xf]
        %v1326 = vperm.slane %v1324, 0
        %v1327 = vperm.slane %v1324, 1
        %v1328 = vperm.slane %v1324, 2
        %v1329 = vperm.slane %v1324, 3
        %v1366 = vunpack.c.l.b16 %v1292
        %v1367 = vunpack.c.h.b16 %v1292
        %v1368 = vunpack.c.l.b16 %v1293
        %v1369 = vunpack.c.h.b16 %v1293
        %v1370 = vunpack.c.l.b16 %v1294
        %v1371 = vunpack.c.h.b16 %v1294
        %v1372 = vunpack.c.l.b16 %v1295
        %v1373 = vunpack.c.h.b16 %v1295
        %v1374 = vunpack.c.l.b16 %v1296
        %v1375 = vunpack.c.h.b16 %v1296
        %v1376 = vunpack.c.l.b16 %v1297
        %v1377 = vunpack.c.h.b16 %v1297
        %v1378 = vunpack.c.l.b16 %v1298
        %v1379 = vunpack.c.h.b16 %v1298
        %v1380 = vunpack.c.l.b16 %v1299
        %v1381 = vunpack.c.h.b16 %v1299
        %v1382 = vunpack.c.l.b16 %v1300
        %v1383 = vunpack.c.h.b16 %v1300
        %v1384 = vunpack.c.l.b16 %v1301
        %v1385 = vunpack.c.h.b16 %v1301
        %v1386 = vunpack.c.l.b16 %v1302
        %v1387 = vunpack.c.h.b16 %v1302
        %v1388 = vunpack.c.l.b16 %v1303
        %v1389 = vunpack.c.h.b16 %v1303
        %v1390 = vunpack.c.l.b16 %v1304
        %v1391 = vunpack.c.h.b16 %v1304
        %v1392 = vunpack.c.l.b16 %v1305
        %v1393 = vunpack.c.h.b16 %v1305
        %v1394 = vunpack.c.l.b16 %v1306
        %v1395 = vunpack.c.h.b16 %v1306
        %v1396 = vunpack.c.l.b16 %v1307
        %v1397 = vunpack.c.h.b16 %v1307
        %v1398 = vunpack.c.l.b16 %v1308
        %v1399 = vunpack.c.h.b16 %v1308
        %v1400 = vunpack.c.l.b16 %v1309
        %v1401 = vunpack.c.h.b16 %v1309
        %v1402 = vunpack.c.l.b16 %v1310
        %v1403 = vunpack.c.h.b16 %v1310
        %v1404 = vunpack.c.l.b16 %v1311
        %v1405 = vunpack.c.h.b16 %v1311
        %v1406 = vunpack.c.l.b16 %v1312
        %v1407 = vunpack.c.h.b16 %v1312
        %v1408 = vunpack.c.l.b16 %v1313
        %v1409 = vunpack.c.h.b16 %v1313
        %v1410 = vunpack.c.l.b16 %v1314
        %v1411 = vunpack.c.h.b16 %v1314
        %v1412 = vunpack.c.l.b16 %v1315
        %v1413 = vunpack.c.h.b16 %v1315
        %v1414 = vunpack.c.l.b16 %v1316
        %v1415 = vunpack.c.h.b16 %v1316
        %v1416 = vunpack.c.l.b16 %v1317
        %v1417 = vunpack.c.h.b16 %v1317
        %v1418 = vunpack.c.l.b16 %v1318
        %v1419 = vunpack.c.h.b16 %v1318
        %v1420 = vunpack.c.l.b16 %v1319
        %v1421 = vunpack.c.h.b16 %v1319
        %v1422 = vunpack.c.l.b16 %v1320
        %v1423 = vunpack.c.h.b16 %v1320
        %v1424 = vunpack.c.l.b16 %v1321
        %v1425 = vunpack.c.h.b16 %v1321
        %v1426 = vunpack.c.l.b16 %v1322
        %v1427 = vunpack.c.h.b16 %v1322
        %v1428 = vunpack.c.l.b16 %v1323
        %v1429 = vunpack.c.h.b16 %v1323
        %v1430 = vpack.c.b16 %v1370, %v1366
        %v1431 = vpack.c.b16 %v1371, %v1367
        %v1432 = vpack.c.b16 %v1372, %v1368
        %v1433 = vpack.c.b16 %v1373, %v1369
        %v1434 = vpack.c.b16 %v1378, %v1374
        %v1435 = vpack.c.b16 %v1379, %v1375
        %v1436 = vpack.c.b16 %v1380, %v1376
        %v1437 = vpack.c.b16 %v1381, %v1377
        %v1438 = vpack.c.b16 %v1386, %v1382
        %v1439 = vpack.c.b16 %v1387, %v1383
        %v1440 = vpack.c.b16 %v1388, %v1384
        %v1441 = vpack.c.b16 %v1389, %v1385
        %v1442 = vpack.c.b16 %v1394, %v1390
        %v1443 = vpack.c.b16 %v1395, %v1391
        %v1444 = vpack.c.b16 %v1396, %v1392
        %v1445 = vpack.c.b16 %v1397, %v1393
        %v1446 = vpack.c.b16 %v1402, %v1398
        %v1447 = vpack.c.b16 %v1403, %v1399
        %v1448 = vpack.c.b16 %v1404, %v1400
        %v1449 = vpack.c.b16 %v1405, %v1401
        %v1450 = vpack.c.b16 %v1410, %v1406
        %v1451 = vpack.c.b16 %v1411, %v1407
        %v1452 = vpack.c.b16 %v1412, %v1408
        %v1453 = vpack.c.b16 %v1413, %v1409
        %v1454 = vpack.c.b16 %v1418, %v1414
        %v1455 = vpack.c.b16 %v1419, %v1415
        %v1456 = vpack.c.b16 %v1420, %v1416
        %v1457 = vpack.c.b16 %v1421, %v1417
        %v1458 = vpack.c.b16 %v1426, %v1422
        %v1459 = vpack.c.b16 %v1427, %v1423
        %v1460 = vpack.c.b16 %v1428, %v1424
        %v1461 = vpack.c.b16 %v1429, %v1425
        %1494 = vmatpush.bf16.msra.mxu0 %v1458
        %1495 = vmatpush.bf16.msra.mxu0 %v1454
        %1496 = vmatpush.bf16.msra.mxu0 %v1450
        %1497 = vmatpush.bf16.msra.mxu0 %v1446
        %1498 = vmatpush.bf16.msra.mxu0 %v1442
        %1499 = vmatpush.bf16.msra.mxu0 %v1438
        %1500 = vmatpush.bf16.msra.mxu0 %v1434
        %1501 = vmatpush.bf16.msra.mxu0 %v1430
        %1502 = vmatmul.bf16.gmra.mxu0 %v1291
        %v1503 = vpop.f32.mrf.mxu0
        %v1504 = vadd.f32 %v1326, %v1503
        %v1505 = vpop.f32.mrf.mxu0
        %v1506 = vadd.f32 %v1326, %v1505
        %1507 = vdwg.mxu0
        %1508 = vmatpush.bf16.msra.mxu0 %v1459
        %1509 = vmatpush.bf16.msra.mxu0 %v1455
        %1510 = vmatpush.bf16.msra.mxu0 %v1451
        %1511 = vmatpush.bf16.msra.mxu0 %v1447
        %1512 = vmatpush.bf16.msra.mxu0 %v1443
        %1513 = vmatpush.bf16.msra.mxu0 %v1439
        %1514 = vmatpush.bf16.msra.mxu0 %v1435
        %1515 = vmatpush.bf16.msra.mxu0 %v1431
        %1516 = vmatmul.bf16.gmra.mxu0 %v1291
        %v1517 = vpop.f32.mrf.mxu0
        %v1518 = vadd.f32 %v1327, %v1517
        %v1519 = vpop.f32.mrf.mxu0
        %v1520 = vadd.f32 %v1327, %v1519
        %1521 = vdwg.mxu0
        %1522 = vmatpush.bf16.msra.mxu0 %v1460
        %1523 = vmatpush.bf16.msra.mxu0 %v1456
        %1524 = vmatpush.bf16.msra.mxu0 %v1452
        %1525 = vmatpush.bf16.msra.mxu0 %v1448
        %1526 = vmatpush.bf16.msra.mxu0 %v1444
        %1527 = vmatpush.bf16.msra.mxu0 %v1440
        %1528 = vmatpush.bf16.msra.mxu0 %v1436
        %1529 = vmatpush.bf16.msra.mxu0 %v1432
        %1530 = vmatmul.bf16.gmra.mxu0 %v1291
        %v1531 = vpop.f32.mrf.mxu0
        %v1532 = vadd.f32 %v1328, %v1531
        %v1533 = vpop.f32.mrf.mxu0
        %v1534 = vadd.f32 %v1328, %v1533
        %1535 = vdwg.mxu0
        %1536 = vmatpush.bf16.msra.mxu0 %v1461
        %1537 = vmatpush.bf16.msra.mxu0 %v1457
        %1538 = vmatpush.bf16.msra.mxu0 %v1453
        %1539 = vmatpush.bf16.msra.mxu0 %v1449
        %1540 = vmatpush.bf16.msra.mxu0 %v1445
        %1541 = vmatpush.bf16.msra.mxu0 %v1441
        %1542 = vmatpush.bf16.msra.mxu0 %v1437
        %1543 = vmatpush.bf16.msra.mxu0 %v1433
        %1544 = vmatmul.bf16.gmra.mxu0 %v1291
        %v1545 = vpop.f32.mrf.mxu0
        %v1546 = vadd.f32 %v1329, %v1545
        %v1547 = vpop.f32.mrf.mxu0
        %v1548 = vadd.f32 %v1329, %v1547
        %1549 = vdwg.mxu0
        %v1550 = vmul.f32 %v1504, -1.702
        %v1551 = vmul.f32 %v1518, -1.702
        %v1552 = vmul.f32 %v1532, -1.702
        %v1553 = vmul.f32 %v1546, -1.702
        %v1554 = vmul.f32 %v1506, -1.702
        %v1555 = vmul.f32 %v1520, -1.702
        %v1556 = vmul.f32 %v1534, -1.702
        %v1557 = vmul.f32 %v1548, -1.702
        %v1558 = vmul.f32 %v1550, 1.442695
        %v1559 = vpow.pop %v1558
        %v1560 = vmul.f32 %v1551, 1.442695
        %v1561 = vpow.pop %v1560
        %v1562 = vmul.f32 %v1552, 1.442695
        %v1563 = vpow.pop %v1562
        %v1564 = vmul.f32 %v1553, 1.442695
        %v1565 = vpow.pop %v1564
        %v1566 = vmul.f32 %v1554, 1.442695
        %v1567 = vpow.pop %v1566
        %v1568 = vmul.f32 %v1555, 1.442695
        %v1569 = vpow.pop %v1568
        %v1570 = vmul.f32 %v1556, 1.442695
        %v1571 = vpow.pop %v1570
        %v1572 = vmul.f32 %v1557, 1.442695
        %v1573 = vpow.pop %v1572
        %v1574 = vadd.f32 %v1559, 1.0
        %v1575 = vadd.f32 %v1561, 1.0
        %v1576 = vadd.f32 %v1563, 1.0
        %v1577 = vadd.f32 %v1565, 1.0
        %v1578 = vadd.f32 %v1567, 1.0
        %v1579 = vadd.f32 %v1569, 1.0
        %v1580 = vadd.f32 %v1571, 1.0
        %v1581 = vadd.f32 %v1573, 1.0
        %v1582 = vrcp.pop %v1574
        %v1583 = vrcp.pop %v1575
        %v1584 = vrcp.pop %v1576
        %v1585 = vrcp.pop %v1577
        %v1586 = vrcp.pop %v1578
        %v1587 = vrcp.pop %v1579
        %v1588 = vrcp.pop %v1580
        %v1589 = vrcp.pop %v1581
        %v1590 = vmul.f32 %v1504, %v1582
        %v1591 = vmul.f32 %v1518, %v1583
        %v1592 = vmul.f32 %v1532, %v1584
        %v1593 = vmul.f32 %v1546, %v1585
        %v1594 = vmul.f32 %v1506, %v1586
        %v1595 = vmul.f32 %v1520, %v1587
        %v1596 = vmul.f32 %v1534, %v1588
        %v1597 = vmul.f32 %v1548, %v1589
        %v1598 = vpack.c.bf16 %v1594, %v1590
        %v1599 = vpack.c.bf16 %v1595, %v1591
        %v1600 = vpack.c.bf16 %v1596, %v1592
        %v1601 = vpack.c.bf16 %v1597, %v1593
        %v1602 = vld [vmem:[#allocation4] sm:$0xf]
        %v1603 = vld [vmem:[#allocation4 + $0x4] sm:$0xf]
        %v1604 = vld [vmem:[#allocation4 + $0x8] sm:$0xf]
        %v1605 = vld [vmem:[#allocation4 + $0xc] sm:$0xf]
        %v1606 = vld [vmem:[#allocation4 + $0x10] sm:$0xf]
        %v1607 = vld [vmem:[#allocation4 + $0x14] sm:$0xf]
        %v1608 = vld [vmem:[#allocation4 + $0x18] sm:$0xf]
        %v1609 = vld [vmem:[#allocation4 + $0x1c] sm:$0xf]
        %v1610 = vld [vmem:[#allocation4 + $0x20] sm:$0xf]
        %v1611 = vld [vmem:[#allocation4 + $0x24] sm:$0xf]
        %v1612 = vld [vmem:[#allocation4 + $0x28] sm:$0xf]
        %v1613 = vld [vmem:[#allocation4 + $0x2c] sm:$0xf]
        %v1614 = vld [vmem:[#allocation4 + $0x30] sm:$0xf]
        %v1615 = vld [vmem:[#allocation4 + $0x34] sm:$0xf]
        %v1616 = vld [vmem:[#allocation4 + $0x38] sm:$0xf]
        %v1617 = vld [vmem:[#allocation4 + $0x3c] sm:$0xf]
        %v1618 = vld [vmem:[#allocation4 + $0x40] sm:$0xf]
        %v1619 = vld [vmem:[#allocation4 + $0x44] sm:$0xf]
        %v1620 = vld [vmem:[#allocation4 + $0x48] sm:$0xf]
        %v1621 = vld [vmem:[#allocation4 + $0x4c] sm:$0xf]
        %v1622 = vld [vmem:[#allocation4 + $0x50] sm:$0xf]
        %v1623 = vld [vmem:[#allocation4 + $0x54] sm:$0xf]
        %v1624 = vld [vmem:[#allocation4 + $0x58] sm:$0xf]
        %v1625 = vld [vmem:[#allocation4 + $0x5c] sm:$0xf]
        %v1626 = vld [vmem:[#allocation4 + $0x60] sm:$0xf]
        %v1627 = vld [vmem:[#allocation4 + $0x64] sm:$0xf]
        %v1628 = vld [vmem:[#allocation4 + $0x68] sm:$0xf]
        %v1629 = vld [vmem:[#allocation4 + $0x6c] sm:$0xf]
        %v1630 = vld [vmem:[#allocation4 + $0x70] sm:$0xf]
        %v1631 = vld [vmem:[#allocation4 + $0x74] sm:$0xf]
        %v1632 = vld [vmem:[#allocation4 + $0x78] sm:$0xf]
        %v1633 = vld [vmem:[#allocation4 + $0x7c] sm:$0xf]
        %v1634 = vld [vmem:[#allocation4 + $0x80] sm:$0xf]
        %v1635 = vld [vmem:[#allocation4 + $0x84] sm:$0xf]
        %v1636 = vld [vmem:[#allocation4 + $0x88] sm:$0xf]
        %v1637 = vld [vmem:[#allocation4 + $0x8c] sm:$0xf]
        %v1638 = vld [vmem:[#allocation4 + $0x90] sm:$0xf]
        %v1639 = vld [vmem:[#allocation4 + $0x94] sm:$0xf]
        %v1640 = vld [vmem:[#allocation4 + $0x98] sm:$0xf]
        %v1641 = vld [vmem:[#allocation4 + $0x9c] sm:$0xf]
        %v1642 = vld [vmem:[#allocation4 + $0xa0] sm:$0xf]
        %v1643 = vld [vmem:[#allocation4 + $0xa4] sm:$0xf]
        %v1644 = vld [vmem:[#allocation4 + $0xa8] sm:$0xf]
        %v1645 = vld [vmem:[#allocation4 + $0xac] sm:$0xf]
        %v1646 = vld [vmem:[#allocation4 + $0xb0] sm:$0xf]
        %v1647 = vld [vmem:[#allocation4 + $0xb4] sm:$0xf]
        %v1648 = vld [vmem:[#allocation4 + $0xb8] sm:$0xf]
        %v1649 = vld [vmem:[#allocation4 + $0xbc] sm:$0xf]
        %v1650 = vld [vmem:[#allocation4 + $0xc0] sm:$0xf]
        %v1651 = vld [vmem:[#allocation4 + $0xc4] sm:$0xf]
        %v1652 = vld [vmem:[#allocation4 + $0xc8] sm:$0xf]
        %v1653 = vld [vmem:[#allocation4 + $0xcc] sm:$0xf]
        %v1654 = vld [vmem:[#allocation4 + $0xd0] sm:$0xf]
        %v1655 = vld [vmem:[#allocation4 + $0xd4] sm:$0xf]
        %v1656 = vld [vmem:[#allocation4 + $0xd8] sm:$0xf]
        %v1657 = vld [vmem:[#allocation4 + $0xdc] sm:$0xf]
        %v1658 = vld [vmem:[#allocation4 + $0xe0] sm:$0xf]
        %v1659 = vld [vmem:[#allocation4 + $0xe4] sm:$0xf]
        %v1660 = vld [vmem:[#allocation4 + $0xe8] sm:$0xf]
        %v1661 = vld [vmem:[#allocation4 + $0xec] sm:$0xf]
        %v1662 = vld [vmem:[#allocation4 + $0xf0] sm:$0xf]
        %v1663 = vld [vmem:[#allocation4 + $0xf4] sm:$0xf]
        %v1664 = vld [vmem:[#allocation4 + $0xf8] sm:$0xf]
        %v1665 = vld [vmem:[#allocation4 + $0xfc] sm:$0xf]
        %v1666 = vld [vmem:[%s12] sm:$0x1]
        %v1668 = vperm.slane %v1666, 0
        %v1734 = vunpack.c.l.b16 %v1602
        %v1735 = vunpack.c.l.b16 %v1603
        %v1736 = vunpack.c.l.b16 %v1604
        %v1737 = vunpack.c.l.b16 %v1605
        %v1738 = vunpack.c.l.b16 %v1606
        %v1739 = vunpack.c.l.b16 %v1607
        %v1740 = vunpack.c.l.b16 %v1608
        %v1741 = vunpack.c.l.b16 %v1609
        %v1742 = vunpack.c.l.b16 %v1610
        %v1743 = vunpack.c.l.b16 %v1611
        %v1744 = vunpack.c.l.b16 %v1612
        %v1745 = vunpack.c.l.b16 %v1613
        %v1746 = vunpack.c.l.b16 %v1614
        %v1747 = vunpack.c.l.b16 %v1615
        %v1748 = vunpack.c.l.b16 %v1616
        %v1749 = vunpack.c.l.b16 %v1617
        %v1750 = vunpack.c.l.b16 %v1618
        %v1751 = vunpack.c.l.b16 %v1619
        %v1752 = vunpack.c.l.b16 %v1620
        %v1753 = vunpack.c.l.b16 %v1621
        %v1754 = vunpack.c.l.b16 %v1622
        %v1755 = vunpack.c.l.b16 %v1623
        %v1756 = vunpack.c.l.b16 %v1624
        %v1757 = vunpack.c.l.b16 %v1625
        %v1758 = vunpack.c.l.b16 %v1626
        %v1759 = vunpack.c.l.b16 %v1627
        %v1760 = vunpack.c.l.b16 %v1628
        %v1761 = vunpack.c.l.b16 %v1629
        %v1762 = vunpack.c.l.b16 %v1630
        %v1763 = vunpack.c.l.b16 %v1631
        %v1764 = vunpack.c.l.b16 %v1632
        %v1765 = vunpack.c.l.b16 %v1633
        %v1766 = vunpack.c.l.b16 %v1634
        %v1767 = vunpack.c.l.b16 %v1635
        %v1768 = vunpack.c.l.b16 %v1636
        %v1769 = vunpack.c.l.b16 %v1637
        %v1770 = vunpack.c.l.b16 %v1638
        %v1771 = vunpack.c.l.b16 %v1639
        %v1772 = vunpack.c.l.b16 %v1640
        %v1773 = vunpack.c.l.b16 %v1641
        %v1774 = vunpack.c.l.b16 %v1642
        %v1775 = vunpack.c.l.b16 %v1643
        %v1776 = vunpack.c.l.b16 %v1644
        %v1777 = vunpack.c.l.b16 %v1645
        %v1778 = vunpack.c.l.b16 %v1646
        %v1779 = vunpack.c.l.b16 %v1647
        %v1780 = vunpack.c.l.b16 %v1648
        %v1781 = vunpack.c.l.b16 %v1649
        %v1782 = vunpack.c.l.b16 %v1650
        %v1783 = vunpack.c.l.b16 %v1651
        %v1784 = vunpack.c.l.b16 %v1652
        %v1785 = vunpack.c.l.b16 %v1653
        %v1786 = vunpack.c.l.b16 %v1654
        %v1787 = vunpack.c.l.b16 %v1655
        %v1788 = vunpack.c.l.b16 %v1656
        %v1789 = vunpack.c.l.b16 %v1657
        %v1790 = vunpack.c.l.b16 %v1658
        %v1791 = vunpack.c.l.b16 %v1659
        %v1792 = vunpack.c.l.b16 %v1660
        %v1793 = vunpack.c.l.b16 %v1661
        %v1794 = vunpack.c.l.b16 %v1662
        %v1795 = vunpack.c.l.b16 %v1663
        %v1796 = vunpack.c.l.b16 %v1664
        %v1797 = vunpack.c.l.b16 %v1665
        %v1798 = vpack.c.b16 %v1735, %v1734
        %v1799 = vpack.c.b16 %v1737, %v1736
        %v1800 = vpack.c.b16 %v1739, %v1738
        %v1801 = vpack.c.b16 %v1741, %v1740
        %v1802 = vpack.c.b16 %v1743, %v1742
        %v1803 = vpack.c.b16 %v1745, %v1744
        %v1804 = vpack.c.b16 %v1747, %v1746
        %v1805 = vpack.c.b16 %v1749, %v1748
        %v1806 = vpack.c.b16 %v1751, %v1750
        %v1807 = vpack.c.b16 %v1753, %v1752
        %v1808 = vpack.c.b16 %v1755, %v1754
        %v1809 = vpack.c.b16 %v1757, %v1756
        %v1810 = vpack.c.b16 %v1759, %v1758
        %v1811 = vpack.c.b16 %v1761, %v1760
        %v1812 = vpack.c.b16 %v1763, %v1762
        %v1813 = vpack.c.b16 %v1765, %v1764
        %v1814 = vpack.c.b16 %v1767, %v1766
        %v1815 = vpack.c.b16 %v1769, %v1768
        %v1816 = vpack.c.b16 %v1771, %v1770
        %v1817 = vpack.c.b16 %v1773, %v1772
        %v1818 = vpack.c.b16 %v1775, %v1774
        %v1819 = vpack.c.b16 %v1777, %v1776
        %v1820 = vpack.c.b16 %v1779, %v1778
        %v1821 = vpack.c.b16 %v1781, %v1780
        %v1822 = vpack.c.b16 %v1783, %v1782
        %v1823 = vpack.c.b16 %v1785, %v1784
        %v1824 = vpack.c.b16 %v1787, %v1786
        %v1825 = vpack.c.b16 %v1789, %v1788
        %v1826 = vpack.c.b16 %v1791, %v1790
        %v1827 = vpack.c.b16 %v1793, %v1792
        %v1828 = vpack.c.b16 %v1795, %v1794
        %v1829 = vpack.c.b16 %v1797, %v1796
        %1862 = vmatpush.bf16.msra.mxu0 %v1805
        %1863 = vmatpush.bf16.msra.mxu0 %v1804
        %1864 = vmatpush.bf16.msra.mxu0 %v1803
        %1865 = vmatpush.bf16.msra.mxu0 %v1802
        %1866 = vmatpush.bf16.msra.mxu0 %v1801
        %1867 = vmatpush.bf16.msra.mxu0 %v1800
        %1868 = vmatpush.bf16.msra.mxu0 %v1799
        %1869 = vmatpush.bf16.msra.mxu0 %v1798
        %1870 = vmatmul.bf16.gmra.mxu0 %v1598
        %v1871 = vpop.f32.mrf.mxu0
        %v1872 = vadd.f32 %v1668, %v1871
        %v1873 = vpop.f32.mrf.mxu0
        %v1874 = vadd.f32 %v1668, %v1873
        %1875 = vdwg.mxu0
        %1876 = vmatpush.bf16.msra.mxu0 %v1813
        %1877 = vmatpush.bf16.msra.mxu0 %v1812
        %1878 = vmatpush.bf16.msra.mxu0 %v1811
        %1879 = vmatpush.bf16.msra.mxu0 %v1810
        %1880 = vmatpush.bf16.msra.mxu0 %v1809
        %1881 = vmatpush.bf16.msra.mxu0 %v1808
        %1882 = vmatpush.bf16.msra.mxu0 %v1807
        %1883 = vmatpush.bf16.msra.mxu0 %v1806
        %1884 = vmatmul.bf16.gmra.mxu0 %v1599
        %v1885 = vpop.f32.mrf.mxu0
        %v1886 = vadd.f32 %v1872, %v1885
        %v1887 = vpop.f32.mrf.mxu0
        %v1888 = vadd.f32 %v1874, %v1887
        %1889 = vdwg.mxu0
        %1890 = vmatpush.bf16.msra.mxu0 %v1821
        %1891 = vmatpush.bf16.msra.mxu0 %v1820
        %1892 = vmatpush.bf16.msra.mxu0 %v1819
        %1893 = vmatpush.bf16.msra.mxu0 %v1818
        %1894 = vmatpush.bf16.msra.mxu0 %v1817
        %1895 = vmatpush.bf16.msra.mxu0 %v1816
        %1896 = vmatpush.bf16.msra.mxu0 %v1815
        %1897 = vmatpush.bf16.msra.mxu0 %v1814
        %1898 = vmatmul.bf16.gmra.mxu0 %v1600
        %v1899 = vpop.f32.mrf.mxu0
        %v1900 = vadd.f32 %v1886, %v1899
        %v1901 = vpop.f32.mrf.mxu0
        %v1902 = vadd.f32 %v1888, %v1901
        %1903 = vdwg.mxu0
        %1904 = vmatpush.bf16.msra.mxu0 %v1829
        %1905 = vmatpush.bf16.msra.mxu0 %v1828
        %1906 = vmatpush.bf16.msra.mxu0 %v1827
        %1907 = vmatpush.bf16.msra.mxu0 %v1826
        %1908 = vmatpush.bf16.msra.mxu0 %v1825
        %1909 = vmatpush.bf16.msra.mxu0 %v1824
        %1910 = vmatpush.bf16.msra.mxu0 %v1823
        %1911 = vmatpush.bf16.msra.mxu0 %v1822
        %1912 = vmatmul.bf16.gmra.mxu0 %v1601
        %v1913 = vpop.f32.mrf.mxu0
        %v1914 = vadd.f32 %v1900, %v1913
        %v1915 = vpop.f32.mrf.mxu0
        %v1916 = vadd.f32 %v1902, %v1915
        %1917 = vdwg.mxu0
        %v1918 = vadd.f32 %v1237, %v1914
        %v1919 = vadd.f32 %v1238, %v1916
        %1920 = vst [vmem:[%s528] sm:$0xff] %v1918
        %1921 = vst [vmem:[%s528 + $0x8] sm:$0xff] %v1919
        %p1922 = scmp.lt.s32.totalorder %s28, 1
        %s1923 = scalar_select %p1922, %s28, 1
        %s1924 = smul.addr %s1923, 2
        %s1925 = smul.addr %s1924, 8
        %s1926 = scalar_lea.vmem %s15, %s1925
        // Predicated region
        $region89: #{clip_forward.2} parent=79 // pred_check
          %p1927 = pneg %p366
        $region90: #{clip_forward.2} parent=79 // pred_check_branch
          %1929 = sbr.rel (%p1927) target = $region92
        $region91: #{clip_forward.2} parent=79 // pred_region
          _
        $region92: #{clip_forward.2} parent=79 // pred_fallthru
          _
      $region80: #{clip_forward.2} parent=5 // pred_fallthru
        _
      %p1930 = scmp.le.s32.totalorder 2, %s23
      // Predicated region
      $region93: #{clip_forward.2} parent=5 // pred_check
        %p1931 = pneg %p1930
      $region94: #{clip_forward.2} parent=5 // pred_check_branch
        %1933 = sbr.rel (%p1931) target = $region96
      $region95: #{clip_forward.2} parent=5 // pred_region
        %s1934 = ssub.s32 %s23, 2
        // Predicated region
        $region97: #{clip_forward.2} parent=95 // pred_check
          %p1935 = pneg %p372
        $region98: #{clip_forward.2} parent=95 // pred_check_branch
          %1937 = sbr.rel (%p1935) target = $region100
        $region99: #{clip_forward.2} parent=95 // pred_region
          %p1938 = scmp.lt.s32.totalorder %s29, 1
          %s1939 = scalar_select %p1938, %s29, 1
          %s1940 = smul.addr %s1939, 2
          %s1941 = smul.addr %s1940, 8
          %s1942 = scalar_lea.vmem %s15, %s1941
        $region100: #{clip_forward.2} parent=95 // pred_fallthru
          _
      $region96: #{clip_forward.2} parent=5 // pred_fallthru
        _
    $region6: #{clip_forward.2} parent=1 // loop_footer
      %s27 = sadd.s32 1, %s23
    $region7: #{clip_forward.2} parent=1 // loop_footer_branch
      %22 = sbr.rel target = $region3
    $region8: #{clip_forward.2} parent=1 // loop_exit
      _
    %1943 = vsyncpa [#allocation3], 1
    %s1944 = scalar_lea.sflag [#allocation3], 1
    %1945 = vsyncpa %s1944, 1
    %1946 = vsyncpa [#allocation5], 1

// kernel: clip_forward.3
$region0: #{clip_forward.3}
  #allocation0 [shape = 'u32[]', space=smem, size = 0x4, offset = 0x4, fixed_abs, tag = 'smem constant byte address 0x4 - core index']
  #allocation1 [shape = 'u32[72,128]{1,0:T(1,128)}', space=vmem, size = 0x9000, scoped, tag = 'internal scratch']
  %s0 = inlined_call_operand.hbm [shape: f32[2,16,128], index: 0, kind: input, shape index: {}, may-alias: {0,15}]
  %s1 = inlined_call_operand.vmem [shape: f32[1,128], index: 1, kind: input, shape index: {}]
  %s2 = inlined_call_operand.vmem [shape: f32[1,128], index: 2, kind: input, shape index: {}]
  %s3 = inlined_call_operand.hbm [shape: bf16[128,384], index: 3, kind: input, shape index: {}]
  %s4 = inlined_call_operand.vmem [shape: f32[1,384], index: 4, kind: input, shape index: {}]
  %s5 = inlined_call_operand.hbm [shape: bf16[4,32,128], index: 5, kind: input, shape index: {}]
  %s6 = inlined_call_operand.vmem [shape: f32[1,128], index: 6, kind: input, shape index: {}]
  %s7 = inlined_call_operand.vmem [shape: f32[1,128], index: 7, kind: input, shape index: {}]
  %s8 = inlined_call_operand.vmem [shape: f32[1,128], index: 8, kind: input, shape index: {}]
  %s9 = inlined_call_operand.hbm [shape: bf16[128,512], index: 9, kind: input, shape index: {}]
  %s10 = inlined_call_operand.vmem [shape: f32[1,512], index: 10, kind: input, shape index: {}]
  %s11 = inlined_call_operand.hbm [shape: bf16[512,128], index: 11, kind: input, shape index: {}]
  %s12 = inlined_call_operand.vmem [shape: f32[1,128], index: 12, kind: input, shape index: {}]
  %s13 = inlined_call_operand.vmem [shape: f32[1,128], index: 13, kind: input, shape index: {}]
  %s14 = inlined_call_operand.vmem [shape: f32[1,128], index: 14, kind: input, shape index: {}]
  %s15 = inlined_call_operand.hbm [shape: f32[2,16,128], index: 15, kind: output, shape index: {}, may-alias: {0,15}]
  %s16 = sld [smem:[#allocation0]]
  $region113: #{clip_forward.3} parent=0
    _
  %s18 = ssub.s32 1, %s16
  %s19 = scalar_select 0, %s18, %s16
  $region1: #{clip_forward.3} parent=0
    #allocation2 [shape = 'u8[16384]{0}', space=vmem, size = 0x4000, scoped, tag = 'input window, operand 0']
    #allocation3 [shape = 's32[2]{0}', space=sflag, size = 0x8, scoped, tag = 'scoped memory for clip_forward.3']
    #allocation4 [shape = 's32[2]{0}', space=sflag, size = 0x8, scoped, tag = 'scoped memory for clip_forward.3']
    #allocation5 [shape = 'u8[98304]{0}', space=vmem, size = 0x18000, scoped, tag = 'input window, operand 3, single buffered']
    #allocation6 [shape = 's32[1]{0}', space=sflag, size = 0x4, scoped, tag = 'scoped memory for clip_forward.3']
    #allocation7 [shape = 'u8[32768]{0}', space=vmem, size = 0x8000, scoped, tag = 'input window, operand 5, single buffered']
    #allocation8 [shape = 'u8[131072]{0}', space=vmem, size = 0x20000, scoped, tag = 'input window, operand 9, single buffered']
    #allocation9 [shape = 's32[1]{0}', space=sflag, size = 0x4, scoped, tag = 'scoped memory for clip_forward.3']
    #allocation10 [shape = 'u8[131072]{0}', space=vmem, size = 0x20000, scoped, tag = 'input window, operand 11, single buffered']
    #allocation11 [shape = 'u8[16384]{0}', space=vmem, size = 0x4000, scoped, tag = 'output window, operand 0']
    %20 = vsyncpa [#allocation3], 0
    %s21 = scalar_lea.sflag [#allocation3], 1
    %22 = vsyncpa %s21, 0
    %23 = vsyncpa [#allocation6], 0
    %24 = vsyncpa [#allocation9], 0
    %25 = vsyncpa [#allocation4], 0
    %s26 = scalar_lea.sflag [#allocation4], 1
    %27 = vsyncpa %s26, 0
    loop: start=0, step=1, limit=4
    $region2: #{clip_forward.3} parent=1 // loop_pre_header
      _
    $region3: #{clip_forward.3} parent=1 // loop_header
      %s29 = sphi 0, %s33
      %p30 = scmp.ge.s32.totalorder %s29, 4
      %s39 = sphi 0, %s41
      %s42 = sphi 0, %s39
      %s43 = sphi 0, %s42
      %s59 = sphi 0, %s43
      %s63 = sphi 0, %s63
      %s65 = sphi 0, %s63
      %s66 = sphi 0, %s65
      %s80 = sphi 0, %s66
      %s84 = sphi 0, %s84
      %s86 = sphi 0, %s84
      %s87 = sphi 0, %s86
      %s101 = sphi 0, %s87
      %s105 = sphi 0, %s105
      %s107 = sphi 0, %s105
      %s108 = sphi 0, %s107
      %s122 = sphi 0, %s108
      %s126 = sphi 0, %s126
      %s128 = sphi 0, %s126
      %s129 = sphi 0, %s128
      %s143 = sphi 0, %s129
      %s147 = sphi 0, %s147
      %s149 = sphi 0, %s147
      %s150 = sphi 0, %s149
      %s164 = sphi 0, %s150
      %s168 = sphi 0, %s168
      %s170 = sphi 0, %s168
      %s171 = sphi 0, %s170
      %s185 = sphi 0, %s171
      %s189 = sphi 0, %s189
      %s191 = sphi 0, %s189
      %s192 = sphi 0, %s191
      %s206 = sphi 0, %s192
      %s210 = sphi 0, %s210
      %s212 = sphi 0, %s210
      %s213 = sphi 0, %s212
      %s227 = sphi 0, %s213
      %s231 = sphi 0, %s231
      %s233 = sphi 0, %s231
      %s234 = sphi 0, %s233
      %s248 = sphi 0, %s234
      %s252 = sphi 0, %s252
      %s254 = sphi 0, %s252
      %s255 = sphi 0, %s254
      %s269 = sphi 0, %s255
      %s273 = sphi 0, %s273
      %s275 = sphi 0, %s273
      %s276 = sphi 0, %s275
      %s290 = sphi 0, %s276
      %s294 = sphi 0, %s294
      %s296 = sphi 0, %s294
      %s297 = sphi 0, %s296
      %s311 = sphi 0, %s297
      %s315 = sphi 0, %s315
      %s317 = sphi 0, %s315
      %s318 = sphi 0, %s317
      %s332 = sphi 0, %s318
      %s336 = sphi 0, %s336
      %s338 = sphi 0, %s336
      %s339 = sphi 0, %s338
      %s353 = sphi 0, %s339
      %s359 = sphi 0, %s361
      %s362 = sphi 0, %s359
      %s363 = sphi 0, %s362
      %s379 = sphi 0, %s363
    $region4: #{clip_forward.3} parent=1 // loop_header_branch
      %32 = sbr.rel (%p30) target = $region8
    $region5: #{clip_forward.3} parent=1 // loop_body
      %s34 = ssub.s32 %s29, 1
      %s35 = ssub.s32 %s29, 2
      %s36 = sadd.s32 %s29, 1
      %s37 = ssub.s32 %s29, %s36
      %p38 = scmp.eq.s32.totalorder %s37, 0
      %s40 = sadd.s32 %s39, 1
      %s41 = scalar_select %p38, %s39, %s40
      %p44 = pneg %p38
      %p45 = scmp.eq.s32.totalorder %s29, 1
      %p46 = por %p44, %p45
      %p47 = scmp.ne.s32.totalorder %s39, %s42
      %p48 = scmp.eq.s32.totalorder %s29, 0
      %p49 = por %p47, %p48
      %p50 = scmp.ne.s32.totalorder %s39, %s42
      %p51 = scmp.eq.s32.totalorder %s34, 1
      %p52 = por %p50, %p51
      %p53 = scmp.ne.s32.totalorder %s42, %s43
      %p54 = scmp.eq.s32.totalorder %s34, 0
      %p55 = por %p53, %p54
      %p56 = scmp.ne.s32.totalorder %s42, %s43
      %p57 = scmp.eq.s32.totalorder %s35, 1
      %p58 = por %p56, %p57
      %p60 = scmp.ne.s32.totalorder %s43, %s59
      %p61 = scmp.eq.s32.totalorder %s35, 0
      %p62 = por %p60, %p61
      %s64 = sadd.s32 %s63, 1
      %p67 = scmp.eq.s32.totalorder %s29, 1
      %p68 = scmp.ne.s32.totalorder %s63, %s65
      %p69 = scmp.eq.s32.totalorder %s29, 0
      %p70 = por %p68, %p69
      %p71 = scmp.ne.s32.totalorder %s63, %s65
      %p72 = scmp.eq.s32.totalorder %s34, 1
      %p73 = por %p71, %p72
      %p74 = scmp.ne.s32.totalorder %s65, %s66
      %p75 = scmp.eq.s32.totalorder %s34, 0
      %p76 = por %p74, %p75
      %p77 = scmp.ne.s32.totalorder %s65, %s66
      %p78 = scmp.eq.s32.totalorder %s35, 1
      %p79 = por %p77, %p78
      %p81 = scmp.ne.s32.totalorder %s66, %s80
      %p82 = scmp.eq.s32.totalorder %s35, 0
      %p83 = por %p81, %p82
      %s85 = sadd.s32 %s84, 1
      %p88 = scmp.eq.s32.totalorder %s29, 1
      %p89 = scmp.ne.s32.totalorder %s84, %s86
      %p90 = scmp.eq.s32.totalorder %s29, 0
      %p91 = por %p89, %p90
      %p92 = scmp.ne.s32.totalorder %s84, %s86
      %p93 = scmp.eq.s32.totalorder %s34, 1
      %p94 = por %p92, %p93
      %p95 = scmp.ne.s32.totalorder %s86, %s87
      %p96 = scmp.eq.s32.totalorder %s34, 0
      %p97 = por %p95, %p96
      %p98 = scmp.ne.s32.totalorder %s86, %s87
      %p99 = scmp.eq.s32.totalorder %s35, 1
      %p100 = por %p98, %p99
      %p102 = scmp.ne.s32.totalorder %s87, %s101
      %p103 = scmp.eq.s32.totalorder %s35, 0
      %p104 = por %p102, %p103
      %s106 = sadd.s32 %s105, 1
      %p109 = scmp.eq.s32.totalorder %s29, 1
      %p110 = scmp.ne.s32.totalorder %s105, %s107
      %p111 = scmp.eq.s32.totalorder %s29, 0
      %p112 = por %p110, %p111
      %p113 = scmp.ne.s32.totalorder %s105, %s107
      %p114 = scmp.eq.s32.totalorder %s34, 1
      %p115 = por %p113, %p114
      %p116 = scmp.ne.s32.totalorder %s107, %s108
      %p117 = scmp.eq.s32.totalorder %s34, 0
      %p118 = por %p116, %p117
      %p119 = scmp.ne.s32.totalorder %s107, %s108
      %p120 = scmp.eq.s32.totalorder %s35, 1
      %p121 = por %p119, %p120
      %p123 = scmp.ne.s32.totalorder %s108, %s122
      %p124 = scmp.eq.s32.totalorder %s35, 0
      %p125 = por %p123, %p124
      %s127 = sadd.s32 %s126, 1
      %p130 = scmp.eq.s32.totalorder %s29, 1
      %p131 = scmp.ne.s32.totalorder %s126, %s128
      %p132 = scmp.eq.s32.totalorder %s29, 0
      %p133 = por %p131, %p132
      %p134 = scmp.ne.s32.totalorder %s126, %s128
      %p135 = scmp.eq.s32.totalorder %s34, 1
      %p136 = por %p134, %p135
      %p137 = scmp.ne.s32.totalorder %s128, %s129
      %p138 = scmp.eq.s32.totalorder %s34, 0
      %p139 = por %p137, %p138
      %p140 = scmp.ne.s32.totalorder %s128, %s129
      %p141 = scmp.eq.s32.totalorder %s35, 1
      %p142 = por %p140, %p141
      %p144 = scmp.ne.s32.totalorder %s129, %s143
      %p145 = scmp.eq.s32.totalorder %s35, 0
      %p146 = por %p144, %p145
      %s148 = sadd.s32 %s147, 1
      %p151 = scmp.eq.s32.totalorder %s29, 1
      %p152 = scmp.ne.s32.totalorder %s147, %s149
      %p153 = scmp.eq.s32.totalorder %s29, 0
      %p154 = por %p152, %p153
      %p155 = scmp.ne.s32.totalorder %s147, %s149
      %p156 = scmp.eq.s32.totalorder %s34, 1
      %p157 = por %p155, %p156
      %p158 = scmp.ne.s32.totalorder %s149, %s150
      %p159 = scmp.eq.s32.totalorder %s34, 0
      %p160 = por %p158, %p159
      %p161 = scmp.ne.s32.totalorder %s149, %s150
      %p162 = scmp.eq.s32.totalorder %s35, 1
      %p163 = por %p161, %p162
      %p165 = scmp.ne.s32.totalorder %s150, %s164
      %p166 = scmp.eq.s32.totalorder %s35, 0
      %p167 = por %p165, %p166
      %s169 = sadd.s32 %s168, 1
      %p172 = scmp.eq.s32.totalorder %s29, 1
      %p173 = scmp.ne.s32.totalorder %s168, %s170
      %p174 = scmp.eq.s32.totalorder %s29, 0
      %p175 = por %p173, %p174
      %p176 = scmp.ne.s32.totalorder %s168, %s170
      %p177 = scmp.eq.s32.totalorder %s34, 1
      %p178 = por %p176, %p177
      %p179 = scmp.ne.s32.totalorder %s170, %s171
      %p180 = scmp.eq.s32.totalorder %s34, 0
      %p181 = por %p179, %p180
      %p182 = scmp.ne.s32.totalorder %s170, %s171
      %p183 = scmp.eq.s32.totalorder %s35, 1
      %p184 = por %p182, %p183
      %p186 = scmp.ne.s32.totalorder %s171, %s185
      %p187 = scmp.eq.s32.totalorder %s35, 0
      %p188 = por %p186, %p187
      %s190 = sadd.s32 %s189, 1
      %p193 = scmp.eq.s32.totalorder %s29, 1
      %p194 = scmp.ne.s32.totalorder %s189, %s191
      %p195 = scmp.eq.s32.totalorder %s29, 0
      %p196 = por %p194, %p195
      %p197 = scmp.ne.s32.totalorder %s189, %s191
      %p198 = scmp.eq.s32.totalorder %s34, 1
      %p199 = por %p197, %p198
      %p200 = scmp.ne.s32.totalorder %s191, %s192
      %p201 = scmp.eq.s32.totalorder %s34, 0
      %p202 = por %p200, %p201
      %p203 = scmp.ne.s32.totalorder %s191, %s192
      %p204 = scmp.eq.s32.totalorder %s35, 1
      %p205 = por %p203, %p204
      %p207 = scmp.ne.s32.totalorder %s192, %s206
      %p208 = scmp.eq.s32.totalorder %s35, 0
      %p209 = por %p207, %p208
      %s211 = sadd.s32 %s210, 1
      %p214 = scmp.eq.s32.totalorder %s29, 1
      %p215 = scmp.ne.s32.totalorder %s210, %s212
      %p216 = scmp.eq.s32.totalorder %s29, 0
      %p217 = por %p215, %p216
      %p218 = scmp.ne.s32.totalorder %s210, %s212
      %p219 = scmp.eq.s32.totalorder %s34, 1
      %p220 = por %p218, %p219
      %p221 = scmp.ne.s32.totalorder %s212, %s213
      %p222 = scmp.eq.s32.totalorder %s34, 0
      %p223 = por %p221, %p222
      %p224 = scmp.ne.s32.totalorder %s212, %s213
      %p225 = scmp.eq.s32.totalorder %s35, 1
      %p226 = por %p224, %p225
      %p228 = scmp.ne.s32.totalorder %s213, %s227
      %p229 = scmp.eq.s32.totalorder %s35, 0
      %p230 = por %p228, %p229
      %s232 = sadd.s32 %s231, 1
      %p235 = scmp.eq.s32.totalorder %s29, 1
      %p236 = scmp.ne.s32.totalorder %s231, %s233
      %p237 = scmp.eq.s32.totalorder %s29, 0
      %p238 = por %p236, %p237
      %p239 = scmp.ne.s32.totalorder %s231, %s233
      %p240 = scmp.eq.s32.totalorder %s34, 1
      %p241 = por %p239, %p240
      %p242 = scmp.ne.s32.totalorder %s233, %s234
      %p243 = scmp.eq.s32.totalorder %s34, 0
      %p244 = por %p242, %p243
      %p245 = scmp.ne.s32.totalorder %s233, %s234
      %p246 = scmp.eq.s32.totalorder %s35, 1
      %p247 = por %p245, %p246
      %p249 = scmp.ne.s32.totalorder %s234, %s248
      %p250 = scmp.eq.s32.totalorder %s35, 0
      %p251 = por %p249, %p250
      %s253 = sadd.s32 %s252, 1
      %p256 = scmp.eq.s32.totalorder %s29, 1
      %p257 = scmp.ne.s32.totalorder %s252, %s254
      %p258 = scmp.eq.s32.totalorder %s29, 0
      %p259 = por %p257, %p258
      %p260 = scmp.ne.s32.totalorder %s252, %s254
      %p261 = scmp.eq.s32.totalorder %s34, 1
      %p262 = por %p260, %p261
      %p263 = scmp.ne.s32.totalorder %s254, %s255
      %p264 = scmp.eq.s32.totalorder %s34, 0
      %p265 = por %p263, %p264
      %p266 = scmp.ne.s32.totalorder %s254, %s255
      %p267 = scmp.eq.s32.totalorder %s35, 1
      %p268 = por %p266, %p267
      %p270 = scmp.ne.s32.totalorder %s255, %s269
      %p271 = scmp.eq.s32.totalorder %s35, 0
      %p272 = por %p270, %p271
      %s274 = sadd.s32 %s273, 1
      %p277 = scmp.eq.s32.totalorder %s29, 1
      %p278 = scmp.ne.s32.totalorder %s273, %s275
      %p279 = scmp.eq.s32.totalorder %s29, 0
      %p280 = por %p278, %p279
      %p281 = scmp.ne.s32.totalorder %s273, %s275
      %p282 = scmp.eq.s32.totalorder %s34, 1
      %p283 = por %p281, %p282
      %p284 = scmp.ne.s32.totalorder %s275, %s276
      %p285 = scmp.eq.s32.totalorder %s34, 0
      %p286 = por %p284, %p285
      %p287 = scmp.ne.s32.totalorder %s275, %s276
      %p288 = scmp.eq.s32.totalorder %s35, 1
      %p289 = por %p287, %p288
      %p291 = scmp.ne.s32.totalorder %s276, %s290
      %p292 = scmp.eq.s32.totalorder %s35, 0
      %p293 = por %p291, %p292
      %s295 = sadd.s32 %s294, 1
      %p298 = scmp.eq.s32.totalorder %s29, 1
      %p299 = scmp.ne.s32.totalorder %s294, %s296
      %p300 = scmp.eq.s32.totalorder %s29, 0
      %p301 = por %p299, %p300
      %p302 = scmp.ne.s32.totalorder %s294, %s296
      %p303 = scmp.eq.s32.totalorder %s34, 1
      %p304 = por %p302, %p303
      %p305 = scmp.ne.s32.totalorder %s296, %s297
      %p306 = scmp.eq.s32.totalorder %s34, 0
      %p307 = por %p305, %p306
      %p308 = scmp.ne.s32.totalorder %s296, %s297
      %p309 = scmp.eq.s32.totalorder %s35, 1
      %p310 = por %p308, %p309
      %p312 = scmp.ne.s32.totalorder %s297, %s311
      %p313 = scmp.eq.s32.totalorder %s35, 0
      %p314 = por %p312, %p313
      %s316 = sadd.s32 %s315, 1
      %p319 = scmp.eq.s32.totalorder %s29, 1
      %p320 = scmp.ne.s32.totalorder %s315, %s317
      %p321 = scmp.eq.s32.totalorder %s29, 0
      %p322 = por %p320, %p321
      %p323 = scmp.ne.s32.totalorder %s315, %s317
      %p324 = scmp.eq.s32.totalorder %s34, 1
      %p325 = por %p323, %p324
      %p326 = scmp.ne.s32.totalorder %s317, %s318
      %p327 = scmp.eq.s32.totalorder %s34, 0
      %p328 = por %p326, %p327
      %p329 = scmp.ne.s32.totalorder %s317, %s318
      %p330 = scmp.eq.s32.totalorder %s35, 1
      %p331 = por %p329, %p330
      %p333 = scmp.ne.s32.totalorder %s318, %s332
      %p334 = scmp.eq.s32.totalorder %s35, 0
      %p335 = por %p333, %p334
      %s337 = sadd.s32 %s336, 1
      %p340 = scmp.eq.s32.totalorder %s29, 1
      %p341 = scmp.ne.s32.totalorder %s336, %s338
      %p342 = scmp.eq.s32.totalorder %s29, 0
      %p343 = por %p341, %p342
      %p344 = scmp.ne.s32.totalorder %s336, %s338
      %p345 = scmp.eq.s32.totalorder %s34, 1
      %p346 = por %p344, %p345
      %p347 = scmp.ne.s32.totalorder %s338, %s339
      %p348 = scmp.eq.s32.totalorder %s34, 0
      %p349 = por %p347, %p348
      %p350 = scmp.ne.s32.totalorder %s338, %s339
      %p351 = scmp.eq.s32.totalorder %s35, 1
      %p352 = por %p350, %p351
      %p354 = scmp.ne.s32.totalorder %s339, %s353
      %p355 = scmp.eq.s32.totalorder %s35, 0
      %p356 = por %p354, %p355
      %s357 = ssub.s32 %s29, %s36
      %p358 = scmp.eq.s32.totalorder %s357, 0
      %s360 = sadd.s32 %s359, 1
      %s361 = scalar_select %p358, %s359, %s360
      %p364 = pneg %p358
      %p365 = scmp.eq.s32.totalorder %s29, 1
      %p366 = por %p364, %p365
      %p367 = scmp.ne.s32.totalorder %s359, %s362
      %p368 = scmp.eq.s32.totalorder %s29, 0
      %p369 = por %p367, %p368
      %p370 = scmp.ne.s32.totalorder %s359, %s362
      %p371 = scmp.eq.s32.totalorder %s34, 1
      %p372 = por %p370, %p371
      %p373 = scmp.ne.s32.totalorder %s362, %s363
      %p374 = scmp.eq.s32.totalorder %s34, 0
      %p375 = por %p373, %p374
      %p376 = scmp.ne.s32.totalorder %s362, %s363
      %p377 = scmp.eq.s32.totalorder %s35, 1
      %p378 = por %p376, %p377
      %p380 = scmp.ne.s32.totalorder %s363, %s379
      %p381 = scmp.eq.s32.totalorder %s35, 0
      %p382 = por %p380, %p381
      %p383 = scmp.le.s32.totalorder 1, %s29
      %p384 = scmp.lt.s32.totalorder %s29, 3
      %p385 = pnand %p383, %p384
      %p386 = pneg %p385
      // Predicated region
      $region9: #{clip_forward.3} parent=5 // pred_check
        _
      $region10: #{clip_forward.3} parent=5 // pred_check_branch
        %388 = sbr.rel (%p385) target = $region12
      $region11: #{clip_forward.3} parent=5 // pred_region
        %s389 = ssub.s32 %s29, 1
        // Predicated region
        $region13: #{clip_forward.3} parent=11 // pred_check
          %p390 = pneg %p76
        $region14: #{clip_forward.3} parent=11 // pred_check_branch
          %392 = sbr.rel (%p390) target = $region16
        $region15: #{clip_forward.3} parent=11 // pred_region
          _
        $region16: #{clip_forward.3} parent=11 // pred_fallthru
          _
        // Predicated region
        $region17: #{clip_forward.3} parent=11 // pred_check
          %p393 = pneg %p97
        $region18: #{clip_forward.3} parent=11 // pred_check_branch
          %395 = sbr.rel (%p393) target = $region20
        $region19: #{clip_forward.3} parent=11 // pred_region
          _
        $region20: #{clip_forward.3} parent=11 // pred_fallthru
          _
        // Predicated region
        $region21: #{clip_forward.3} parent=11 // pred_check
          %p396 = pneg %p118
        $region22: #{clip_forward.3} parent=11 // pred_check_branch
          %398 = sbr.rel (%p396) target = $region24
        $region23: #{clip_forward.3} parent=11 // pred_region
          %400 = vsyncadd [#allocation6], 0
          %s401 = sshll.u32 %s3, 4
          %s402 = int_to_ptr.hbm [resolvable:$true] %s401
          %s403 = sshll.u32 [#allocation5], 4
          %s404 = int_to_ptr.vmem [resolvable:$true] %s403
          %409 = dma.hbm_to_vmem [thread:$0]  %s402, 3072, %s404, [#allocation6], 192, 192, 12
        $region24: #{clip_forward.3} parent=11 // pred_fallthru
          _
        // Predicated region
        $region25: #{clip_forward.3} parent=11 // pred_check
          %p410 = pneg %p139
        $region26: #{clip_forward.3} parent=11 // pred_check_branch
          %412 = sbr.rel (%p410) target = $region28
        $region27: #{clip_forward.3} parent=11 // pred_region
          _
        $region28: #{clip_forward.3} parent=11 // pred_fallthru
          _
        // Predicated region
        $region29: #{clip_forward.3} parent=11 // pred_check
          %p413 = pneg %p160
        $region30: #{clip_forward.3} parent=11 // pred_check_branch
          %415 = sbr.rel (%p413) target = $region32
        $region31: #{clip_forward.3} parent=11 // pred_region
          %417 = vsyncadd [#allocation6], 0
          %s418 = sshll.u32 %s5, 4
          %s419 = int_to_ptr.hbm [resolvable:$true] %s418
          %s420 = sshll.u32 [#allocation7], 4
          %s421 = int_to_ptr.vmem [resolvable:$true] %s420
          %426 = dma.hbm_to_vmem [thread:$0]  %s419, 1024, %s421, [#allocation6], 64, 64, 4
        $region32: #{clip_forward.3} parent=11 // pred_fallthru
          _
        // Predicated region
        $region33: #{clip_forward.3} parent=11 // pred_check
          %p427 = pneg %p181
        $region34: #{clip_forward.3} parent=11 // pred_check_branch
          %429 = sbr.rel (%p427) target = $region36
        $region35: #{clip_forward.3} parent=11 // pred_region
          _
        $region36: #{clip_forward.3} parent=11 // pred_fallthru
          _
        // Predicated region
        $region37: #{clip_forward.3} parent=11 // pred_check
          %p430 = pneg %p202
        $region38: #{clip_forward.3} parent=11 // pred_check_branch
          %432 = sbr.rel (%p430) target = $region40
        $region39: #{clip_forward.3} parent=11 // pred_region
          _
        $region40: #{clip_forward.3} parent=11 // pred_fallthru
          _
        // Predicated region
        $region41: #{clip_forward.3} parent=11 // pred_check
          %p433 = pneg %p223
        $region42: #{clip_forward.3} parent=11 // pred_check_branch
          %435 = sbr.rel (%p433) target = $region44
        $region43: #{clip_forward.3} parent=11 // pred_region
          _
        $region44: #{clip_forward.3} parent=11 // pred_fallthru
          _
        // Predicated region
        $region45: #{clip_forward.3} parent=11 // pred_check
          %p436 = pneg %p244
        $region46: #{clip_forward.3} parent=11 // pred_check_branch
          %438 = sbr.rel (%p436) target = $region48
        $region47: #{clip_forward.3} parent=11 // pred_region
          %440 = vsyncadd [#allocation9], 0
          %s441 = sshll.u32 %s9, 4
          %s442 = int_to_ptr.hbm [resolvable:$true] %s441
          %s443 = sshll.u32 [#allocation8], 4
          %s444 = int_to_ptr.vmem [resolvable:$true] %s443
          %449 = dma.hbm_to_vmem [thread:$0]  %s442, 4096, %s444, [#allocation9], 256, 256, 16
        $region48: #{clip_forward.3} parent=11 // pred_fallthru
          _
        // Predicated region
        $region49: #{clip_forward.3} parent=11 // pred_check
          %p450 = pneg %p265
        $region50: #{clip_forward.3} parent=11 // pred_check_branch
          %452 = sbr.rel (%p450) target = $region52
        $region51: #{clip_forward.3} parent=11 // pred_region
          _
        $region52: #{clip_forward.3} parent=11 // pred_fallthru
          _
        // Predicated region
        $region53: #{clip_forward.3} parent=11 // pred_check
          %p453 = pneg %p286
        $region54: #{clip_forward.3} parent=11 // pred_check_branch
          %455 = sbr.rel (%p453) target = $region56
        $region55: #{clip_forward.3} parent=11 // pred_region
          %457 = vsyncadd [#allocation9], 0
          %s458 = sshll.u32 %s11, 4
          %s459 = int_to_ptr.hbm [resolvable:$true] %s458
          %s460 = sshll.u32 [#allocation10], 4
          %s461 = int_to_ptr.vmem [resolvable:$true] %s460
          %466 = dma.hbm_to_vmem [thread:$0]  %s459, 4096, %s461, [#allocation9], 64, 64, 4
        $region56: #{clip_forward.3} parent=11 // pred_fallthru
          _
        // Predicated region
        $region57: #{clip_forward.3} parent=11 // pred_check
          %p467 = pneg %p307
        $region58: #{clip_forward.3} parent=11 // pred_check_branch
          %469 = sbr.rel (%p467) target = $region60
        $region59: #{clip_forward.3} parent=11 // pred_region
          _
        $region60: #{clip_forward.3} parent=11 // pred_fallthru
          _
        // Predicated region
        $region61: #{clip_forward.3} parent=11 // pred_check
          %p470 = pneg %p328
        $region62: #{clip_forward.3} parent=11 // pred_check_branch
          %472 = sbr.rel (%p470) target = $region64
        $region63: #{clip_forward.3} parent=11 // pred_region
          _
        $region64: #{clip_forward.3} parent=11 // pred_fallthru
          _
        // Predicated region
        $region65: #{clip_forward.3} parent=11 // pred_check
          %p473 = pneg %p349
        $region66: #{clip_forward.3} parent=11 // pred_check_branch
          %475 = sbr.rel (%p473) target = $region68
        $region67: #{clip_forward.3} parent=11 // pred_region
          _
        $region68: #{clip_forward.3} parent=11 // pred_fallthru
          _
      $region12: #{clip_forward.3} parent=5 // pred_fallthru
        _
      %p476 = scmp.lt.s32.totalorder %s29, 2
      // Predicated region
      $region69: #{clip_forward.3} parent=5 // pred_check
        %p477 = pneg %p476
      $region70: #{clip_forward.3} parent=5 // pred_check_branch
        %479 = sbr.rel (%p477) target = $region72
      $region71: #{clip_forward.3} parent=5 // pred_region
        // Predicated region
        $region73: #{clip_forward.3} parent=71 // pred_check
          %p480 = pneg %p49
        $region74: #{clip_forward.3} parent=71 // pred_check_branch
          %482 = sbr.rel (%p480) target = $region76
        $region75: #{clip_forward.3} parent=71 // pred_region
          %s483 = sand.u32 %s39, 1
          %s484 = scalar_lea.sflag [#allocation3], %s483
          %s485 = sand.u32 %s39, 1
          %s486 = smul.addr %s485, 16
          %s487 = scalar_lea.vmem [#allocation2], %s486
          %489 = vsyncadd %s484, 0
          %s490 = smul.addr %s29, 2
          %s491 = smul.addr %s490, 8
          %s492 = scalar_lea.hbm %s0, %s491
          %s493 = sshll.u32 %s492, 4
          %s494 = int_to_ptr.hbm [resolvable:$true] %s493
          %s495 = sshll.u32 %s487, 4
          %s496 = int_to_ptr.vmem [resolvable:$true] %s495
          %501 = dma.hbm_to_vmem [thread:$0]  %s494, 256, %s496, %s484, 128, 128, 8
        $region76: #{clip_forward.3} parent=71 // pred_fallthru
          _
      $region72: #{clip_forward.3} parent=5 // pred_fallthru
        _
      %p502 = scmp.le.s32.totalorder 1, %s29
      %p503 = scmp.lt.s32.totalorder %s29, 3
      %p504 = pnand %p502, %p503
      %p505 = pneg %p504
      // Predicated region
      $region77: #{clip_forward.3} parent=5 // pred_check
        _
      $region78: #{clip_forward.3} parent=5 // pred_check_branch
        %507 = sbr.rel (%p504) target = $region80
      $region79: #{clip_forward.3} parent=5 // pred_region
        %s508 = ssub.s32 %s29, 1
        %s509 = sand.u32 %s42, 1
        %s510 = scalar_lea.sflag [#allocation3], %s509
        %s511 = sand.u32 %s42, 1
        %s512 = smul.addr %s511, 16
        %s513 = scalar_lea.vmem [#allocation2], %s512
        // Predicated region
        $region81: #{clip_forward.3} parent=79 // pred_check
          %p514 = pneg %p55
        $region82: #{clip_forward.3} parent=79 // pred_check_branch
          %516 = sbr.rel (%p514) target = $region84
        $region83: #{clip_forward.3} parent=79 // pred_region
          %518 = dma.done %s510, 256
        $region84: #{clip_forward.3} parent=79 // pred_fallthru
          _
        // Predicated region
        $region85: #{clip_forward.3} parent=79 // pred_check
          %p519 = pneg %p118
        $region86: #{clip_forward.3} parent=79 // pred_check_branch
          %521 = sbr.rel (%p519) target = $region88
        $region87: #{clip_forward.3} parent=79 // pred_region
          %523 = dma.done [#allocation6], 3072
        $region88: #{clip_forward.3} parent=79 // pred_fallthru
          _
        // Predicated region
        $region89: #{clip_forward.3} parent=79 // pred_check
          %p524 = pneg %p160
        $region90: #{clip_forward.3} parent=79 // pred_check_branch
          %526 = sbr.rel (%p524) target = $region92
        $region91: #{clip_forward.3} parent=79 // pred_region
          %528 = dma.done [#allocation6], 1024
        $region92: #{clip_forward.3} parent=79 // pred_fallthru
          _
        // Predicated region
        $region93: #{clip_forward.3} parent=79 // pred_check
          %p529 = pneg %p244
        $region94: #{clip_forward.3} parent=79 // pred_check_branch
          %531 = sbr.rel (%p529) target = $region96
        $region95: #{clip_forward.3} parent=79 // pred_region
          %533 = dma.done [#allocation9], 4096
        $region96: #{clip_forward.3} parent=79 // pred_fallthru
          _
        // Predicated region
        $region97: #{clip_forward.3} parent=79 // pred_check
          %p534 = pneg %p286
        $region98: #{clip_forward.3} parent=79 // pred_check_branch
          %536 = sbr.rel (%p534) target = $region100
        $region99: #{clip_forward.3} parent=79 // pred_region
          %538 = dma.done [#allocation9], 4096
        $region100: #{clip_forward.3} parent=79 // pred_fallthru
          _
        %s539 = sand.u32 %s42, 1
        %s540 = scalar_lea.sflag [#allocation3], %s539
        %s541 = sand.u32 %s42, 1
        %s542 = smul.addr %s541, 16
        %s543 = scalar_lea.vmem [#allocation2], %s542
        %p544 = pneg %p55
        %p545 = pneg %p52
        %p546 = pneg %p76
        %p547 = pneg %p73
        %p548 = pneg %p97
        %p549 = pneg %p94
        %p550 = pneg %p118
        %p551 = pneg %p115
        %p552 = pneg %p139
        %p553 = pneg %p136
        %p554 = pneg %p160
        %p555 = pneg %p157
        %p556 = pneg %p181
        %p557 = pneg %p178
        %p558 = pneg %p202
        %p559 = pneg %p199
        %p560 = pneg %p223
        %p561 = pneg %p220
        %p562 = pneg %p244
        %p563 = pneg %p241
        %p564 = pneg %p265
        %p565 = pneg %p262
        %p566 = pneg %p286
        %p567 = pneg %p283
        %p568 = pneg %p307
        %p569 = pneg %p304
        %p570 = pneg %p328
        %p571 = pneg %p325
        %p572 = pneg %p349
        %p573 = pneg %p346
        %p574 = pneg %p375
        %p575 = pneg %p372
        %s576 = sand.u32 %s362, 1
        %s577 = scalar_lea.sflag [#allocation4], %s576
        %s578 = sand.u32 %s362, 1
        %s579 = smul.addr %s578, 16
        %s580 = scalar_lea.vmem [#allocation11], %s579
        %v582 = vld [vmem:[%s513] sm:$0xff]
        %v583 = vld [vmem:[%s513 + $0x8] sm:$0xff]
        %v584 = vld [vmem:[%s1] sm:$0x1]
        %v585 = vld [vmem:[%s2] sm:$0x1]
        %586 = vadd.xlane.f32.xlu0 %v582
        %v587 = vpop.xlane.xlu0 %586
        %588 = vadd.xlane.f32.xlu0 %v583
        %v589 = vpop.xlane.xlu0 %588
        %v590 = vrcp.pop 128.0
        %v591 = vmul.f32 128.0, %v590
        %v592 = vsub.f32 1.0, %v591
        %v593 = vmul.f32 %v590, %v592
        %v594 = vadd.f32 %v590, %v593
        %vm595 = vweird.f32 %v590
        %v596 = vsel %vm595, %v590, %v594
        %v597 = vmul.f32 %v587, %v596
        %v598 = vmul.f32 %v589, %v596
        %v599 = vsub.f32 %v582, %v597
        %v600 = vsub.f32 %v583, %v598
        %v601 = vmul.f32 %v599, %v599
        %v602 = vmul.f32 %v600, %v600
        %603 = vadd.xlane.f32.xlu0 %v601
        %v604 = vpop.xlane.xlu0 %603
        %605 = vadd.xlane.f32.xlu0 %v602
        %v606 = vpop.xlane.xlu0 %605
        %v607 = vmul.f32 %v604, %v596
        %v608 = vmul.f32 %v606, %v596
        %v609 = vadd.f32 %v607, 1e-05
        %v610 = vadd.f32 %v608, 1e-05
        %v611 = vrsqrt.pop %v609
        %v612 = vmul.f32 %v611, %v609
        %v613 = vmul.f32 %v612, %v611
        %v614 = vmul.f32 0.5, %v613
        %v615 = vsub.f32 1.5, %v614
        %v616 = vmul.f32 %v611, %v615
        %vm617 = vweird.f32 %v609
        %vm618 = vweird.f32 %v611
        %vm619 = vmor %vm617, %vm618
        %v620 = vsel %vm619, %v611, %v616
        %v621 = vrsqrt.pop %v610
        %v622 = vmul.f32 %v621, %v610
        %v623 = vmul.f32 %v622, %v621
        %v624 = vmul.f32 0.5, %v623
        %v625 = vsub.f32 1.5, %v624
        %v626 = vmul.f32 %v621, %v625
        %vm627 = vweird.f32 %v610
        %vm628 = vweird.f32 %v621
        %vm629 = vmor %vm627, %vm628
        %v630 = vsel %vm629, %v621, %v626
        %v631 = vmul.f32 %v599, %v620
        %v632 = vmul.f32 %v600, %v630
        %v634 = vperm.slane %v584, 0
        %v636 = vmul.f32 %v631, %v634
        %v637 = vmul.f32 %v632, %v634
        %v639 = vperm.slane %v585, 0
        %v641 = vadd.f32 %v636, %v639
        %v642 = vadd.f32 %v637, %v639
        %v643 = vpack.c.bf16 %v642, %v641
        %v644 = vld [vmem:[#allocation5] sm:$0xff]
        %v645 = vld [vmem:[#allocation5 + $0x8] sm:$0xf]
        %v646 = vld [vmem:[#allocation5 + $0xc] sm:$0xff]
        %v647 = vld [vmem:[#allocation5 + $0x14] sm:$0xf]
        %v648 = vld [vmem:[#allocation5 + $0x18] sm:$0xff]
        %v649 = vld [vmem:[#allocation5 + $0x20] sm:$0xf]
        %v650 = vld [vmem:[#allocation5 + $0x24] sm:$0xff]
        %v651 = vld [vmem:[#allocation5 + $0x2c] sm:$0xf]
        %v652 = vld [vmem:[#allocation5 + $0x30] sm:$0xff]
        %v653 = vld [vmem:[#allocation5 + $0x38] sm:$0xf]
        %v654 = vld [vmem:[#allocation5 + $0x3c] sm:$0xff]
        %v655 = vld [vmem:[#allocation5 + $0x44] sm:$0xf]
        %v656 = vld [vmem:[#allocation5 + $0x48] sm:$0xff]
        %v657 = vld [vmem:[#allocation5 + $0x50] sm:$0xf]
        %v658 = vld [vmem:[#allocation5 + $0x54] sm:$0xff]
        %v659 = vld [vmem:[#allocation5 + $0x5c] sm:$0xf]
        %v660 = vld [vmem:[#allocation5 + $0x60] sm:$0xff]
        %v661 = vld [vmem:[#allocation5 + $0x68] sm:$0xf]
        %v662 = vld [vmem:[#allocation5 + $0x6c] sm:$0xff]
        %v663 = vld [vmem:[#allocation5 + $0x74] sm:$0xf]
        %v664 = vld [vmem:[#allocation5 + $0x78] sm:$0xff]
        %v665 = vld [vmem:[#allocation5 + $0x80] sm:$0xf]
        %v666 = vld [vmem:[#allocation5 + $0x84] sm:$0xff]
        %v667 = vld [vmem:[#allocation5 + $0x8c] sm:$0xf]
        %v668 = vld [vmem:[#allocation5 + $0x90] sm:$0xff]
        %v669 = vld [vmem:[#allocation5 + $0x98] sm:$0xf]
        %v670 = vld [vmem:[#allocation5 + $0x9c] sm:$0xff]
        %v671 = vld [vmem:[#allocation5 + $0xa4] sm:$0xf]
        %v672 = vld [vmem:[#allocation5 + $0xa8] sm:$0xff]
        %v673 = vld [vmem:[#allocation5 + $0xb0] sm:$0xf]
        %v674 = vld [vmem:[#allocation5 + $0xb4] sm:$0xff]
        %v675 = vld [vmem:[#allocation5 + $0xbc] sm:$0xf]
        %v676 = vld [vmem:[%s4] sm:$0x7]
        %v678 = vperm.slane %v676, 0
        %v679 = vperm.slane %v676, 1
        %v680 = vperm.slane %v676, 2
        %v716 = vunpack.c.l.b16 %v644
        %v717 = vunpack.c.h.b16 %v644
        %v718 = vunpack.c.l.b16 %v645
        %v719 = vunpack.c.l.b16 %v646
        %v720 = vunpack.c.h.b16 %v646
        %v721 = vunpack.c.l.b16 %v647
        %v722 = vunpack.c.l.b16 %v648
        %v723 = vunpack.c.h.b16 %v648
        %v724 = vunpack.c.l.b16 %v649
        %v725 = vunpack.c.l.b16 %v650
        %v726 = vunpack.c.h.b16 %v650
        %v727 = vunpack.c.l.b16 %v651
        %v728 = vunpack.c.l.b16 %v652
        %v729 = vunpack.c.h.b16 %v652
        %v730 = vunpack.c.l.b16 %v653
        %v731 = vunpack.c.l.b16 %v654
        %v732 = vunpack.c.h.b16 %v654
        %v733 = vunpack.c.l.b16 %v655
        %v734 = vunpack.c.l.b16 %v656
        %v735 = vunpack.c.h.b16 %v656
        %v736 = vunpack.c.l.b16 %v657
        %v737 = vunpack.c.l.b16 %v658
        %v738 = vunpack.c.h.b16 %v658
        %v739 = vunpack.c.l.b16 %v659
        %v740 = vunpack.c.l.b16 %v660
        %v741 = vunpack.c.h.b16 %v660
        %v742 = vunpack.c.l.b16 %v661
        %v743 = vunpack.c.l.b16 %v662
        %v744 = vunpack.c.h.b16 %v662
        %v745 = vunpack.c.l.b16 %v663
        %v746 = vunpack.c.l.b16 %v664
        %v747 = vunpack.c.h.b16 %v664
        %v748 = vunpack.c.l.b16 %v665
        %v749 = vunpack.c.l.b16 %v666
        %v750 = vunpack.c.h.b16 %v666
        %v751 = vunpack.c.l.b16 %v667
        %v752 = vunpack.c.l.b16 %v668
        %v753 = vunpack.c.h.b16 %v668
        %v754 = vunpack.c.l.b16 %v669
        %v755 = vunpack.c.l.b16 %v670
        %v756 = vunpack.c.h.b16 %v670
        %v757 = vunpack.c.l.b16 %v671
        %v758 = vunpack.c.l.b16 %v672
        %v759 = vunpack.c.h.b16 %v672
        %v760 = vunpack.c.l.b16 %v673
        %v761 = vunpack.c.l.b16 %v674
        %v762 = vunpack.c.h.b16 %v674
        %v763 = vunpack.c.l.b16 %v675
        %v764 = vpack.c.b16 %v719, %v716
        %v765 = vpack.c.b16 %v720, %v717
        %v766 = vpack.c.b16 %v721, %v718
        %v767 = vpack.c.b16 %v725, %v722
        %v768 = vpack.c.b16 %v726, %v723
        %v769 = vpack.c.b16 %v727, %v724
        %v770 = vpack.c.b16 %v731, %v728
        %v771 = vpack.c.b16 %v732, %v729
        %v772 = vpack.c.b16 %v733, %v730
        %v773 = vpack.c.b16 %v737, %v734
        %v774 = vpack.c.b16 %v738, %v735
        %v775 = vpack.c.b16 %v739, %v736
        %v776 = vpack.c.b16 %v743, %v740
        %v777 = vpack.c.b16 %v744, %v741
        %v778 = vpack.c.b16 %v745, %v742
        %v779 = vpack.c.b16 %v749, %v746
        %v780 = vpack.c.b16 %v750, %v747
        %v781 = vpack.c.b16 %v751, %v748
        %v782 = vpack.c.b16 %v755, %v752
        %v783 = vpack.c.b16 %v756, %v753
        %v784 = vpack.c.b16 %v757, %v754
        %v785 = vpack.c.b16 %v761, %v758
        %v786 = vpack.c.b16 %v762, %v759
        %v787 = vpack.c.b16 %v763, %v760
        %812 = vmatpush.bf16.msra.mxu0 %v785
        %813 = vmatpush.bf16.msra.mxu0 %v782
        %814 = vmatpush.bf16.msra.mxu0 %v779
        %815 = vmatpush.bf16.msra.mxu0 %v776
        %816 = vmatpush.bf16.msra.mxu0 %v773
        %817 = vmatpush.bf16.msra.mxu0 %v770
        %818 = vmatpush.bf16.msra.mxu0 %v767
        %819 = vmatpush.bf16.msra.mxu0 %v764
        %820 = vmatmul.bf16.gmra.mxu0 %v643
        %v821 = vpop.f32.mrf.mxu0
        %v822 = vadd.f32 %v678, %v821
        %v823 = vpop.f32.mrf.mxu0
        %v824 = vadd.f32 %v678, %v823
        %825 = vdwg.mxu0
        %826 = vmatpush.bf16.msra.mxu0 %v786
        %827 = vmatpush.bf16.msra.mxu0 %v783
        %828 = vmatpush.bf16.msra.mxu0 %v780
        %829 = vmatpush.bf16.msra.mxu0 %v777
        %830 = vmatpush.bf16.msra.mxu0 %v774
        %831 = vmatpush.bf16.msra.mxu0 %v771
        %832 = vmatpush.bf16.msra.mxu0 %v768
        %833 = vmatpush.bf16.msra.mxu0 %v765
        %834 = vmatmul.bf16.gmra.mxu0 %v643
        %v835 = vpop.f32.mrf.mxu0
        %v836 = vadd.f32 %v679, %v835
        %v837 = vpop.f32.mrf.mxu0
        %v838 = vadd.f32 %v679, %v837
        %839 = vdwg.mxu0
        %840 = vmatpush.bf16.msra.mxu0 %v787
        %841 = vmatpush.bf16.msra.mxu0 %v784
        %842 = vmatpush.bf16.msra.mxu0 %v781
        %843 = vmatpush.bf16.msra.mxu0 %v778
        %844 = vmatpush.bf16.msra.mxu0 %v775
        %845 = vmatpush.bf16.msra.mxu0 %v772
        %846 = vmatpush.bf16.msra.mxu0 %v769
        %847 = vmatpush.bf16.msra.mxu0 %v766
        %848 = vmatmul.bf16.gmra.mxu0 %v643
        %v849 = vpop.f32.mrf.mxu0
        %v850 = vadd.f32 %v680, %v849
        %v851 = vpop.f32.mrf.mxu0
        %v852 = vadd.f32 %v680, %v851
        %853 = vdwg.mxu0
        %v854 = vlaneseq
        %v855 = vshrl.u32 %v854, 7
        %v856 = vadd.s32 %v855, 8
        %v857 = vlaneseq
        %v858 = vand.u32 %v857, 127
        %vm859 = vcmp.gt.s32.totalorder %v858, %v855
        %vm860 = vcmp.gt.s32.totalorder %v858, %v856
        %v861 = vmul.f32 %v822, 0.17677669
        %v862 = vmul.f32 %v824, 0.17677669
        %v863 = vpack.c.bf16 %v862, %v861
        %v864 = vpack.c.bf16 %v838, %v836
        %v865 = vpack.c.bf16 %v852, %v850
        %vm866 = vcmask 261120
        %v868 = vsel %vm866, %v863, 0
        %v871 = vsel %vm866, %v864, 0
        %873 = vmatpush.bf16.xpose.msra.mxu0 0
        %874 = vmatpush.bf16.xpose.msra.mxu0 0
        %875 = vmatpush.bf16.xpose.msra.mxu0 0
        %876 = vmatpush.bf16.xpose.msra.mxu0 0
        %877 = vmatpush.bf16.xpose.msra.mxu0 0
        %878 = vmatpush.bf16.xpose.msra.mxu0 0
        %879 = vmatpush.bf16.xpose.msra.mxu0 0
        %880 = vmatpush.bf16.xpose.msra.mxu0 %v871
        %881 = vmatmul.bf16.gmra.mxu0 %v868
        %v882 = vpop.f32.mrf.mxu0
        %v883 = vadd.f32 0.0, %v882
        %v884 = vpop.f32.mrf.mxu0
        %v885 = vadd.f32 0.0, %v884
        %886 = vdwg.mxu0
        %v887 = vsel %vm859, -1e+30, %v883
        %v888 = vsel %vm860, -1e+30, %v885
        %vm889 = vcmask 130048
        %v890 = vsel %vm889, %v887, -inf
        %891 = vmax.xlane.f32.xlu0 %v890
        %v892 = vpop.xlane.xlu0 %891
        %v893 = vsel %vm889, %v888, -inf
        %894 = vmax.xlane.f32.xlu0 %v893
        %v895 = vpop.xlane.xlu0 %894
        %v896 = vsub.f32 %v887, %v892
        %v897 = vsub.f32 %v888, %v895
        %v898 = vmul.f32 %v896, 1.442695
        %v899 = vpow.pop %v898
        %v900 = vmul.f32 %v897, 1.442695
        %v901 = vpow.pop %v900
        %v902 = vsel %vm889, %v899, 0.0
        %903 = vadd.xlane.f32.xlu0 %v902
        %v904 = vpop.xlane.xlu0 %903
        %v905 = vsel %vm889, %v901, 0.0
        %906 = vadd.xlane.f32.xlu0 %v905
        %v907 = vpop.xlane.xlu0 %906
        %v908 = vrcp.pop %v904
        %v909 = vrcp.pop %v907
        %v910 = vmul.f32 %v899, %v908
        %v911 = vmul.f32 %v901, %v909
        %v912 = vpack.c.bf16 %v911, %v910
        %v914 = vsel %vm889, %v912, 0
        %916 = vmatpush.bf16.msra.mxu0 0
        %917 = vmatpush.bf16.msra.mxu0 0
        %918 = vmatpush.bf16.msra.mxu0 0
        %919 = vmatpush.bf16.msra.mxu0 0
        %920 = vmatpush.bf16.msra.mxu0 0
        %921 = vmatpush.bf16.msra.mxu0 0
        %922 = vmatpush.bf16.msra.mxu0 0
        %923 = vmatpush.bf16.msra.mxu0 %v865
        %924 = vmatmul.bf16.gmra.mxu0 %v914
        %v925 = vpop.f32.mrf.mxu0
        %v926 = vadd.f32 0.0, %v925
        %v927 = vpop.f32.mrf.mxu0
        %v928 = vadd.f32 0.0, %v927
        %929 = vdwg.mxu0
        %v930 = vpack.c.bf16 %v928, %v926
        %v931 = vld [vmem:[#allocation7] sm:$0xf]
        %v932 = vld [vmem:[#allocation7 + $0x4] sm:$0xf]
        %v933 = vld [vmem:[#allocation7 + $0x8] sm:$0xf]
        %v934 = vld [vmem:[#allocation7 + $0xc] sm:$0xf]
        %936 = vrot.lane.b32.xlu0 %v863, 96
        %v937 = vpop.permute.xlu0 %936
        %939 = vrot.lane.b32.xlu0 %v864, 96
        %v940 = vpop.permute.xlu0 %939
        %v942 = vsel %vm866, %v937, 0
        %v945 = vsel %vm866, %v940, 0
        %947 = vmatpush.bf16.xpose.msra.mxu0 0
        %948 = vmatpush.bf16.xpose.msra.mxu0 0
        %949 = vmatpush.bf16.xpose.msra.mxu0 0
        %950 = vmatpush.bf16.xpose.msra.mxu0 0
        %951 = vmatpush.bf16.xpose.msra.mxu0 0
        %952 = vmatpush.bf16.xpose.msra.mxu0 0
        %953 = vmatpush.bf16.xpose.msra.mxu0 0
        %954 = vmatpush.bf16.xpose.msra.mxu0 %v945
        %955 = vmatmul.bf16.gmra.mxu0 %v942
        %v956 = vpop.f32.mrf.mxu0
        %v957 = vadd.f32 0.0, %v956
        %v958 = vpop.f32.mrf.mxu0
        %v959 = vadd.f32 0.0, %v958
        %960 = vdwg.mxu0
        %v961 = vsel %vm859, -1e+30, %v957
        %v962 = vsel %vm860, -1e+30, %v959
        %v963 = vsel %vm889, %v961, -inf
        %964 = vmax.xlane.f32.xlu0 %v963
        %v965 = vpop.xlane.xlu0 %964
        %v966 = vsel %vm889, %v962, -inf
        %967 = vmax.xlane.f32.xlu0 %v966
        %v968 = vpop.xlane.xlu0 %967
        %v969 = vsub.f32 %v961, %v965
        %v970 = vsub.f32 %v962, %v968
        %v971 = vmul.f32 %v969, 1.442695
        %v972 = vpow.pop %v971
        %v973 = vmul.f32 %v970, 1.442695
        %v974 = vpow.pop %v973
        %v975 = vsel %vm889, %v972, 0.0
        %976 = vadd.xlane.f32.xlu0 %v975
        %v977 = vpop.xlane.xlu0 %976
        %v978 = vsel %vm889, %v974, 0.0
        %979 = vadd.xlane.f32.xlu0 %v978
        %v980 = vpop.xlane.xlu0 %979
        %v981 = vrcp.pop %v977
        %v982 = vrcp.pop %v980
        %v983 = vmul.f32 %v972, %v981
        %v984 = vmul.f32 %v974, %v982
        %v985 = vpack.c.bf16 %v984, %v983
        %987 = vrot.lane.b32.xlu0 %v865, 96
        %v988 = vpop.permute.xlu0 %987
        %v991 = vsel %vm889, %v985, 0
        %993 = vmatpush.bf16.msra.mxu0 0
        %994 = vmatpush.bf16.msra.mxu0 0
        %995 = vmatpush.bf16.msra.mxu0 0
        %996 = vmatpush.bf16.msra.mxu0 0
        %997 = vmatpush.bf16.msra.mxu0 0
        %998 = vmatpush.bf16.msra.mxu0 0
        %999 = vmatpush.bf16.msra.mxu0 0
        %1000 = vmatpush.bf16.msra.mxu0 %v988
        %1001 = vmatmul.bf16.gmra.mxu0 %v991
        %v1002 = vpop.f32.mrf.mxu0
        %v1003 = vadd.f32 0.0, %v1002
        %v1004 = vpop.f32.mrf.mxu0
        %v1005 = vadd.f32 0.0, %v1004
        %1006 = vdwg.mxu0
        %v1007 = vpack.c.bf16 %v1005, %v1003
        %s1008 = scalar_lea.vmem [#allocation7], 16
        %v1009 = vld [vmem:[%s1008] sm:$0xf]
        %v1010 = vld [vmem:[%s1008 + $0x4] sm:$0xf]
        %v1011 = vld [vmem:[%s1008 + $0x8] sm:$0xf]
        %v1012 = vld [vmem:[%s1008 + $0xc] sm:$0xf]
        %v1017 = vunpack.c.l.b16 %v1009
        %v1018 = vunpack.c.l.b16 %v1010
        %v1019 = vunpack.c.l.b16 %v1011
        %v1020 = vunpack.c.l.b16 %v1012
        %v1021 = vpack.c.b16 %v1018, %v1017
        %v1022 = vpack.c.b16 %v1020, %v1019
        %v1026 = vsel %vm866, %v1007, 0
        %1028 = vmatpush.bf16.msra.mxu0 0
        %1029 = vmatpush.bf16.msra.mxu0 0
        %1030 = vmatpush.bf16.msra.mxu0 0
        %1031 = vmatpush.bf16.msra.mxu0 0
        %1032 = vmatpush.bf16.msra.mxu0 0
        %1033 = vmatpush.bf16.msra.mxu0 0
        %1034 = vmatpush.bf16.msra.mxu0 %v1022
        %1035 = vmatpush.bf16.msra.mxu0 %v1021
        %1036 = vmatmul.bf16.gmra.mxu0 %v1026
        %v1037 = vpop.f32.mrf.mxu0
        %v1038 = vadd.f32 0.0, %v1037
        %v1039 = vpop.f32.mrf.mxu0
        %v1040 = vadd.f32 0.0, %v1039
        %1041 = vdwg.mxu0
        %v1046 = vunpack.c.l.b16 %v931
        %v1047 = vunpack.c.l.b16 %v932
        %v1048 = vunpack.c.l.b16 %v933
        %v1049 = vunpack.c.l.b16 %v934
        %v1050 = vpack.c.b16 %v1047, %v1046
        %v1051 = vpack.c.b16 %v1049, %v1048
        %v1055 = vsel %vm866, %v930, 0
        %1057 = vmatpush.bf16.msra.mxu0 0
        %1058 = vmatpush.bf16.msra.mxu0 0
        %1059 = vmatpush.bf16.msra.mxu0 0
        %1060 = vmatpush.bf16.msra.mxu0 0
        %1061 = vmatpush.bf16.msra.mxu0 0
        %1062 = vmatpush.bf16.msra.mxu0 0
        %1063 = vmatpush.bf16.msra.mxu0 %v1051
        %1064 = vmatpush.bf16.msra.mxu0 %v1050
        %1065 = vmatmul.bf16.gmra.mxu0 %v1055
        %v1066 = vpop.f32.mrf.mxu0
        %v1067 = vadd.f32 %v1038, %v1066
        %v1068 = vpop.f32.mrf.mxu0
        %v1069 = vadd.f32 %v1040, %v1068
        %1070 = vdwg.mxu0
        %1071 = vrot.lane.b32.xlu0 %v863, 64
        %v1072 = vpop.permute.xlu0 %1071
        %1073 = vrot.lane.b32.xlu0 %v864, 64
        %v1074 = vpop.permute.xlu0 %1073
        %v1076 = vsel %vm866, %v1072, 0
        %v1079 = vsel %vm866, %v1074, 0
        %1081 = vmatpush.bf16.xpose.msra.mxu0 0
        %1082 = vmatpush.bf16.xpose.msra.mxu0 0
        %1083 = vmatpush.bf16.xpose.msra.mxu0 0
        %1084 = vmatpush.bf16.xpose.msra.mxu0 0
        %1085 = vmatpush.bf16.xpose.msra.mxu0 0
        %1086 = vmatpush.bf16.xpose.msra.mxu0 0
        %1087 = vmatpush.bf16.xpose.msra.mxu0 0
        %1088 = vmatpush.bf16.xpose.msra.mxu0 %v1079
        %1089 = vmatmul.bf16.gmra.mxu0 %v1076
        %v1090 = vpop.f32.mrf.mxu0
        %v1091 = vadd.f32 0.0, %v1090
        %v1092 = vpop.f32.mrf.mxu0
        %v1093 = vadd.f32 0.0, %v1092
        %1094 = vdwg.mxu0
        %v1095 = vsel %vm859, -1e+30, %v1091
        %v1096 = vsel %vm860, -1e+30, %v1093
        %v1097 = vsel %vm889, %v1095, -inf
        %1098 = vmax.xlane.f32.xlu0 %v1097
        %v1099 = vpop.xlane.xlu0 %1098
        %v1100 = vsel %vm889, %v1096, -inf
        %1101 = vmax.xlane.f32.xlu0 %v1100
        %v1102 = vpop.xlane.xlu0 %1101
        %v1103 = vsub.f32 %v1095, %v1099
        %v1104 = vsub.f32 %v1096, %v1102
        %v1105 = vmul.f32 %v1103, 1.442695
        %v1106 = vpow.pop %v1105
        %v1107 = vmul.f32 %v1104, 1.442695
        %v1108 = vpow.pop %v1107
        %v1109 = vsel %vm889, %v1106, 0.0
        %1110 = vadd.xlane.f32.xlu0 %v1109
        %v1111 = vpop.xlane.xlu0 %1110
        %v1112 = vsel %vm889, %v1108, 0.0
        %1113 = vadd.xlane.f32.xlu0 %v1112
        %v1114 = vpop.xlane.xlu0 %1113
        %v1115 = vrcp.pop %v1111
        %v1116 = vrcp.pop %v1114
        %v1117 = vmul.f32 %v1106, %v1115
        %v1118 = vmul.f32 %v1108, %v1116
        %v1119 = vpack.c.bf16 %v1118, %v1117
        %1120 = vrot.lane.b32.xlu0 %v865, 64
        %v1121 = vpop.permute.xlu0 %1120
        %v1124 = vsel %vm889, %v1119, 0
        %1126 = vmatpush.bf16.msra.mxu0 0
        %1127 = vmatpush.bf16.msra.mxu0 0
        %1128 = vmatpush.bf16.msra.mxu0 0
        %1129 = vmatpush.bf16.msra.mxu0 0
        %1130 = vmatpush.bf16.msra.mxu0 0
        %1131 = vmatpush.bf16.msra.mxu0 0
        %1132 = vmatpush.bf16.msra.mxu0 0
        %1133 = vmatpush.bf16.msra.mxu0 %v1121
        %1134 = vmatmul.bf16.gmra.mxu0 %v1124
        %v1135 = vpop.f32.mrf.mxu0
        %v1136 = vadd.f32 0.0, %v1135
        %v1137 = vpop.f32.mrf.mxu0
        %v1138 = vadd.f32 0.0, %v1137
        %1139 = vdwg.mxu0
        %v1140 = vpack.c.bf16 %v1138, %v1136
        %s1141 = scalar_lea.vmem [#allocation7], 32
        %v1142 = vld [vmem:[%s1141] sm:$0xf]
        %v1143 = vld [vmem:[%s1141 + $0x4] sm:$0xf]
        %v1144 = vld [vmem:[%s1141 + $0x8] sm:$0xf]
        %v1145 = vld [vmem:[%s1141 + $0xc] sm:$0xf]
        %v1150 = vunpack.c.l.b16 %v1142
        %v1151 = vunpack.c.l.b16 %v1143
        %v1152 = vunpack.c.l.b16 %v1144
        %v1153 = vunpack.c.l.b16 %v1145
        %v1154 = vpack.c.b16 %v1151, %v1150
        %v1155 = vpack.c.b16 %v1153, %v1152
        %v1159 = vsel %vm866, %v1140, 0
        %1161 = vmatpush.bf16.msra.mxu0 0
        %1162 = vmatpush.bf16.msra.mxu0 0
        %1163 = vmatpush.bf16.msra.mxu0 0
        %1164 = vmatpush.bf16.msra.mxu0 0
        %1165 = vmatpush.bf16.msra.mxu0 0
        %1166 = vmatpush.bf16.msra.mxu0 0
        %1167 = vmatpush.bf16.msra.mxu0 %v1155
        %1168 = vmatpush.bf16.msra.mxu0 %v1154
        %1169 = vmatmul.bf16.gmra.mxu0 %v1159
        %v1170 = vpop.f32.mrf.mxu0
        %v1171 = vadd.f32 0.0, %v1170
        %v1172 = vpop.f32.mrf.mxu0
        %v1173 = vadd.f32 0.0, %v1172
        %1174 = vdwg.mxu0
        %v1175 = vadd.f32 %v1067, %v1171
        %v1176 = vadd.f32 %v1069, %v1173
        %1177 = vrot.lane.b32.xlu0 %v863, 32
        %v1178 = vpop.permute.xlu0 %1177
        %1179 = vrot.lane.b32.xlu0 %v864, 32
        %v1180 = vpop.permute.xlu0 %1179
        %v1182 = vsel %vm866, %v1178, 0
        %v1185 = vsel %vm866, %v1180, 0
        %1187 = vmatpush.bf16.xpose.msra.mxu0 0
        %1188 = vmatpush.bf16.xpose.msra.mxu0 0
        %1189 = vmatpush.bf16.xpose.msra.mxu0 0
        %1190 = vmatpush.bf16.xpose.msra.mxu0 0
        %1191 = vmatpush.bf16.xpose.msra.mxu0 0
        %1192 = vmatpush.bf16.xpose.msra.mxu0 0
        %1193 = vmatpush.bf16.xpose.msra.mxu0 0
        %1194 = vmatpush.bf16.xpose.msra.mxu0 %v1185
        %1195 = vmatmul.bf16.gmra.mxu0 %v1182
        %v1196 = vpop.f32.mrf.mxu0
        %v1197 = vadd.f32 0.0, %v1196
        %v1198 = vpop.f32.mrf.mxu0
        %v1199 = vadd.f32 0.0, %v1198
        %1200 = vdwg.mxu0
        %v1201 = vsel %vm859, -1e+30, %v1197
        %v1202 = vsel %vm860, -1e+30, %v1199
        %v1203 = vsel %vm889, %v1201, -inf
        %1204 = vmax.xlane.f32.xlu0 %v1203
        %v1205 = vpop.xlane.xlu0 %1204
        %v1206 = vsel %vm889, %v1202, -inf
        %1207 = vmax.xlane.f32.xlu0 %v1206
        %v1208 = vpop.xlane.xlu0 %1207
        %v1209 = vsub.f32 %v1201, %v1205
        %v1210 = vsub.f32 %v1202, %v1208
        %v1211 = vmul.f32 %v1209, 1.442695
        %v1212 = vpow.pop %v1211
        %v1213 = vmul.f32 %v1210, 1.442695
        %v1214 = vpow.pop %v1213
        %v1215 = vsel %vm889, %v1212, 0.0
        %1216 = vadd.xlane.f32.xlu0 %v1215
        %v1217 = vpop.xlane.xlu0 %1216
        %v1218 = vsel %vm889, %v1214, 0.0
        %1219 = vadd.xlane.f32.xlu0 %v1218
        %v1220 = vpop.xlane.xlu0 %1219
        %v1221 = vrcp.pop %v1217
        %v1222 = vrcp.pop %v1220
        %v1223 = vmul.f32 %v1212, %v1221
        %v1224 = vmul.f32 %v1214, %v1222
        %v1225 = vpack.c.bf16 %v1224, %v1223
        %1226 = vrot.lane.b32.xlu0 %v865, 32
        %v1227 = vpop.permute.xlu0 %1226
        %v1230 = vsel %vm889, %v1225, 0
        %1232 = vmatpush.bf16.msra.mxu0 0
        %1233 = vmatpush.bf16.msra.mxu0 0
        %1234 = vmatpush.bf16.msra.mxu0 0
        %1235 = vmatpush.bf16.msra.mxu0 0
        %1236 = vmatpush.bf16.msra.mxu0 0
        %1237 = vmatpush.bf16.msra.mxu0 0
        %1238 = vmatpush.bf16.msra.mxu0 0
        %1239 = vmatpush.bf16.msra.mxu0 %v1227
        %1240 = vmatmul.bf16.gmra.mxu0 %v1230
        %v1241 = vpop.f32.mrf.mxu0
        %v1242 = vadd.f32 0.0, %v1241
        %v1243 = vpop.f32.mrf.mxu0
        %v1244 = vadd.f32 0.0, %v1243
        %1245 = vdwg.mxu0
        %v1246 = vpack.c.bf16 %v1244, %v1242
        %s1247 = scalar_lea.vmem [#allocation7], 48
        %v1248 = vld [vmem:[%s1247] sm:$0xf]
        %v1249 = vld [vmem:[%s1247 + $0x4] sm:$0xf]
        %v1250 = vld [vmem:[%s1247 + $0x8] sm:$0xf]
        %v1251 = vld [vmem:[%s1247 + $0xc] sm:$0xf]
        %v1256 = vunpack.c.l.b16 %v1248
        %v1257 = vunpack.c.l.b16 %v1249
        %v1258 = vunpack.c.l.b16 %v1250
        %v1259 = vunpack.c.l.b16 %v1251
        %v1260 = vpack.c.b16 %v1257, %v1256
        %v1261 = vpack.c.b16 %v1259, %v1258
        %v1265 = vsel %vm866, %v1246, 0
        %1267 = vmatpush.bf16.msra.mxu0 0
        %1268 = vmatpush.bf16.msra.mxu0 0
        %1269 = vmatpush.bf16.msra.mxu0 0
        %1270 = vmatpush.bf16.msra.mxu0 0
        %1271 = vmatpush.bf16.msra.mxu0 0
        %1272 = vmatpush.bf16.msra.mxu0 0
        %1273 = vmatpush.bf16.msra.mxu0 %v1261
        %1274 = vmatpush.bf16.msra.mxu0 %v1260
        %1275 = vmatmul.bf16.gmra.mxu0 %v1265
        %v1276 = vpop.f32.mrf.mxu0
        %v1277 = vadd.f32 0.0, %v1276
        %v1278 = vpop.f32.mrf.mxu0
        %v1279 = vadd.f32 0.0, %v1278
        %1280 = vdwg.mxu0
        %v1281 = vadd.f32 %v1175, %v1277
        %v1282 = vadd.f32 %v1176, %v1279
        %v1283 = vadd.f32 %v582, %v1281
        %v1284 = vadd.f32 %v583, %v1282
        %v1285 = vld [vmem:[%s6] sm:$0x1]
        %v1287 = vperm.slane %v1285, 0
        %v1289 = vadd.f32 %v1283, %v1287
        %v1290 = vadd.f32 %v1284, %v1287
        %v1291 = vld [vmem:[%s7] sm:$0x1]
        %v1292 = vld [vmem:[%s8] sm:$0x1]
        %1293 = vadd.xlane.f32.xlu0 %v1289
        %v1294 = vpop.xlane.xlu0 %1293
        %1295 = vadd.xlane.f32.xlu0 %v1290
        %v1296 = vpop.xlane.xlu0 %1295
        %v1297 = vmul.f32 %v1294, %v596
        %v1298 = vmul.f32 %v1296, %v596
        %v1299 = vsub.f32 %v1289, %v1297
        %v1300 = vsub.f32 %v1290, %v1298
        %v1301 = vmul.f32 %v1299, %v1299
        %v1302 = vmul.f32 %v1300, %v1300
        %1303 = vadd.xlane.f32.xlu0 %v1301
        %v1304 = vpop.xlane.xlu0 %1303
        %1305 = vadd.xlane.f32.xlu0 %v1302
        %v1306 = vpop.xlane.xlu0 %1305
        %v1307 = vmul.f32 %v1304, %v596
        %v1308 = vmul.f32 %v1306, %v596
        %v1309 = vadd.f32 %v1307, 1e-05
        %v1310 = vadd.f32 %v1308, 1e-05
        %v1311 = vrsqrt.pop %v1309
        %v1312 = vmul.f32 %v1311, %v1309
        %v1313 = vmul.f32 %v1312, %v1311
        %v1314 = vmul.f32 0.5, %v1313
        %v1315 = vsub.f32 1.5, %v1314
        %v1316 = vmul.f32 %v1311, %v1315
        %vm1317 = vweird.f32 %v1309
        %vm1318 = vweird.f32 %v1311
        %vm1319 = vmor %vm1317, %vm1318
        %v1320 = vsel %vm1319, %v1311, %v1316
        %v1321 = vrsqrt.pop %v1310
        %v1322 = vmul.f32 %v1321, %v1310
        %v1323 = vmul.f32 %v1322, %v1321
        %v1324 = vmul.f32 0.5, %v1323
        %v1325 = vsub.f32 1.5, %v1324
        %v1326 = vmul.f32 %v1321, %v1325
        %vm1327 = vweird.f32 %v1310
        %vm1328 = vweird.f32 %v1321
        %vm1329 = vmor %vm1327, %vm1328
        %v1330 = vsel %vm1329, %v1321, %v1326
        %v1331 = vmul.f32 %v1299, %v1320
        %v1332 = vmul.f32 %v1300, %v1330
        %v1334 = vperm.slane %v1291, 0
        %v1336 = vmul.f32 %v1331, %v1334
        %v1337 = vmul.f32 %v1332, %v1334
        %v1339 = vperm.slane %v1292, 0
        %v1341 = vadd.f32 %v1336, %v1339
        %v1342 = vadd.f32 %v1337, %v1339
        %v1343 = vpack.c.bf16 %v1342, %v1341
        %v1344 = vld [vmem:[#allocation8] sm:$0xff]
        %v1345 = vld [vmem:[#allocation8 + $0x8] sm:$0xff]
        %v1346 = vld [vmem:[#allocation8 + $0x10] sm:$0xff]
        %v1347 = vld [vmem:[#allocation8 + $0x18] sm:$0xff]
        %v1348 = vld [vmem:[#allocation8 + $0x20] sm:$0xff]
        %v1349 = vld [vmem:[#allocation8 + $0x28] sm:$0xff]
        %v1350 = vld [vmem:[#allocation8 + $0x30] sm:$0xff]
        %v1351 = vld [vmem:[#allocation8 + $0x38] sm:$0xff]
        %v1352 = vld [vmem:[#allocation8 + $0x40] sm:$0xff]
        %v1353 = vld [vmem:[#allocation8 + $0x48] sm:$0xff]
        %v1354 = vld [vmem:[#allocation8 + $0x50] sm:$0xff]
        %v1355 = vld [vmem:[#allocation8 + $0x58] sm:$0xff]
        %v1356 = vld [vmem:[#allocation8 + $0x60] sm:$0xff]
        %v1357 = vld [vmem:[#allocation8 + $0x68] sm:$0xff]
        %v1358 = vld [vmem:[#allocation8 + $0x70] sm:$0xff]
        %v1359 = vld [vmem:[#allocation8 + $0x78] sm:$0xff]
        %v1360 = vld [vmem:[#allocation8 + $0x80] sm:$0xff]
        %v1361 = vld [vmem:[#allocation8 + $0x88] sm:$0xff]
        %v1362 = vld [vmem:[#allocation8 + $0x90] sm:$0xff]
        %v1363 = vld [vmem:[#allocation8 + $0x98] sm:$0xff]
        %v1364 = vld [vmem:[#allocation8 + $0xa0] sm:$0xff]
        %v1365 = vld [vmem:[#allocation8 + $0xa8] sm:$0xff]
        %v1366 = vld [vmem:[#allocation8 + $0xb0] sm:$0xff]
        %v1367 = vld [vmem:[#allocation8 + $0xb8] sm:$0xff]
        %v1368 = vld [vmem:[#allocation8 + $0xc0] sm:$0xff]
        %v1369 = vld [vmem:[#allocation8 + $0xc8] sm:$0xff]
        %v1370 = vld [vmem:[#allocation8 + $0xd0] sm:$0xff]
        %v1371 = vld [vmem:[#allocation8 + $0xd8] sm:$0xff]
        %v1372 = vld [vmem:[#allocation8 + $0xe0] sm:$0xff]
        %v1373 = vld [vmem:[#allocation8 + $0xe8] sm:$0xff]
        %v1374 = vld [vmem:[#allocation8 + $0xf0] sm:$0xff]
        %v1375 = vld [vmem:[#allocation8 + $0xf8] sm:$0xff]
        %v1376 = vld [vmem:[%s10] sm:$0xf]
        %v1378 = vperm.slane %v1376, 0
        %v1379 = vperm.slane %v1376, 1
        %v1380 = vperm.slane %v1376, 2
        %v1381 = vperm.slane %v1376, 3
        %v1418 = vunpack.c.l.b16 %v1344
        %v1419 = vunpack.c.h.b16 %v1344
        %v1420 = vunpack.c.l.b16 %v1345
        %v1421 = vunpack.c.h.b16 %v1345
        %v1422 = vunpack.c.l.b16 %v1346
        %v1423 = vunpack.c.h.b16 %v1346
        %v1424 = vunpack.c.l.b16 %v1347
        %v1425 = vunpack.c.h.b16 %v1347
        %v1426 = vunpack.c.l.b16 %v1348
        %v1427 = vunpack.c.h.b16 %v1348
        %v1428 = vunpack.c.l.b16 %v1349
        %v1429 = vunpack.c.h.b16 %v1349
        %v1430 = vunpack.c.l.b16 %v1350
        %v1431 = vunpack.c.h.b16 %v1350
        %v1432 = vunpack.c.l.b16 %v1351
        %v1433 = vunpack.c.h.b16 %v1351
        %v1434 = vunpack.c.l.b16 %v1352
        %v1435 = vunpack.c.h.b16 %v1352
        %v1436 = vunpack.c.l.b16 %v1353
        %v1437 = vunpack.c.h.b16 %v1353
        %v1438 = vunpack.c.l.b16 %v1354
        %v1439 = vunpack.c.h.b16 %v1354
        %v1440 = vunpack.c.l.b16 %v1355
        %v1441 = vunpack.c.h.b16 %v1355
        %v1442 = vunpack.c.l.b16 %v1356
        %v1443 = vunpack.c.h.b16 %v1356
        %v1444 = vunpack.c.l.b16 %v1357
        %v1445 = vunpack.c.h.b16 %v1357
        %v1446 = vunpack.c.l.b16 %v1358
        %v1447 = vunpack.c.h.b16 %v1358
        %v1448 = vunpack.c.l.b16 %v1359
        %v1449 = vunpack.c.h.b16 %v1359
        %v1450 = vunpack.c.l.b16 %v1360
        %v1451 = vunpack.c.h.b16 %v1360
        %v1452 = vunpack.c.l.b16 %v1361
        %v1453 = vunpack.c.h.b16 %v1361
        %v1454 = vunpack.c.l.b16 %v1362
        %v1455 = vunpack.c.h.b16 %v1362
        %v1456 = vunpack.c.l.b16 %v1363
        %v1457 = vunpack.c.h.b16 %v1363
        %v1458 = vunpack.c.l.b16 %v1364
        %v1459 = vunpack.c.h.b16 %v1364
        %v1460 = vunpack.c.l.b16 %v1365
        %v1461 = vunpack.c.h.b16 %v1365
        %v1462 = vunpack.c.l.b16 %v1366
        %v1463 = vunpack.c.h.b16 %v1366
        %v1464 = vunpack.c.l.b16 %v1367
        %v1465 = vunpack.c.h.b16 %v1367
        %v1466 = vunpack.c.l.b16 %v1368
        %v1467 = vunpack.c.h.b16 %v1368
        %v1468 = vunpack.c.l.b16 %v1369
        %v1469 = vunpack.c.h.b16 %v1369
        %v1470 = vunpack.c.l.b16 %v1370
        %v1471 = vunpack.c.h.b16 %v1370
        %v1472 = vunpack.c.l.b16 %v1371
        %v1473 = vunpack.c.h.b16 %v1371
        %v1474 = vunpack.c.l.b16 %v1372
        %v1475 = vunpack.c.h.b16 %v1372
        %v1476 = vunpack.c.l.b16 %v1373
        %v1477 = vunpack.c.h.b16 %v1373
        %v1478 = vunpack.c.l.b16 %v1374
        %v1479 = vunpack.c.h.b16 %v1374
        %v1480 = vunpack.c.l.b16 %v1375
        %v1481 = vunpack.c.h.b16 %v1375
        %v1482 = vpack.c.b16 %v1422, %v1418
        %v1483 = vpack.c.b16 %v1423, %v1419
        %v1484 = vpack.c.b16 %v1424, %v1420
        %v1485 = vpack.c.b16 %v1425, %v1421
        %v1486 = vpack.c.b16 %v1430, %v1426
        %v1487 = vpack.c.b16 %v1431, %v1427
        %v1488 = vpack.c.b16 %v1432, %v1428
        %v1489 = vpack.c.b16 %v1433, %v1429
        %v1490 = vpack.c.b16 %v1438, %v1434
        %v1491 = vpack.c.b16 %v1439, %v1435
        %v1492 = vpack.c.b16 %v1440, %v1436
        %v1493 = vpack.c.b16 %v1441, %v1437
        %v1494 = vpack.c.b16 %v1446, %v1442
        %v1495 = vpack.c.b16 %v1447, %v1443
        %v1496 = vpack.c.b16 %v1448, %v1444
        %v1497 = vpack.c.b16 %v1449, %v1445
        %v1498 = vpack.c.b16 %v1454, %v1450
        %v1499 = vpack.c.b16 %v1455, %v1451
        %v1500 = vpack.c.b16 %v1456, %v1452
        %v1501 = vpack.c.b16 %v1457, %v1453
        %v1502 = vpack.c.b16 %v1462, %v1458
        %v1503 = vpack.c.b16 %v1463, %v1459
        %v1504 = vpack.c.b16 %v1464, %v1460
        %v1505 = vpack.c.b16 %v1465, %v1461
        %v1506 = vpack.c.b16 %v1470, %v1466
        %v1507 = vpack.c.b16 %v1471, %v1467
        %v1508 = vpack.c.b16 %v1472, %v1468
        %v1509 = vpack.c.b16 %v1473, %v1469
        %v1510 = vpack.c.b16 %v1478, %v1474
        %v1511 = vpack.c.b16 %v1479, %v1475
        %v1512 = vpack.c.b16 %v1480, %v1476
        %v1513 = vpack.c.b16 %v1481, %v1477
        %1546 = vmatpush.bf16.msra.mxu0 %v1510
        %1547 = vmatpush.bf16.msra.mxu0 %v1506
        %1548 = vmatpush.bf16.msra.mxu0 %v1502
        %1549 = vmatpush.bf16.msra.mxu0 %v1498
        %1550 = vmatpush.bf16.msra.mxu0 %v1494
        %1551 = vmatpush.bf16.msra.mxu0 %v1490
        %1552 = vmatpush.bf16.msra.mxu0 %v1486
        %1553 = vmatpush.bf16.msra.mxu0 %v1482
        %1554 = vmatmul.bf16.gmra.mxu0 %v1343
        %v1555 = vpop.f32.mrf.mxu0
        %v1556 = vadd.f32 %v1378, %v1555
        %v1557 = vpop.f32.mrf.mxu0
        %v1558 = vadd.f32 %v1378, %v1557
        %1559 = vdwg.mxu0
        %1560 = vmatpush.bf16.msra.mxu0 %v1511
        %1561 = vmatpush.bf16.msra.mxu0 %v1507
        %1562 = vmatpush.bf16.msra.mxu0 %v1503
        %1563 = vmatpush.bf16.msra.mxu0 %v1499
        %1564 = vmatpush.bf16.msra.mxu0 %v1495
        %1565 = vmatpush.bf16.msra.mxu0 %v1491
        %1566 = vmatpush.bf16.msra.mxu0 %v1487
        %1567 = vmatpush.bf16.msra.mxu0 %v1483
        %1568 = vmatmul.bf16.gmra.mxu0 %v1343
        %v1569 = vpop.f32.mrf.mxu0
        %v1570 = vadd.f32 %v1379, %v1569
        %v1571 = vpop.f32.mrf.mxu0
        %v1572 = vadd.f32 %v1379, %v1571
        %1573 = vdwg.mxu0
        %1574 = vmatpush.bf16.msra.mxu0 %v1512
        %1575 = vmatpush.bf16.msra.mxu0 %v1508
        %1576 = vmatpush.bf16.msra.mxu0 %v1504
        %1577 = vmatpush.bf16.msra.mxu0 %v1500
        %1578 = vmatpush.bf16.msra.mxu0 %v1496
        %1579 = vmatpush.bf16.msra.mxu0 %v1492
        %1580 = vmatpush.bf16.msra.mxu0 %v1488
        %1581 = vmatpush.bf16.msra.mxu0 %v1484
        %1582 = vmatmul.bf16.gmra.mxu0 %v1343
        %v1583 = vpop.f32.mrf.mxu0
        %v1584 = vadd.f32 %v1380, %v1583
        %v1585 = vpop.f32.mrf.mxu0
        %v1586 = vadd.f32 %v1380, %v1585
        %1587 = vdwg.mxu0
        %1588 = vmatpush.bf16.msra.mxu0 %v1513
        %1589 = vmatpush.bf16.msra.mxu0 %v1509
        %1590 = vmatpush.bf16.msra.mxu0 %v1505
        %1591 = vmatpush.bf16.msra.mxu0 %v1501
        %1592 = vmatpush.bf16.msra.mxu0 %v1497
        %1593 = vmatpush.bf16.msra.mxu0 %v1493
        %1594 = vmatpush.bf16.msra.mxu0 %v1489
        %1595 = vmatpush.bf16.msra.mxu0 %v1485
        %1596 = vmatmul.bf16.gmra.mxu0 %v1343
        %v1597 = vpop.f32.mrf.mxu0
        %v1598 = vadd.f32 %v1381, %v1597
        %v1599 = vpop.f32.mrf.mxu0
        %v1600 = vadd.f32 %v1381, %v1599
        %1601 = vdwg.mxu0
        %v1602 = vmul.f32 %v1556, -1.702
        %v1603 = vmul.f32 %v1570, -1.702
        %v1604 = vmul.f32 %v1584, -1.702
        %v1605 = vmul.f32 %v1598, -1.702
        %v1606 = vmul.f32 %v1558, -1.702
        %v1607 = vmul.f32 %v1572, -1.702
        %v1608 = vmul.f32 %v1586, -1.702
        %v1609 = vmul.f32 %v1600, -1.702
        %v1610 = vmul.f32 %v1602, 1.442695
        %v1611 = vpow.pop %v1610
        %v1612 = vmul.f32 %v1603, 1.442695
        %v1613 = vpow.pop %v1612
        %v1614 = vmul.f32 %v1604, 1.442695
        %v1615 = vpow.pop %v1614
        %v1616 = vmul.f32 %v1605, 1.442695
        %v1617 = vpow.pop %v1616
        %v1618 = vmul.f32 %v1606, 1.442695
        %v1619 = vpow.pop %v1618
        %v1620 = vmul.f32 %v1607, 1.442695
        %v1621 = vpow.pop %v1620
        %v1622 = vmul.f32 %v1608, 1.442695
        %v1623 = vpow.pop %v1622
        %v1624 = vmul.f32 %v1609, 1.442695
        %v1625 = vpow.pop %v1624
        %v1626 = vadd.f32 %v1611, 1.0
        %v1627 = vadd.f32 %v1613, 1.0
        %v1628 = vadd.f32 %v1615, 1.0
        %v1629 = vadd.f32 %v1617, 1.0
        %v1630 = vadd.f32 %v1619, 1.0
        %v1631 = vadd.f32 %v1621, 1.0
        %v1632 = vadd.f32 %v1623, 1.0
        %v1633 = vadd.f32 %v1625, 1.0
        %v1634 = vrcp.pop %v1626
        %v1635 = vrcp.pop %v1627
        %v1636 = vrcp.pop %v1628
        %v1637 = vrcp.pop %v1629
        %v1638 = vrcp.pop %v1630
        %v1639 = vrcp.pop %v1631
        %v1640 = vrcp.pop %v1632
        %v1641 = vrcp.pop %v1633
        %v1642 = vmul.f32 %v1556, %v1634
        %v1643 = vmul.f32 %v1570, %v1635
        %v1644 = vmul.f32 %v1584, %v1636
        %v1645 = vmul.f32 %v1598, %v1637
        %v1646 = vmul.f32 %v1558, %v1638
        %v1647 = vmul.f32 %v1572, %v1639
        %v1648 = vmul.f32 %v1586, %v1640
        %v1649 = vmul.f32 %v1600, %v1641
        %v1650 = vpack.c.bf16 %v1646, %v1642
        %v1651 = vpack.c.bf16 %v1647, %v1643
        %v1652 = vpack.c.bf16 %v1648, %v1644
        %v1653 = vpack.c.bf16 %v1649, %v1645
        %v1654 = vld [vmem:[#allocation10] sm:$0xf]
        %v1655 = vld [vmem:[#allocation10 + $0x4] sm:$0xf]
        %v1656 = vld [vmem:[#allocation10 + $0x8] sm:$0xf]
        %v1657 = vld [vmem:[#allocation10 + $0xc] sm:$0xf]
        %v1658 = vld [vmem:[#allocation10 + $0x10] sm:$0xf]
        %v1659 = vld [vmem:[#allocation10 + $0x14] sm:$0xf]
        %v1660 = vld [vmem:[#allocation10 + $0x18] sm:$0xf]
        %v1661 = vld [vmem:[#allocation10 + $0x1c] sm:$0xf]
        %v1662 = vld [vmem:[#allocation10 + $0x20] sm:$0xf]
        %v1663 = vld [vmem:[#allocation10 + $0x24] sm:$0xf]
        %v1664 = vld [vmem:[#allocation10 + $0x28] sm:$0xf]
        %v1665 = vld [vmem:[#allocation10 + $0x2c] sm:$0xf]
        %v1666 = vld [vmem:[#allocation10 + $0x30] sm:$0xf]
        %v1667 = vld [vmem:[#allocation10 + $0x34] sm:$0xf]
        %v1668 = vld [vmem:[#allocation10 + $0x38] sm:$0xf]
        %v1669 = vld [vmem:[#allocation10 + $0x3c] sm:$0xf]
        %v1670 = vld [vmem:[#allocation10 + $0x40] sm:$0xf]
        %v1671 = vld [vmem:[#allocation10 + $0x44] sm:$0xf]
        %v1672 = vld [vmem:[#allocation10 + $0x48] sm:$0xf]
        %v1673 = vld [vmem:[#allocation10 + $0x4c] sm:$0xf]
        %v1674 = vld [vmem:[#allocation10 + $0x50] sm:$0xf]
        %v1675 = vld [vmem:[#allocation10 + $0x54] sm:$0xf]
        %v1676 = vld [vmem:[#allocation10 + $0x58] sm:$0xf]
        %v1677 = vld [vmem:[#allocation10 + $0x5c] sm:$0xf]
        %v1678 = vld [vmem:[#allocation10 + $0x60] sm:$0xf]
        %v1679 = vld [vmem:[#allocation10 + $0x64] sm:$0xf]
        %v1680 = vld [vmem:[#allocation10 + $0x68] sm:$0xf]
        %v1681 = vld [vmem:[#allocation10 + $0x6c] sm:$0xf]
        %v1682 = vld [vmem:[#allocation10 + $0x70] sm:$0xf]
        %v1683 = vld [vmem:[#allocation10 + $0x74] sm:$0xf]
        %v1684 = vld [vmem:[#allocation10 + $0x78] sm:$0xf]
        %v1685 = vld [vmem:[#allocation10 + $0x7c] sm:$0xf]
        %v1686 = vld [vmem:[#allocation10 + $0x80] sm:$0xf]
        %v1687 = vld [vmem:[#allocation10 + $0x84] sm:$0xf]
        %v1688 = vld [vmem:[#allocation10 + $0x88] sm:$0xf]
        %v1689 = vld [vmem:[#allocation10 + $0x8c] sm:$0xf]
        %v1690 = vld [vmem:[#allocation10 + $0x90] sm:$0xf]
        %v1691 = vld [vmem:[#allocation10 + $0x94] sm:$0xf]
        %v1692 = vld [vmem:[#allocation10 + $0x98] sm:$0xf]
        %v1693 = vld [vmem:[#allocation10 + $0x9c] sm:$0xf]
        %v1694 = vld [vmem:[#allocation10 + $0xa0] sm:$0xf]
        %v1695 = vld [vmem:[#allocation10 + $0xa4] sm:$0xf]
        %v1696 = vld [vmem:[#allocation10 + $0xa8] sm:$0xf]
        %v1697 = vld [vmem:[#allocation10 + $0xac] sm:$0xf]
        %v1698 = vld [vmem:[#allocation10 + $0xb0] sm:$0xf]
        %v1699 = vld [vmem:[#allocation10 + $0xb4] sm:$0xf]
        %v1700 = vld [vmem:[#allocation10 + $0xb8] sm:$0xf]
        %v1701 = vld [vmem:[#allocation10 + $0xbc] sm:$0xf]
        %v1702 = vld [vmem:[#allocation10 + $0xc0] sm:$0xf]
        %v1703 = vld [vmem:[#allocation10 + $0xc4] sm:$0xf]
        %v1704 = vld [vmem:[#allocation10 + $0xc8] sm:$0xf]
        %v1705 = vld [vmem:[#allocation10 + $0xcc] sm:$0xf]
        %v1706 = vld [vmem:[#allocation10 + $0xd0] sm:$0xf]
        %v1707 = vld [vmem:[#allocation10 + $0xd4] sm:$0xf]
        %v1708 = vld [vmem:[#allocation10 + $0xd8] sm:$0xf]
        %v1709 = vld [vmem:[#allocation10 + $0xdc] sm:$0xf]
        %v1710 = vld [vmem:[#allocation10 + $0xe0] sm:$0xf]
        %v1711 = vld [vmem:[#allocation10 + $0xe4] sm:$0xf]
        %v1712 = vld [vmem:[#allocation10 + $0xe8] sm:$0xf]
        %v1713 = vld [vmem:[#allocation10 + $0xec] sm:$0xf]
        %v1714 = vld [vmem:[#allocation10 + $0xf0] sm:$0xf]
        %v1715 = vld [vmem:[#allocation10 + $0xf4] sm:$0xf]
        %v1716 = vld [vmem:[#allocation10 + $0xf8] sm:$0xf]
        %v1717 = vld [vmem:[#allocation10 + $0xfc] sm:$0xf]
        %v1718 = vld [vmem:[%s12] sm:$0x1]
        %v1720 = vperm.slane %v1718, 0
        %v1786 = vunpack.c.l.b16 %v1654
        %v1787 = vunpack.c.l.b16 %v1655
        %v1788 = vunpack.c.l.b16 %v1656
        %v1789 = vunpack.c.l.b16 %v1657
        %v1790 = vunpack.c.l.b16 %v1658
        %v1791 = vunpack.c.l.b16 %v1659
        %v1792 = vunpack.c.l.b16 %v1660
        %v1793 = vunpack.c.l.b16 %v1661
        %v1794 = vunpack.c.l.b16 %v1662
        %v1795 = vunpack.c.l.b16 %v1663
        %v1796 = vunpack.c.l.b16 %v1664
        %v1797 = vunpack.c.l.b16 %v1665
        %v1798 = vunpack.c.l.b16 %v1666
        %v1799 = vunpack.c.l.b16 %v1667
        %v1800 = vunpack.c.l.b16 %v1668
        %v1801 = vunpack.c.l.b16 %v1669
        %v1802 = vunpack.c.l.b16 %v1670
        %v1803 = vunpack.c.l.b16 %v1671
        %v1804 = vunpack.c.l.b16 %v1672
        %v1805 = vunpack.c.l.b16 %v1673
        %v1806 = vunpack.c.l.b16 %v1674
        %v1807 = vunpack.c.l.b16 %v1675
        %v1808 = vunpack.c.l.b16 %v1676
        %v1809 = vunpack.c.l.b16 %v1677
        %v1810 = vunpack.c.l.b16 %v1678
        %v1811 = vunpack.c.l.b16 %v1679
        %v1812 = vunpack.c.l.b16 %v1680
        %v1813 = vunpack.c.l.b16 %v1681
        %v1814 = vunpack.c.l.b16 %v1682
        %v1815 = vunpack.c.l.b16 %v1683
        %v1816 = vunpack.c.l.b16 %v1684
        %v1817 = vunpack.c.l.b16 %v1685
        %v1818 = vunpack.c.l.b16 %v1686
        %v1819 = vunpack.c.l.b16 %v1687
        %v1820 = vunpack.c.l.b16 %v1688
        %v1821 = vunpack.c.l.b16 %v1689
        %v1822 = vunpack.c.l.b16 %v1690
        %v1823 = vunpack.c.l.b16 %v1691
        %v1824 = vunpack.c.l.b16 %v1692
        %v1825 = vunpack.c.l.b16 %v1693
        %v1826 = vunpack.c.l.b16 %v1694
        %v1827 = vunpack.c.l.b16 %v1695
        %v1828 = vunpack.c.l.b16 %v1696
        %v1829 = vunpack.c.l.b16 %v1697
        %v1830 = vunpack.c.l.b16 %v1698
        %v1831 = vunpack.c.l.b16 %v1699
        %v1832 = vunpack.c.l.b16 %v1700
        %v1833 = vunpack.c.l.b16 %v1701
        %v1834 = vunpack.c.l.b16 %v1702
        %v1835 = vunpack.c.l.b16 %v1703
        %v1836 = vunpack.c.l.b16 %v1704
        %v1837 = vunpack.c.l.b16 %v1705
        %v1838 = vunpack.c.l.b16 %v1706
        %v1839 = vunpack.c.l.b16 %v1707
        %v1840 = vunpack.c.l.b16 %v1708
        %v1841 = vunpack.c.l.b16 %v1709
        %v1842 = vunpack.c.l.b16 %v1710
        %v1843 = vunpack.c.l.b16 %v1711
        %v1844 = vunpack.c.l.b16 %v1712
        %v1845 = vunpack.c.l.b16 %v1713
        %v1846 = vunpack.c.l.b16 %v1714
        %v1847 = vunpack.c.l.b16 %v1715
        %v1848 = vunpack.c.l.b16 %v1716
        %v1849 = vunpack.c.l.b16 %v1717
        %v1850 = vpack.c.b16 %v1787, %v1786
        %v1851 = vpack.c.b16 %v1789, %v1788
        %v1852 = vpack.c.b16 %v1791, %v1790
        %v1853 = vpack.c.b16 %v1793, %v1792
        %v1854 = vpack.c.b16 %v1795, %v1794
        %v1855 = vpack.c.b16 %v1797, %v1796
        %v1856 = vpack.c.b16 %v1799, %v1798
        %v1857 = vpack.c.b16 %v1801, %v1800
        %v1858 = vpack.c.b16 %v1803, %v1802
        %v1859 = vpack.c.b16 %v1805, %v1804
        %v1860 = vpack.c.b16 %v1807, %v1806
        %v1861 = vpack.c.b16 %v1809, %v1808
        %v1862 = vpack.c.b16 %v1811, %v1810
        %v1863 = vpack.c.b16 %v1813, %v1812
        %v1864 = vpack.c.b16 %v1815, %v1814
        %v1865 = vpack.c.b16 %v1817, %v1816
        %v1866 = vpack.c.b16 %v1819, %v1818
        %v1867 = vpack.c.b16 %v1821, %v1820
        %v1868 = vpack.c.b16 %v1823, %v1822
        %v1869 = vpack.c.b16 %v1825, %v1824
        %v1870 = vpack.c.b16 %v1827, %v1826
        %v1871 = vpack.c.b16 %v1829, %v1828
        %v1872 = vpack.c.b16 %v1831, %v1830
        %v1873 = vpack.c.b16 %v1833, %v1832
        %v1874 = vpack.c.b16 %v1835, %v1834
        %v1875 = vpack.c.b16 %v1837, %v1836
        %v1876 = vpack.c.b16 %v1839, %v1838
        %v1877 = vpack.c.b16 %v1841, %v1840
        %v1878 = vpack.c.b16 %v1843, %v1842
        %v1879 = vpack.c.b16 %v1845, %v1844
        %v1880 = vpack.c.b16 %v1847, %v1846
        %v1881 = vpack.c.b16 %v1849, %v1848
        %1914 = vmatpush.bf16.msra.mxu0 %v1857
        %1915 = vmatpush.bf16.msra.mxu0 %v1856
        %1916 = vmatpush.bf16.msra.mxu0 %v1855
        %1917 = vmatpush.bf16.msra.mxu0 %v1854
        %1918 = vmatpush.bf16.msra.mxu0 %v1853
        %1919 = vmatpush.bf16.msra.mxu0 %v1852
        %1920 = vmatpush.bf16.msra.mxu0 %v1851
        %1921 = vmatpush.bf16.msra.mxu0 %v1850
        %1922 = vmatmul.bf16.gmra.mxu0 %v1650
        %v1923 = vpop.f32.mrf.mxu0
        %v1924 = vadd.f32 %v1720, %v1923
        %v1925 = vpop.f32.mrf.mxu0
        %v1926 = vadd.f32 %v1720, %v1925
        %1927 = vdwg.mxu0
        %1928 = vmatpush.bf16.msra.mxu0 %v1865
        %1929 = vmatpush.bf16.msra.mxu0 %v1864
        %1930 = vmatpush.bf16.msra.mxu0 %v1863
        %1931 = vmatpush.bf16.msra.mxu0 %v1862
        %1932 = vmatpush.bf16.msra.mxu0 %v1861
        %1933 = vmatpush.bf16.msra.mxu0 %v1860
        %1934 = vmatpush.bf16.msra.mxu0 %v1859
        %1935 = vmatpush.bf16.msra.mxu0 %v1858
        %1936 = vmatmul.bf16.gmra.mxu0 %v1651
        %v1937 = vpop.f32.mrf.mxu0
        %v1938 = vadd.f32 %v1924, %v1937
        %v1939 = vpop.f32.mrf.mxu0
        %v1940 = vadd.f32 %v1926, %v1939
        %1941 = vdwg.mxu0
        %1942 = vmatpush.bf16.msra.mxu0 %v1873
        %1943 = vmatpush.bf16.msra.mxu0 %v1872
        %1944 = vmatpush.bf16.msra.mxu0 %v1871
        %1945 = vmatpush.bf16.msra.mxu0 %v1870
        %1946 = vmatpush.bf16.msra.mxu0 %v1869
        %1947 = vmatpush.bf16.msra.mxu0 %v1868
        %1948 = vmatpush.bf16.msra.mxu0 %v1867
        %1949 = vmatpush.bf16.msra.mxu0 %v1866
        %1950 = vmatmul.bf16.gmra.mxu0 %v1652
        %v1951 = vpop.f32.mrf.mxu0
        %v1952 = vadd.f32 %v1938, %v1951
        %v1953 = vpop.f32.mrf.mxu0
        %v1954 = vadd.f32 %v1940, %v1953
        %1955 = vdwg.mxu0
        %1956 = vmatpush.bf16.msra.mxu0 %v1881
        %1957 = vmatpush.bf16.msra.mxu0 %v1880
        %1958 = vmatpush.bf16.msra.mxu0 %v1879
        %1959 = vmatpush.bf16.msra.mxu0 %v1878
        %1960 = vmatpush.bf16.msra.mxu0 %v1877
        %1961 = vmatpush.bf16.msra.mxu0 %v1876
        %1962 = vmatpush.bf16.msra.mxu0 %v1875
        %1963 = vmatpush.bf16.msra.mxu0 %v1874
        %1964 = vmatmul.bf16.gmra.mxu0 %v1653
        %v1965 = vpop.f32.mrf.mxu0
        %v1966 = vadd.f32 %v1952, %v1965
        %v1967 = vpop.f32.mrf.mxu0
        %v1968 = vadd.f32 %v1954, %v1967
        %1969 = vdwg.mxu0
        %v1970 = vadd.f32 %v1289, %v1966
        %v1971 = vadd.f32 %v1290, %v1968
        %v1972 = vld [vmem:[%s13] sm:$0x1]
        %v1973 = vld [vmem:[%s14] sm:$0x1]
        %1974 = vadd.xlane.f32.xlu0 %v1970
        %v1975 = vpop.xlane.xlu0 %1974
        %1976 = vadd.xlane.f32.xlu0 %v1971
        %v1977 = vpop.xlane.xlu0 %1976
        %v1978 = vmul.f32 %v1975, %v596
        %v1979 = vmul.f32 %v1977, %v596
        %v1980 = vsub.f32 %v1970, %v1978
        %v1981 = vsub.f32 %v1971, %v1979
        %v1982 = vmul.f32 %v1980, %v1980
        %v1983 = vmul.f32 %v1981, %v1981
        %1984 = vadd.xlane.f32.xlu0 %v1982
        %v1985 = vpop.xlane.xlu0 %1984
        %1986 = vadd.xlane.f32.xlu0 %v1983
        %v1987 = vpop.xlane.xlu0 %1986
        %v1988 = vmul.f32 %v1985, %v596
        %v1989 = vmul.f32 %v1987, %v596
        %v1990 = vadd.f32 %v1988, 1e-05
        %v1991 = vadd.f32 %v1989, 1e-05
        %v1992 = vrsqrt.pop %v1990
        %v1993 = vmul.f32 %v1992, %v1990
        %v1994 = vmul.f32 %v1993, %v1992
        %v1995 = vmul.f32 0.5, %v1994
        %v1996 = vsub.f32 1.5, %v1995
        %v1997 = vmul.f32 %v1992, %v1996
        %vm1998 = vweird.f32 %v1990
        %vm1999 = vweird.f32 %v1992
        %vm2000 = vmor %vm1998, %vm1999
        %v2001 = vsel %vm2000, %v1992, %v1997
        %v2002 = vrsqrt.pop %v1991
        %v2003 = vmul.f32 %v2002, %v1991
        %v2004 = vmul.f32 %v2003, %v2002
        %v2005 = vmul.f32 0.5, %v2004
        %v2006 = vsub.f32 1.5, %v2005
        %v2007 = vmul.f32 %v2002, %v2006
        %vm2008 = vweird.f32 %v1991
        %vm2009 = vweird.f32 %v2002
        %vm2010 = vmor %vm2008, %vm2009
        %v2011 = vsel %vm2010, %v2002, %v2007
        %v2012 = vmul.f32 %v1980, %v2001
        %v2013 = vmul.f32 %v1981, %v2011
        %v2015 = vperm.slane %v1972, 0
        %v2017 = vmul.f32 %v2012, %v2015
        %v2018 = vmul.f32 %v2013, %v2015
        %v2020 = vperm.slane %v1973, 0
        %v2022 = vadd.f32 %v2017, %v2020
        %v2023 = vadd.f32 %v2018, %v2020
        %2024 = vst [vmem:[%s580] sm:$0xff] %v2022
        %2025 = vst [vmem:[%s580 + $0x8] sm:$0xff] %v2023
        %s2026 = sand.u32 %s362, 1
        %s2027 = scalar_lea.sflag [#allocation4], %s2026
        %s2028 = sand.u32 %s362, 1
        %s2029 = smul.addr %s2028, 16
        %s2030 = scalar_lea.vmem [#allocation11], %s2029
        // Predicated region
        $region101: #{clip_forward.3} parent=79 // pred_check
          %p2031 = pneg %p372
        $region102: #{clip_forward.3} parent=79 // pred_check_branch
          %2033 = sbr.rel (%p2031) target = $region104
        $region103: #{clip_forward.3} parent=79 // pred_region
          %2035 = vsyncadd %s2027, 0
          %s2036 = smul.addr %s34, 2
          %s2037 = smul.addr %s2036, 8
          %s2038 = scalar_lea.hbm %s15, %s2037
          %s2039 = sshll.u32 %s2030, 4
          %s2040 = int_to_ptr.vmem [resolvable:$true] %s2039
          %s2041 = sshll.u32 %s2038, 4
          %s2042 = int_to_ptr.hbm [resolvable:$true] %s2041
          %2047 = dma.vmem_to_hbm [thread:$0]  %s2040, 256, %s2042, %s2027, 128, 128, 8
        $region104: #{clip_forward.3} parent=79 // pred_fallthru
          _
      $region80: #{clip_forward.3} parent=5 // pred_fallthru
        _
      %p2048 = scmp.le.s32.totalorder 2, %s29
      // Predicated region
      $region105: #{clip_forward.3} parent=5 // pred_check
        %p2049 = pneg %p2048
      $region106: #{clip_forward.3} parent=5 // pred_check_branch
        %2051 = sbr.rel (%p2049) target = $region108
      $region107: #{clip_forward.3} parent=5 // pred_region
        %s2052 = ssub.s32 %s29, 2
        // Predicated region
        $region109: #{clip_forward.3} parent=107 // pred_check
          %p2053 = pneg %p378
        $region110: #{clip_forward.3} parent=107 // pred_check_branch
          %2055 = sbr.rel (%p2053) target = $region112
        $region111: #{clip_forward.3} parent=107 // pred_region
          %s2056 = sand.u32 %s363, 1
          %s2057 = scalar_lea.sflag [#allocation4], %s2056
          %s2058 = sand.u32 %s363, 1
          %s2059 = smul.addr %s2058, 16
          %s2060 = scalar_lea.vmem [#allocation11], %s2059
          %2062 = dma.done %s2057, 256
        $region112: #{clip_forward.3} parent=107 // pred_fallthru
          _
      $region108: #{clip_forward.3} parent=5 // pred_fallthru
        _
    $region6: #{clip_forward.3} parent=1 // loop_footer
      %s33 = sadd.s32 1, %s29
    $region7: #{clip_forward.3} parent=1 // loop_footer_branch
      %28 = sbr.rel target = $region3
    $region8: #{clip_forward.3} parent=1 // loop_exit
      _
    %2063 = vsyncpa [#allocation3], 1
    %s2064 = scalar_lea.sflag [#allocation3], 1
    %2065 = vsyncpa %s2064, 1
    %2066 = vsyncpa [#allocation6], 1
    %2067 = vsyncpa [#allocation9], 1
    %2068 = vsyncpa [#allocation4], 1
    %s2069 = scalar_lea.sflag [#allocation4], 1
    %2070 = vsyncpa %s2069, 1

</llo_original>
